<compile_context>
chip_gen: v6e
topology: v6e:2x2x1
jax: 0.10.0
libtpu: 0.0.40
codegen_flags: <defaults>
</compile_context>

<pallas_src>
import math

import jax
import jax.numpy as jnp
from jax.experimental import pallas as pl
from jax.experimental.pallas import tpu as pltpu

# ----- scaled-down BERT config -----
B = 2          # batch
S = 8          # sequence length
H = 32         # hidden size
NH = 2         # attention heads
DH = H // NH   # head dim
I = 64         # intermediate (FFN) size
L = 2          # encoder layers
V = 100        # vocab size
TV = 2         # token type vocab
P = 16         # max position embeddings
LN_EPS = 1e-12
NG = 3 * NH    # (q/k/v) x heads "groups"


def _layernorm(h, g, b):
    mean = jnp.mean(h, axis=-1, keepdims=True)
    var = jnp.mean((h - mean) ** 2, axis=-1, keepdims=True)
    return (h - mean) * jax.lax.rsqrt(var + LN_EPS) * g + b


# ---------------------------------------------------------------------------
# Fused Pallas kernel (one batch row per grid step):
#   embedding-LN -> L encoder layers -> seq max-pool + pooler -> Linear head
# ---------------------------------------------------------------------------
def _fused_bert_kernel(emb_ref, mask_ref, misc_ref,
                       wqkv_ref, bqkv_ref, wo_ref, vecs_ref,
                       wi_ref, bi_ref, wo2_ref,
                       pooler_w_ref, lin_w_ref, lin_b_ref,
                       o_ref):
    f32 = jnp.float32
    bf16 = jnp.bfloat16

    # --- embedding LayerNorm ---
    x = _layernorm(emb_ref[0], misc_ref[0], misc_ref[1])            # (S, H) f32
    amask = mask_ref[0]                                             # (1, S) additive

    for l in range(L):                                              # static unroll
        # fused, head-split QKV projection: one batched matmul over the
        # (q/k/v x head) leading axis; 1/sqrt(DH) folded into Wq/bq.
        xb = jnp.broadcast_to(x.astype(bf16), (NG, S, H))
        qkv = jnp.einsum('gsh,ghd->gsd', xb, wqkv_ref[l],
                         preferred_element_type=f32) + bqkv_ref[l]  # (NG, S, DH)
        q = qkv[0:NH].astype(bf16)                                  # (NH, S, DH)
        k = qkv[NH:2 * NH].astype(bf16)
        v = qkv[2 * NH:3 * NH].astype(bf16)

        # scores + masked softmax (EUP reciprocal)
        s = jnp.einsum('hqd,hkd->hqk', q, k, preferred_element_type=f32)
        s = s + amask
        s = s - jnp.max(s, axis=-1, keepdims=True)
        p = jnp.exp(s)
        p = p * pl.reciprocal(jnp.sum(p, axis=-1, keepdims=True), approx=True)

        ctx = jnp.einsum('hqk,hkd->hqd', p.astype(bf16), v,
                         preferred_element_type=f32)                # (NH, S, DH)

        # head merge folded into the output projection (per-head Wo slabs)
        attn = vecs_ref[l, 0]                                       # bo, (1, H)
        for h in range(NH):
            attn = attn + jnp.dot(ctx[h].astype(bf16), wo_ref[l, h],
                                  preferred_element_type=f32)
        x = _layernorm(attn + x, vecs_ref[l, 1], vecs_ref[l, 2])

        # FFN
        hid = jnp.dot(x.astype(bf16), wi_ref[l],
                      preferred_element_type=f32) + bi_ref[l]
        # TODO(synk): bert-base-cased uses exact (erf) GeLU; tanh approximation kept here.
        hid = jax.nn.gelu(hid, approximate=True)
        ffn = jnp.dot(hid.astype(bf16), wo2_ref[l],
                      preferred_element_type=f32) + vecs_ref[l, 3]
        x = _layernorm(ffn + x, vecs_ref[l, 4], vecs_ref[l, 5])

    # --- MaxPool2d((seq_len,1)).squeeze(1): max over sequence ---
    pooled_max = jnp.max(x, axis=0, keepdims=True)                  # (1, H)

    # --- BERT pooler: tanh(cls_token @ W + b) ---
    cls_tok = x[0:1, :]                                             # (1, H)
    pooled_cls = jnp.tanh(
        jnp.dot(cls_tok.astype(bf16), pooler_w_ref[...],
                preferred_element_type=f32) + misc_ref[2])          # (1, H)

    # --- concat + Linear(2H, 1) as VPU multiply + lane reduce ---
    score = (jnp.sum(pooled_max * lin_w_ref[0], axis=-1, keepdims=True)
             + jnp.sum(pooled_cls * lin_w_ref[1], axis=-1, keepdims=True)
             + lin_b_ref[...])                                      # (1, 1)
    o_ref[0] = score


# ---------------------------------------------------------------------------
# Parameters (deterministic synthetic scaled-down BERT, kernel-friendly layout)
# ---------------------------------------------------------------------------
def init_params(key):
    def nrm(k, shape, std=0.02):
        return std * jax.random.normal(k, shape, dtype=jnp.float32)

    keys = iter(jax.random.split(key, 128))
    scale = 1.0 / math.sqrt(DH)
    bf16 = jnp.bfloat16

    def head_split_in(w):   # (H, H) -> (NH, H, DH): head h <- columns h*DH:(h+1)*DH
        return jnp.transpose(w.reshape(H, NH, DH), (1, 0, 2))

    wqkv, bqkv, wo, vecs, wi, bi, wo2 = ([] for _ in range(7))
    for _ in range(L):
        wq = nrm(next(keys), (H, H)) * scale          # fold 1/sqrt(DH) into Q proj
        wk = nrm(next(keys), (H, H))
        wv = nrm(next(keys), (H, H))
        bq = jnp.zeros((H,), jnp.float32) * scale     # bq must carry the fold too
        bk = jnp.zeros((H,), jnp.float32)
        bv = jnp.zeros((H,), jnp.float32)
        wqkv.append(jnp.concatenate(
            [head_split_in(wq), head_split_in(wk), head_split_in(wv)], axis=0))   # (NG,H,DH)
        bqkv.append(jnp.concatenate(
            [bq.reshape(NH, 1, DH), bk.reshape(NH, 1, DH), bv.reshape(NH, 1, DH)],
            axis=0))                                                               # (NG,1,DH)
        wo.append(nrm(next(keys), (H, H)).reshape(NH, DH, H))   # row block h = head h
        bo = jnp.zeros((H,), jnp.float32)
        ln1_g = jnp.ones((H,), jnp.float32); ln1_b = jnp.zeros((H,), jnp.float32)
        bo2 = jnp.zeros((H,), jnp.float32)
        ln2_g = jnp.ones((H,), jnp.float32); ln2_b = jnp.zeros((H,), jnp.float32)
        vecs.append(jnp.stack([bo, ln1_g, ln1_b, bo2, ln2_g, ln2_b])[:, None, :])  # (6,1,H)
        wi.append(nrm(next(keys), (H, I)))
        bi.append(jnp.zeros((1, I), jnp.float32))
        wo2.append(nrm(next(keys), (I, H)))

    misc = jnp.stack([jnp.ones((H,), jnp.float32),    # embedding LN gamma
                      jnp.zeros((H,), jnp.float32),   # embedding LN beta
                      jnp.zeros((H,), jnp.float32),   # pooler bias
                      ])[:, None, :]                  # (3, 1, H)

    return {
        "word_emb": nrm(next(keys), (V, H)),
        "pos_emb": nrm(next(keys), (P, H)),
        "type_emb": nrm(next(keys), (TV, H)),
        "misc": misc,
        "wqkv": jnp.stack(wqkv).astype(bf16),         # (L, NG, H, DH)
        "bqkv": jnp.stack(bqkv),                      # (L, NG, 1, DH)
        "wo": jnp.stack(wo).astype(bf16),             # (L, NH, DH, H)
        "vecs": jnp.stack(vecs),                      # (L, 6, 1, H)
        "wi": jnp.stack(wi).astype(bf16),             # (L, H, I)
        "bi": jnp.stack(bi),                          # (L, 1, I)
        "wo2": jnp.stack(wo2).astype(bf16),           # (L, I, H)
        "pooler_w": nrm(next(keys), (H, H)).astype(bf16),
        "lin_w": nrm(next(keys), (2, H))[:, None, :], # (2,1,H): row0 maxpool, row1 cls
        "lin_b": jnp.zeros((1, 1), jnp.float32),
    }


# ---------------------------------------------------------------------------
# Forward
# ---------------------------------------------------------------------------
def bert_test_forward(p, passages, attn_mask, token_types):
    b, s = passages.shape
    # embedding gathers are plain-JAX glue (data-dependent gather); sum then feed kernel
    we = jnp.take(p["word_emb"], passages, axis=0)                  # (B,S,H)
    pe = p["pos_emb"][:s][None, :, :]                               # (1,S,H)
    te = jnp.take(p["type_emb"], token_types, axis=0)               # (B,S,H)
    emb = we + pe + te                                              # (B,S,H)

    addmask = ((1.0 - attn_mask.astype(jnp.float32)) * -10000.0)[:, None, :]  # (B,1,S)

    grid_spec = pltpu.PrefetchScalarGridSpec(
        num_scalar_prefetch=0,
        grid=(b,),
        in_specs=[
            pl.BlockSpec((1, s, H), lambda i: (i, 0, 0)),           # emb (per batch)
            pl.BlockSpec((1, 1, s), lambda i: (i, 0, 0)),           # additive mask
            pl.BlockSpec((3, 1, H), lambda i: (0, 0, 0)),           # misc (emb LN, pooler b)
            pl.BlockSpec((L, NG, H, DH), lambda i: (0, 0, 0, 0)),   # wqkv
            pl.BlockSpec((L, NG, 1, DH), lambda i: (0, 0, 0, 0)),   # bqkv
            pl.BlockSpec((L, NH, DH, H), lambda i: (0, 0, 0, 0)),   # wo (per head)
            pl.BlockSpec((L, 6, 1, H), lambda i: (0, 0, 0, 0)),     # packed bias/LN vecs
            pl.BlockSpec((L, H, I), lambda i: (0, 0, 0)),           # wi
            pl.BlockSpec((L, 1, I), lambda i: (0, 0, 0)),           # bi
            pl.BlockSpec((L, I, H), lambda i: (0, 0, 0)),           # wo2
            pl.BlockSpec((H, H), lambda i: (0, 0)),                 # pooler_w
            pl.BlockSpec((2, 1, H), lambda i: (0, 0, 0)),           # lin_w
            pl.BlockSpec((1, 1), lambda i: (0, 0)),                 # lin_b
        ],
        out_specs=pl.BlockSpec((1, 1, 1), lambda i: (i, 0, 0)),
    )

    score = pl.pallas_call(
        _fused_bert_kernel,
        out_shape=jax.ShapeDtypeStruct((b, 1, 1), jnp.float32),
        grid_spec=grid_spec,
        compiler_params=pltpu.CompilerParams(
            dimension_semantics=("parallel",)),      # shards batch across TCs on v7x
    )(emb, addmask, p["misc"],
      p["wqkv"], p["bqkv"], p["wo"], p["vecs"],
      p["wi"], p["bi"], p["wo2"],
      p["pooler_w"], p["lin_w"], p["lin_b"])
    return score.reshape(b, 1)


if __name__ == "__main__":
    key = jax.random.PRNGKey(0)
    pkey, ikey = jax.random.split(key, 2)
    params = init_params(pkey)

    passages = jax.random.randint(ikey, (B, S), 0, V, dtype=jnp.int32)
    passages_attn_masks = jnp.ones((B, S), dtype=jnp.int32).at[:, -2:].set(0)
    token_types = jnp.concatenate(
        [jnp.zeros((B, S // 2), jnp.int32), jnp.ones((B, S // 2), jnp.int32)], axis=1)

    score = bert_test_forward(params, passages, passages_attn_masks, token_types)
    score = jax.block_until_ready(score)
    assert score.shape == (B, 1) and score.dtype == jnp.float32
    print("KERNEL_OK")
</pallas_src>

<mosaic_0001>
module attributes {stable_mosaic.version = 11 : i64} {
  func.func @_fused_bert_kernel(%arg0: i32, %arg1: memref<1x8x32xf32, #tpu.memory_space<vmem>>, %arg2: memref<1x1x8xf32, #tpu.memory_space<vmem>>, %arg3: memref<3x1x32xf32, #tpu.memory_space<vmem>>, %arg4: memref<2x6x32x16xbf16, #tpu.memory_space<vmem>>, %arg5: memref<2x6x1x16xf32, #tpu.memory_space<vmem>>, %arg6: memref<2x2x16x32xbf16, #tpu.memory_space<vmem>>, %arg7: memref<2x6x1x32xf32, #tpu.memory_space<vmem>>, %arg8: memref<2x32x64xbf16, #tpu.memory_space<vmem>>, %arg9: memref<2x1x64xf32, #tpu.memory_space<vmem>>, %arg10: memref<2x64x32xbf16, #tpu.memory_space<vmem>>, %arg11: memref<32x32xbf16, #tpu.memory_space<vmem>>, %arg12: memref<2x1x32xf32, #tpu.memory_space<vmem>>, %arg13: memref<1x1xf32, #tpu.memory_space<vmem>>, %arg14: memref<1x1x1xf32, #tpu.memory_space<vmem>>) attributes {dimension_semantics = [#tpu.dimension_semantics<parallel>], iteration_bounds = array<i64: 2>, scalar_prefetch = 0 : i64, scratch_operands = 0 : i64, tpu.core_type = #tpu.core_type<tc>, window_params = [{transform_indices = @transform_0, window_bounds = array<i64: 1, 8, 32>}, {transform_indices = @transform_1, window_bounds = array<i64: 1, 1, 8>}, {pipeline_mode = #tpu.pipeline_mode<synchronous>, transform_indices = @transform_2, window_bounds = array<i64: 3, 1, 32>}, {pipeline_mode = #tpu.pipeline_mode<synchronous>, transform_indices = @transform_3, window_bounds = array<i64: 2, 6, 32, 16>}, {pipeline_mode = #tpu.pipeline_mode<synchronous>, transform_indices = @transform_4, window_bounds = array<i64: 2, 6, 1, 16>}, {pipeline_mode = #tpu.pipeline_mode<synchronous>, transform_indices = @transform_5, window_bounds = array<i64: 2, 2, 16, 32>}, {pipeline_mode = #tpu.pipeline_mode<synchronous>, transform_indices = @transform_6, window_bounds = array<i64: 2, 6, 1, 32>}, {pipeline_mode = #tpu.pipeline_mode<synchronous>, transform_indices = @transform_7, window_bounds = array<i64: 2, 32, 64>}, {pipeline_mode = #tpu.pipeline_mode<synchronous>, transform_indices = @transform_8, window_bounds = array<i64: 2, 1, 64>}, {pipeline_mode = #tpu.pipeline_mode<synchronous>, transform_indices = @transform_9, window_bounds = array<i64: 2, 64, 32>}, {pipeline_mode = #tpu.pipeline_mode<synchronous>, transform_indices = @transform_10, window_bounds = array<i64: 32, 32>}, {pipeline_mode = #tpu.pipeline_mode<synchronous>, transform_indices = @transform_11, window_bounds = array<i64: 2, 1, 32>}, {pipeline_mode = #tpu.pipeline_mode<synchronous>, transform_indices = @transform_12, window_bounds = array<i64: 1, 1>}, {transform_indices = @transform_13, window_bounds = array<i64: 1, 1, 1>}]} {
    %c0 = arith.constant 0 : index
    %c0_0 = arith.constant 0 : index
    %c0_1 = arith.constant 0 : index
    %0 = vector.load %arg1[%c0, %c0_0, %c0_1] : memref<1x8x32xf32, #tpu.memory_space<vmem>>, vector<1x8x32xf32>
    %1 = vector.shape_cast %0 : vector<1x8x32xf32> to vector<8x32xf32>
    %c0_2 = arith.constant 0 : index
    %c0_3 = arith.constant 0 : index
    %c0_4 = arith.constant 0 : index
    %2 = vector.load %arg3[%c0_2, %c0_3, %c0_4] : memref<3x1x32xf32, #tpu.memory_space<vmem>>, vector<1x1x32xf32>
    %3 = vector.shape_cast %2 : vector<1x1x32xf32> to vector<1x32xf32>
    %c1 = arith.constant 1 : index
    %c0_5 = arith.constant 0 : index
    %c0_6 = arith.constant 0 : index
    %4 = vector.load %arg3[%c1, %c0_5, %c0_6] : memref<3x1x32xf32, #tpu.memory_space<vmem>>, vector<1x1x32xf32>
    %5 = vector.shape_cast %4 : vector<1x1x32xf32> to vector<1x32xf32>
    %cst = arith.constant dense<0.000000e+00> : vector<8xf32>
    %6 = vector.multi_reduction <add>, %1, %cst [1] : vector<8x32xf32> to vector<8xf32>
    %7 = vector.shape_cast %6 : vector<8xf32> to vector<8x1xf32>
    %cst_7 = arith.constant 3.200000e+01 : f32
    %8 = vector.broadcast %cst_7 : f32 to vector<8x1xf32>
    %9 = arith.divf %7, %8 : vector<8x1xf32>
    %10 = vector.broadcast %9 : vector<8x1xf32> to vector<8x32xf32>
    %11 = arith.subf %1, %10 : vector<8x32xf32>
    %12 = arith.mulf %11, %11 : vector<8x32xf32>
    %cst_8 = arith.constant dense<0.000000e+00> : vector<8xf32>
    %13 = vector.multi_reduction <add>, %12, %cst_8 [1] : vector<8x32xf32> to vector<8xf32>
    %14 = vector.shape_cast %13 : vector<8xf32> to vector<8x1xf32>
    %cst_9 = arith.constant 3.200000e+01 : f32
    %15 = vector.broadcast %cst_9 : f32 to vector<8x1xf32>
    %16 = arith.divf %14, %15 : vector<8x1xf32>
    %17 = vector.broadcast %9 : vector<8x1xf32> to vector<8x32xf32>
    %18 = arith.subf %1, %17 : vector<8x32xf32>
    %cst_10 = arith.constant 9.99999996E-13 : f32
    %19 = vector.broadcast %cst_10 : f32 to vector<8x1xf32>
    %20 = arith.addf %16, %19 : vector<8x1xf32>
    %21 = math.rsqrt %20 : vector<8x1xf32>
    %22 = vector.broadcast %21 : vector<8x1xf32> to vector<8x32xf32>
    %23 = arith.mulf %18, %22 : vector<8x32xf32>
    %24 = vector.broadcast %3 : vector<1x32xf32> to vector<8x32xf32>
    %25 = arith.mulf %23, %24 : vector<8x32xf32>
    %26 = vector.broadcast %5 : vector<1x32xf32> to vector<8x32xf32>
    %27 = arith.addf %25, %26 : vector<8x32xf32>
    %c0_11 = arith.constant 0 : index
    %c0_12 = arith.constant 0 : index
    %c0_13 = arith.constant 0 : index
    %28 = vector.load %arg2[%c0_11, %c0_12, %c0_13] : memref<1x1x8xf32, #tpu.memory_space<vmem>>, vector<1x1x8xf32>
    %29 = vector.shape_cast %28 : vector<1x1x8xf32> to vector<1x8xf32>
    %30 = arith.truncf %27 : vector<8x32xf32> to vector<8x32xbf16>
    %31 = vector.shape_cast %30 : vector<8x32xbf16> to vector<1x8x32xbf16>
    %32 = vector.broadcast %31 : vector<1x8x32xbf16> to vector<6x8x32xbf16>
    %c0_14 = arith.constant 0 : index
    %c0_15 = arith.constant 0 : index
    %c0_16 = arith.constant 0 : index
    %c0_17 = arith.constant 0 : index
    %33 = vector.load %arg4[%c0_14, %c0_15, %c0_16, %c0_17] : memref<2x6x32x16xbf16, #tpu.memory_space<vmem>>, vector<1x6x32x16xbf16>
    %34 = vector.shape_cast %33 : vector<1x6x32x16xbf16> to vector<6x32x16xbf16>
    "tpu.trace_start"() <{level = 10 : i32, message = "gsh,ghd->gsd"}> : () -> ()
    %cst_18 = arith.constant dense<0.000000e+00> : vector<6x8x16xf32>
    %35 = tpu.matmul %32, %34, %cst_18 {dimension_numbers = #tpu.dot_dimension_numbers<[2], [1], [1], [2], [0, 0, 0, 1, 1, 2], [0], [0]>} : vector<6x8x32xbf16>, vector<6x32x16xbf16>, vector<6x8x16xf32> -> vector<6x8x16xf32>
    "tpu.trace_stop"() : () -> ()
    %c0_19 = arith.constant 0 : index
    %c0_20 = arith.constant 0 : index
    %c0_21 = arith.constant 0 : index
    %c0_22 = arith.constant 0 : index
    %36 = vector.load %arg5[%c0_19, %c0_20, %c0_21, %c0_22] : memref<2x6x1x16xf32, #tpu.memory_space<vmem>>, vector<1x6x1x16xf32>
    %37 = vector.shape_cast %36 : vector<1x6x1x16xf32> to vector<6x1x16xf32>
    %38 = vector.broadcast %37 : vector<6x1x16xf32> to vector<6x8x16xf32>
    %39 = arith.addf %35, %38 : vector<6x8x16xf32>
    %40 = vector.extract_strided_slice %39 {offsets = [0, 0, 0], sizes = [2, 8, 16], strides = [1, 1, 1]} : vector<6x8x16xf32> to vector<2x8x16xf32>
    %41 = arith.truncf %40 : vector<2x8x16xf32> to vector<2x8x16xbf16>
    %42 = vector.extract_strided_slice %39 {offsets = [2, 0, 0], sizes = [2, 8, 16], strides = [1, 1, 1]} : vector<6x8x16xf32> to vector<2x8x16xf32>
    %43 = arith.truncf %42 : vector<2x8x16xf32> to vector<2x8x16xbf16>
    %44 = vector.extract_strided_slice %39 {offsets = [4, 0, 0], sizes = [2, 8, 16], strides = [1, 1, 1]} : vector<6x8x16xf32> to vector<2x8x16xf32>
    %45 = arith.truncf %44 : vector<2x8x16xf32> to vector<2x8x16xbf16>
    "tpu.trace_start"() <{level = 10 : i32, message = "hqd,hkd->hqk"}> : () -> ()
    %cst_23 = arith.constant dense<0.000000e+00> : vector<2x8x8xf32>
    %46 = tpu.matmul %41, %43, %cst_23 {dimension_numbers = #tpu.dot_dimension_numbers<[2], [2], [1], [1], [0, 0, 0, 1, 1, 1], [0], [0]>} : vector<2x8x16xbf16>, vector<2x8x16xbf16>, vector<2x8x8xf32> -> vector<2x8x8xf32>
    "tpu.trace_stop"() : () -> ()
    %47 = vector.shape_cast %29 : vector<1x8xf32> to vector<1x1x8xf32>
    %48 = vector.broadcast %47 : vector<1x1x8xf32> to vector<2x8x8xf32>
    %49 = arith.addf %46, %48 : vector<2x8x8xf32>
    %cst_24 = arith.constant dense<0xFF800000> : vector<2x8xf32>
    %50 = vector.multi_reduction <maximumf>, %49, %cst_24 [2] : vector<2x8x8xf32> to vector<2x8xf32>
    %51 = vector.shape_cast %50 : vector<2x8xf32> to vector<2x8x1xf32>
    %52 = vector.broadcast %51 : vector<2x8x1xf32> to vector<2x8x8xf32>
    %53 = arith.subf %49, %52 : vector<2x8x8xf32>
    %54 = math.exp %53 : vector<2x8x8xf32>
    %cst_25 = arith.constant dense<0.000000e+00> : vector<2x8xf32>
    %55 = vector.multi_reduction <add>, %54, %cst_25 [2] : vector<2x8x8xf32> to vector<2x8xf32>
    %56 = vector.shape_cast %55 : vector<2x8xf32> to vector<2x8x1xf32>
    %57 = tpu.reciprocal %56 {approx = true} : vector<2x8x1xf32> -> vector<2x8x1xf32>
    %58 = vector.broadcast %57 : vector<2x8x1xf32> to vector<2x8x8xf32>
    %59 = arith.mulf %54, %58 : vector<2x8x8xf32>
    %60 = arith.truncf %59 : vector<2x8x8xf32> to vector<2x8x8xbf16>
    "tpu.trace_start"() <{level = 10 : i32, message = "hqk,hkd->hqd"}> : () -> ()
    %cst_26 = arith.constant dense<0.000000e+00> : vector<2x8x16xf32>
    %61 = tpu.matmul %60, %45, %cst_26 {dimension_numbers = #tpu.dot_dimension_numbers<[2], [1], [1], [2], [0, 0, 0, 1, 1, 2], [0], [0]>} : vector<2x8x8xbf16>, vector<2x8x16xbf16>, vector<2x8x16xf32> -> vector<2x8x16xf32>
    "tpu.trace_stop"() : () -> ()
    %c0_27 = arith.constant 0 : index
    %c0_28 = arith.constant 0 : index
    %c0_29 = arith.constant 0 : index
    %c0_30 = arith.constant 0 : index
    %62 = vector.load %arg7[%c0_27, %c0_28, %c0_29, %c0_30] : memref<2x6x1x32xf32, #tpu.memory_space<vmem>>, vector<1x1x1x32xf32>
    %63 = vector.shape_cast %62 : vector<1x1x1x32xf32> to vector<1x32xf32>
    %64 = vector.extract_strided_slice %61 {offsets = [0, 0, 0], sizes = [1, 8, 16], strides = [1, 1, 1]} : vector<2x8x16xf32> to vector<1x8x16xf32>
    %65 = vector.shape_cast %64 : vector<1x8x16xf32> to vector<8x16xf32>
    %66 = arith.truncf %65 : vector<8x16xf32> to vector<8x16xbf16>
    %c0_31 = arith.constant 0 : index
    %c0_32 = arith.constant 0 : index
    %c0_33 = arith.constant 0 : index
    %c0_34 = arith.constant 0 : index
    %67 = vector.load %arg6[%c0_31, %c0_32, %c0_33, %c0_34] : memref<2x2x16x32xbf16, #tpu.memory_space<vmem>>, vector<1x1x16x32xbf16>
    %68 = vector.shape_cast %67 : vector<1x1x16x32xbf16> to vector<16x32xbf16>
    %cst_35 = arith.constant dense<0.000000e+00> : vector<8x32xf32>
    %69 = tpu.matmul %66, %68, %cst_35 {dimension_numbers = #tpu.dot_dimension_numbers<[1], [0], [0], [1], [0, 0, 1, 1], [], []>} : vector<8x16xbf16>, vector<16x32xbf16>, vector<8x32xf32> -> vector<8x32xf32>
    %70 = vector.broadcast %63 : vector<1x32xf32> to vector<8x32xf32>
    %71 = arith.addf %70, %69 : vector<8x32xf32>
    %72 = vector.extract_strided_slice %61 {offsets = [1, 0, 0], sizes = [1, 8, 16], strides = [1, 1, 1]} : vector<2x8x16xf32> to vector<1x8x16xf32>
    %73 = vector.shape_cast %72 : vector<1x8x16xf32> to vector<8x16xf32>
    %74 = arith.truncf %73 : vector<8x16xf32> to vector<8x16xbf16>
    %c0_36 = arith.constant 0 : index
    %c1_37 = arith.constant 1 : index
    %c0_38 = arith.constant 0 : index
    %c0_39 = arith.constant 0 : index
    %75 = vector.load %arg6[%c0_36, %c1_37, %c0_38, %c0_39] : memref<2x2x16x32xbf16, #tpu.memory_space<vmem>>, vector<1x1x16x32xbf16>
    %76 = vector.shape_cast %75 : vector<1x1x16x32xbf16> to vector<16x32xbf16>
    %cst_40 = arith.constant dense<0.000000e+00> : vector<8x32xf32>
    %77 = tpu.matmul %74, %76, %cst_40 {dimension_numbers = #tpu.dot_dimension_numbers<[1], [0], [0], [1], [0, 0, 1, 1], [], []>} : vector<8x16xbf16>, vector<16x32xbf16>, vector<8x32xf32> -> vector<8x32xf32>
    %78 = arith.addf %71, %77 : vector<8x32xf32>
    %79 = arith.addf %78, %27 : vector<8x32xf32>
    %c0_41 = arith.constant 0 : index
    %c1_42 = arith.constant 1 : index
    %c0_43 = arith.constant 0 : index
    %c0_44 = arith.constant 0 : index
    %80 = vector.load %arg7[%c0_41, %c1_42, %c0_43, %c0_44] : memref<2x6x1x32xf32, #tpu.memory_space<vmem>>, vector<1x1x1x32xf32>
    %81 = vector.shape_cast %80 : vector<1x1x1x32xf32> to vector<1x32xf32>
    %c0_45 = arith.constant 0 : index
    %c2 = arith.constant 2 : index
    %c0_46 = arith.constant 0 : index
    %c0_47 = arith.constant 0 : index
    %82 = vector.load %arg7[%c0_45, %c2, %c0_46, %c0_47] : memref<2x6x1x32xf32, #tpu.memory_space<vmem>>, vector<1x1x1x32xf32>
    %83 = vector.shape_cast %82 : vector<1x1x1x32xf32> to vector<1x32xf32>
    %cst_48 = arith.constant dense<0.000000e+00> : vector<8xf32>
    %84 = vector.multi_reduction <add>, %79, %cst_48 [1] : vector<8x32xf32> to vector<8xf32>
    %85 = vector.shape_cast %84 : vector<8xf32> to vector<8x1xf32>
    %cst_49 = arith.constant 3.200000e+01 : f32
    %86 = vector.broadcast %cst_49 : f32 to vector<8x1xf32>
    %87 = arith.divf %85, %86 : vector<8x1xf32>
    %88 = vector.broadcast %87 : vector<8x1xf32> to vector<8x32xf32>
    %89 = arith.subf %79, %88 : vector<8x32xf32>
    %90 = arith.mulf %89, %89 : vector<8x32xf32>
    %cst_50 = arith.constant dense<0.000000e+00> : vector<8xf32>
    %91 = vector.multi_reduction <add>, %90, %cst_50 [1] : vector<8x32xf32> to vector<8xf32>
    %92 = vector.shape_cast %91 : vector<8xf32> to vector<8x1xf32>
    %cst_51 = arith.constant 3.200000e+01 : f32
    %93 = vector.broadcast %cst_51 : f32 to vector<8x1xf32>
    %94 = arith.divf %92, %93 : vector<8x1xf32>
    %95 = vector.broadcast %87 : vector<8x1xf32> to vector<8x32xf32>
    %96 = arith.subf %79, %95 : vector<8x32xf32>
    %cst_52 = arith.constant 9.99999996E-13 : f32
    %97 = vector.broadcast %cst_52 : f32 to vector<8x1xf32>
    %98 = arith.addf %94, %97 : vector<8x1xf32>
    %99 = math.rsqrt %98 : vector<8x1xf32>
    %100 = vector.broadcast %99 : vector<8x1xf32> to vector<8x32xf32>
    %101 = arith.mulf %96, %100 : vector<8x32xf32>
    %102 = vector.broadcast %81 : vector<1x32xf32> to vector<8x32xf32>
    %103 = arith.mulf %101, %102 : vector<8x32xf32>
    %104 = vector.broadcast %83 : vector<1x32xf32> to vector<8x32xf32>
    %105 = arith.addf %103, %104 : vector<8x32xf32>
    %106 = arith.truncf %105 : vector<8x32xf32> to vector<8x32xbf16>
    %c0_53 = arith.constant 0 : index
    %c0_54 = arith.constant 0 : index
    %c0_55 = arith.constant 0 : index
    %107 = vector.load %arg8[%c0_53, %c0_54, %c0_55] : memref<2x32x64xbf16, #tpu.memory_space<vmem>>, vector<1x32x64xbf16>
    %108 = vector.shape_cast %107 : vector<1x32x64xbf16> to vector<32x64xbf16>
    %cst_56 = arith.constant dense<0.000000e+00> : vector<8x64xf32>
    %109 = tpu.matmul %106, %108, %cst_56 {dimension_numbers = #tpu.dot_dimension_numbers<[1], [0], [0], [1], [0, 0, 1, 1], [], []>} : vector<8x32xbf16>, vector<32x64xbf16>, vector<8x64xf32> -> vector<8x64xf32>
    %c0_57 = arith.constant 0 : index
    %c0_58 = arith.constant 0 : index
    %c0_59 = arith.constant 0 : index
    %110 = vector.load %arg9[%c0_57, %c0_58, %c0_59] : memref<2x1x64xf32, #tpu.memory_space<vmem>>, vector<1x1x64xf32>
    %111 = vector.shape_cast %110 : vector<1x1x64xf32> to vector<1x64xf32>
    %112 = vector.broadcast %111 : vector<1x64xf32> to vector<8x64xf32>
    %113 = arith.addf %109, %112 : vector<8x64xf32>
    %114 = arith.mulf %113, %113 : vector<8x64xf32>
    %115 = arith.mulf %113, %114 : vector<8x64xf32>
    %cst_60 = arith.constant 4.471500e-02 : f32
    %116 = vector.broadcast %cst_60 : f32 to vector<8x64xf32>
    %117 = arith.mulf %116, %115 : vector<8x64xf32>
    %118 = arith.addf %113, %117 : vector<8x64xf32>
    %cst_61 = arith.constant 0.797884583 : f32
    %119 = vector.broadcast %cst_61 : f32 to vector<8x64xf32>
    %120 = arith.mulf %119, %118 : vector<8x64xf32>
    %121 = math.tanh %120 : vector<8x64xf32>
    %cst_62 = arith.constant 1.000000e+00 : f32
    %122 = vector.broadcast %cst_62 : f32 to vector<8x64xf32>
    %123 = arith.addf %122, %121 : vector<8x64xf32>
    %cst_63 = arith.constant 5.000000e-01 : f32
    %124 = vector.broadcast %cst_63 : f32 to vector<8x64xf32>
    %125 = arith.mulf %124, %123 : vector<8x64xf32>
    %126 = arith.mulf %113, %125 : vector<8x64xf32>
    %127 = arith.truncf %126 : vector<8x64xf32> to vector<8x64xbf16>
    %c0_64 = arith.constant 0 : index
    %c0_65 = arith.constant 0 : index
    %c0_66 = arith.constant 0 : index
    %128 = vector.load %arg10[%c0_64, %c0_65, %c0_66] : memref<2x64x32xbf16, #tpu.memory_space<vmem>>, vector<1x64x32xbf16>
    %129 = vector.shape_cast %128 : vector<1x64x32xbf16> to vector<64x32xbf16>
    %cst_67 = arith.constant dense<0.000000e+00> : vector<8x32xf32>
    %130 = tpu.matmul %127, %129, %cst_67 {dimension_numbers = #tpu.dot_dimension_numbers<[1], [0], [0], [1], [0, 0, 1, 1], [], []>} : vector<8x64xbf16>, vector<64x32xbf16>, vector<8x32xf32> -> vector<8x32xf32>
    %c0_68 = arith.constant 0 : index
    %c3 = arith.constant 3 : index
    %c0_69 = arith.constant 0 : index
    %c0_70 = arith.constant 0 : index
    %131 = vector.load %arg7[%c0_68, %c3, %c0_69, %c0_70] : memref<2x6x1x32xf32, #tpu.memory_space<vmem>>, vector<1x1x1x32xf32>
    %132 = vector.shape_cast %131 : vector<1x1x1x32xf32> to vector<1x32xf32>
    %133 = vector.broadcast %132 : vector<1x32xf32> to vector<8x32xf32>
    %134 = arith.addf %130, %133 : vector<8x32xf32>
    %135 = arith.addf %134, %105 : vector<8x32xf32>
    %c0_71 = arith.constant 0 : index
    %c4 = arith.constant 4 : index
    %c0_72 = arith.constant 0 : index
    %c0_73 = arith.constant 0 : index
    %136 = vector.load %arg7[%c0_71, %c4, %c0_72, %c0_73] : memref<2x6x1x32xf32, #tpu.memory_space<vmem>>, vector<1x1x1x32xf32>
    %137 = vector.shape_cast %136 : vector<1x1x1x32xf32> to vector<1x32xf32>
    %c0_74 = arith.constant 0 : index
    %c5 = arith.constant 5 : index
    %c0_75 = arith.constant 0 : index
    %c0_76 = arith.constant 0 : index
    %138 = vector.load %arg7[%c0_74, %c5, %c0_75, %c0_76] : memref<2x6x1x32xf32, #tpu.memory_space<vmem>>, vector<1x1x1x32xf32>
    %139 = vector.shape_cast %138 : vector<1x1x1x32xf32> to vector<1x32xf32>
    %cst_77 = arith.constant dense<0.000000e+00> : vector<8xf32>
    %140 = vector.multi_reduction <add>, %135, %cst_77 [1] : vector<8x32xf32> to vector<8xf32>
    %141 = vector.shape_cast %140 : vector<8xf32> to vector<8x1xf32>
    %cst_78 = arith.constant 3.200000e+01 : f32
    %142 = vector.broadcast %cst_78 : f32 to vector<8x1xf32>
    %143 = arith.divf %141, %142 : vector<8x1xf32>
    %144 = vector.broadcast %143 : vector<8x1xf32> to vector<8x32xf32>
    %145 = arith.subf %135, %144 : vector<8x32xf32>
    %146 = arith.mulf %145, %145 : vector<8x32xf32>
    %cst_79 = arith.constant dense<0.000000e+00> : vector<8xf32>
    %147 = vector.multi_reduction <add>, %146, %cst_79 [1] : vector<8x32xf32> to vector<8xf32>
    %148 = vector.shape_cast %147 : vector<8xf32> to vector<8x1xf32>
    %cst_80 = arith.constant 3.200000e+01 : f32
    %149 = vector.broadcast %cst_80 : f32 to vector<8x1xf32>
    %150 = arith.divf %148, %149 : vector<8x1xf32>
    %151 = vector.broadcast %143 : vector<8x1xf32> to vector<8x32xf32>
    %152 = arith.subf %135, %151 : vector<8x32xf32>
    %cst_81 = arith.constant 9.99999996E-13 : f32
    %153 = vector.broadcast %cst_81 : f32 to vector<8x1xf32>
    %154 = arith.addf %150, %153 : vector<8x1xf32>
    %155 = math.rsqrt %154 : vector<8x1xf32>
    %156 = vector.broadcast %155 : vector<8x1xf32> to vector<8x32xf32>
    %157 = arith.mulf %152, %156 : vector<8x32xf32>
    %158 = vector.broadcast %137 : vector<1x32xf32> to vector<8x32xf32>
    %159 = arith.mulf %157, %158 : vector<8x32xf32>
    %160 = vector.broadcast %139 : vector<1x32xf32> to vector<8x32xf32>
    %161 = arith.addf %159, %160 : vector<8x32xf32>
    %162 = arith.truncf %161 : vector<8x32xf32> to vector<8x32xbf16>
    %163 = vector.shape_cast %162 : vector<8x32xbf16> to vector<1x8x32xbf16>
    %164 = vector.broadcast %163 : vector<1x8x32xbf16> to vector<6x8x32xbf16>
    %c1_82 = arith.constant 1 : index
    %c0_83 = arith.constant 0 : index
    %c0_84 = arith.constant 0 : index
    %c0_85 = arith.constant 0 : index
    %165 = vector.load %arg4[%c1_82, %c0_83, %c0_84, %c0_85] : memref<2x6x32x16xbf16, #tpu.memory_space<vmem>>, vector<1x6x32x16xbf16>
    %166 = vector.shape_cast %165 : vector<1x6x32x16xbf16> to vector<6x32x16xbf16>
    "tpu.trace_start"() <{level = 10 : i32, message = "gsh,ghd->gsd"}> : () -> ()
    %cst_86 = arith.constant dense<0.000000e+00> : vector<6x8x16xf32>
    %167 = tpu.matmul %164, %166, %cst_86 {dimension_numbers = #tpu.dot_dimension_numbers<[2], [1], [1], [2], [0, 0, 0, 1, 1, 2], [0], [0]>} : vector<6x8x32xbf16>, vector<6x32x16xbf16>, vector<6x8x16xf32> -> vector<6x8x16xf32>
    "tpu.trace_stop"() : () -> ()
    %c1_87 = arith.constant 1 : index
    %c0_88 = arith.constant 0 : index
    %c0_89 = arith.constant 0 : index
    %c0_90 = arith.constant 0 : index
    %168 = vector.load %arg5[%c1_87, %c0_88, %c0_89, %c0_90] : memref<2x6x1x16xf32, #tpu.memory_space<vmem>>, vector<1x6x1x16xf32>
    %169 = vector.shape_cast %168 : vector<1x6x1x16xf32> to vector<6x1x16xf32>
    %170 = vector.broadcast %169 : vector<6x1x16xf32> to vector<6x8x16xf32>
    %171 = arith.addf %167, %170 : vector<6x8x16xf32>
    %172 = vector.extract_strided_slice %171 {offsets = [0, 0, 0], sizes = [2, 8, 16], strides = [1, 1, 1]} : vector<6x8x16xf32> to vector<2x8x16xf32>
    %173 = arith.truncf %172 : vector<2x8x16xf32> to vector<2x8x16xbf16>
    %174 = vector.extract_strided_slice %171 {offsets = [2, 0, 0], sizes = [2, 8, 16], strides = [1, 1, 1]} : vector<6x8x16xf32> to vector<2x8x16xf32>
    %175 = arith.truncf %174 : vector<2x8x16xf32> to vector<2x8x16xbf16>
    %176 = vector.extract_strided_slice %171 {offsets = [4, 0, 0], sizes = [2, 8, 16], strides = [1, 1, 1]} : vector<6x8x16xf32> to vector<2x8x16xf32>
    %177 = arith.truncf %176 : vector<2x8x16xf32> to vector<2x8x16xbf16>
    "tpu.trace_start"() <{level = 10 : i32, message = "hqd,hkd->hqk"}> : () -> ()
    %cst_91 = arith.constant dense<0.000000e+00> : vector<2x8x8xf32>
    %178 = tpu.matmul %173, %175, %cst_91 {dimension_numbers = #tpu.dot_dimension_numbers<[2], [2], [1], [1], [0, 0, 0, 1, 1, 1], [0], [0]>} : vector<2x8x16xbf16>, vector<2x8x16xbf16>, vector<2x8x8xf32> -> vector<2x8x8xf32>
    "tpu.trace_stop"() : () -> ()
    %179 = vector.shape_cast %29 : vector<1x8xf32> to vector<1x1x8xf32>
    %180 = vector.broadcast %179 : vector<1x1x8xf32> to vector<2x8x8xf32>
    %181 = arith.addf %178, %180 : vector<2x8x8xf32>
    %cst_92 = arith.constant dense<0xFF800000> : vector<2x8xf32>
    %182 = vector.multi_reduction <maximumf>, %181, %cst_92 [2] : vector<2x8x8xf32> to vector<2x8xf32>
    %183 = vector.shape_cast %182 : vector<2x8xf32> to vector<2x8x1xf32>
    %184 = vector.broadcast %183 : vector<2x8x1xf32> to vector<2x8x8xf32>
    %185 = arith.subf %181, %184 : vector<2x8x8xf32>
    %186 = math.exp %185 : vector<2x8x8xf32>
    %cst_93 = arith.constant dense<0.000000e+00> : vector<2x8xf32>
    %187 = vector.multi_reduction <add>, %186, %cst_93 [2] : vector<2x8x8xf32> to vector<2x8xf32>
    %188 = vector.shape_cast %187 : vector<2x8xf32> to vector<2x8x1xf32>
    %189 = tpu.reciprocal %188 {approx = true} : vector<2x8x1xf32> -> vector<2x8x1xf32>
    %190 = vector.broadcast %189 : vector<2x8x1xf32> to vector<2x8x8xf32>
    %191 = arith.mulf %186, %190 : vector<2x8x8xf32>
    %192 = arith.truncf %191 : vector<2x8x8xf32> to vector<2x8x8xbf16>
    "tpu.trace_start"() <{level = 10 : i32, message = "hqk,hkd->hqd"}> : () -> ()
    %cst_94 = arith.constant dense<0.000000e+00> : vector<2x8x16xf32>
    %193 = tpu.matmul %192, %177, %cst_94 {dimension_numbers = #tpu.dot_dimension_numbers<[2], [1], [1], [2], [0, 0, 0, 1, 1, 2], [0], [0]>} : vector<2x8x8xbf16>, vector<2x8x16xbf16>, vector<2x8x16xf32> -> vector<2x8x16xf32>
    "tpu.trace_stop"() : () -> ()
    %c1_95 = arith.constant 1 : index
    %c0_96 = arith.constant 0 : index
    %c0_97 = arith.constant 0 : index
    %c0_98 = arith.constant 0 : index
    %194 = vector.load %arg7[%c1_95, %c0_96, %c0_97, %c0_98] : memref<2x6x1x32xf32, #tpu.memory_space<vmem>>, vector<1x1x1x32xf32>
    %195 = vector.shape_cast %194 : vector<1x1x1x32xf32> to vector<1x32xf32>
    %196 = vector.extract_strided_slice %193 {offsets = [0, 0, 0], sizes = [1, 8, 16], strides = [1, 1, 1]} : vector<2x8x16xf32> to vector<1x8x16xf32>
    %197 = vector.shape_cast %196 : vector<1x8x16xf32> to vector<8x16xf32>
    %198 = arith.truncf %197 : vector<8x16xf32> to vector<8x16xbf16>
    %c1_99 = arith.constant 1 : index
    %c0_100 = arith.constant 0 : index
    %c0_101 = arith.constant 0 : index
    %c0_102 = arith.constant 0 : index
    %199 = vector.load %arg6[%c1_99, %c0_100, %c0_101, %c0_102] : memref<2x2x16x32xbf16, #tpu.memory_space<vmem>>, vector<1x1x16x32xbf16>
    %200 = vector.shape_cast %199 : vector<1x1x16x32xbf16> to vector<16x32xbf16>
    %cst_103 = arith.constant dense<0.000000e+00> : vector<8x32xf32>
    %201 = tpu.matmul %198, %200, %cst_103 {dimension_numbers = #tpu.dot_dimension_numbers<[1], [0], [0], [1], [0, 0, 1, 1], [], []>} : vector<8x16xbf16>, vector<16x32xbf16>, vector<8x32xf32> -> vector<8x32xf32>
    %202 = vector.broadcast %195 : vector<1x32xf32> to vector<8x32xf32>
    %203 = arith.addf %202, %201 : vector<8x32xf32>
    %204 = vector.extract_strided_slice %193 {offsets = [1, 0, 0], sizes = [1, 8, 16], strides = [1, 1, 1]} : vector<2x8x16xf32> to vector<1x8x16xf32>
    %205 = vector.shape_cast %204 : vector<1x8x16xf32> to vector<8x16xf32>
    %206 = arith.truncf %205 : vector<8x16xf32> to vector<8x16xbf16>
    %c1_104 = arith.constant 1 : index
    %c1_105 = arith.constant 1 : index
    %c0_106 = arith.constant 0 : index
    %c0_107 = arith.constant 0 : index
    %207 = vector.load %arg6[%c1_104, %c1_105, %c0_106, %c0_107] : memref<2x2x16x32xbf16, #tpu.memory_space<vmem>>, vector<1x1x16x32xbf16>
    %208 = vector.shape_cast %207 : vector<1x1x16x32xbf16> to vector<16x32xbf16>
    %cst_108 = arith.constant dense<0.000000e+00> : vector<8x32xf32>
    %209 = tpu.matmul %206, %208, %cst_108 {dimension_numbers = #tpu.dot_dimension_numbers<[1], [0], [0], [1], [0, 0, 1, 1], [], []>} : vector<8x16xbf16>, vector<16x32xbf16>, vector<8x32xf32> -> vector<8x32xf32>
    %210 = arith.addf %203, %209 : vector<8x32xf32>
    %211 = arith.addf %210, %161 : vector<8x32xf32>
    %c1_109 = arith.constant 1 : index
    %c1_110 = arith.constant 1 : index
    %c0_111 = arith.constant 0 : index
    %c0_112 = arith.constant 0 : index
    %212 = vector.load %arg7[%c1_109, %c1_110, %c0_111, %c0_112] : memref<2x6x1x32xf32, #tpu.memory_space<vmem>>, vector<1x1x1x32xf32>
    %213 = vector.shape_cast %212 : vector<1x1x1x32xf32> to vector<1x32xf32>
    %c1_113 = arith.constant 1 : index
    %c2_114 = arith.constant 2 : index
    %c0_115 = arith.constant 0 : index
    %c0_116 = arith.constant 0 : index
    %214 = vector.load %arg7[%c1_113, %c2_114, %c0_115, %c0_116] : memref<2x6x1x32xf32, #tpu.memory_space<vmem>>, vector<1x1x1x32xf32>
    %215 = vector.shape_cast %214 : vector<1x1x1x32xf32> to vector<1x32xf32>
    %cst_117 = arith.constant dense<0.000000e+00> : vector<8xf32>
    %216 = vector.multi_reduction <add>, %211, %cst_117 [1] : vector<8x32xf32> to vector<8xf32>
    %217 = vector.shape_cast %216 : vector<8xf32> to vector<8x1xf32>
    %cst_118 = arith.constant 3.200000e+01 : f32
    %218 = vector.broadcast %cst_118 : f32 to vector<8x1xf32>
    %219 = arith.divf %217, %218 : vector<8x1xf32>
    %220 = vector.broadcast %219 : vector<8x1xf32> to vector<8x32xf32>
    %221 = arith.subf %211, %220 : vector<8x32xf32>
    %222 = arith.mulf %221, %221 : vector<8x32xf32>
    %cst_119 = arith.constant dense<0.000000e+00> : vector<8xf32>
    %223 = vector.multi_reduction <add>, %222, %cst_119 [1] : vector<8x32xf32> to vector<8xf32>
    %224 = vector.shape_cast %223 : vector<8xf32> to vector<8x1xf32>
    %cst_120 = arith.constant 3.200000e+01 : f32
    %225 = vector.broadcast %cst_120 : f32 to vector<8x1xf32>
    %226 = arith.divf %224, %225 : vector<8x1xf32>
    %227 = vector.broadcast %219 : vector<8x1xf32> to vector<8x32xf32>
    %228 = arith.subf %211, %227 : vector<8x32xf32>
    %cst_121 = arith.constant 9.99999996E-13 : f32
    %229 = vector.broadcast %cst_121 : f32 to vector<8x1xf32>
    %230 = arith.addf %226, %229 : vector<8x1xf32>
    %231 = math.rsqrt %230 : vector<8x1xf32>
    %232 = vector.broadcast %231 : vector<8x1xf32> to vector<8x32xf32>
    %233 = arith.mulf %228, %232 : vector<8x32xf32>
    %234 = vector.broadcast %213 : vector<1x32xf32> to vector<8x32xf32>
    %235 = arith.mulf %233, %234 : vector<8x32xf32>
    %236 = vector.broadcast %215 : vector<1x32xf32> to vector<8x32xf32>
    %237 = arith.addf %235, %236 : vector<8x32xf32>
    %238 = arith.truncf %237 : vector<8x32xf32> to vector<8x32xbf16>
    %c1_122 = arith.constant 1 : index
    %c0_123 = arith.constant 0 : index
    %c0_124 = arith.constant 0 : index
    %239 = vector.load %arg8[%c1_122, %c0_123, %c0_124] : memref<2x32x64xbf16, #tpu.memory_space<vmem>>, vector<1x32x64xbf16>
    %240 = vector.shape_cast %239 : vector<1x32x64xbf16> to vector<32x64xbf16>
    %cst_125 = arith.constant dense<0.000000e+00> : vector<8x64xf32>
    %241 = tpu.matmul %238, %240, %cst_125 {dimension_numbers = #tpu.dot_dimension_numbers<[1], [0], [0], [1], [0, 0, 1, 1], [], []>} : vector<8x32xbf16>, vector<32x64xbf16>, vector<8x64xf32> -> vector<8x64xf32>
    %c1_126 = arith.constant 1 : index
    %c0_127 = arith.constant 0 : index
    %c0_128 = arith.constant 0 : index
    %242 = vector.load %arg9[%c1_126, %c0_127, %c0_128] : memref<2x1x64xf32, #tpu.memory_space<vmem>>, vector<1x1x64xf32>
    %243 = vector.shape_cast %242 : vector<1x1x64xf32> to vector<1x64xf32>
    %244 = vector.broadcast %243 : vector<1x64xf32> to vector<8x64xf32>
    %245 = arith.addf %241, %244 : vector<8x64xf32>
    %246 = arith.mulf %245, %245 : vector<8x64xf32>
    %247 = arith.mulf %245, %246 : vector<8x64xf32>
    %cst_129 = arith.constant 4.471500e-02 : f32
    %248 = vector.broadcast %cst_129 : f32 to vector<8x64xf32>
    %249 = arith.mulf %248, %247 : vector<8x64xf32>
    %250 = arith.addf %245, %249 : vector<8x64xf32>
    %cst_130 = arith.constant 0.797884583 : f32
    %251 = vector.broadcast %cst_130 : f32 to vector<8x64xf32>
    %252 = arith.mulf %251, %250 : vector<8x64xf32>
    %253 = math.tanh %252 : vector<8x64xf32>
    %cst_131 = arith.constant 1.000000e+00 : f32
    %254 = vector.broadcast %cst_131 : f32 to vector<8x64xf32>
    %255 = arith.addf %254, %253 : vector<8x64xf32>
    %cst_132 = arith.constant 5.000000e-01 : f32
    %256 = vector.broadcast %cst_132 : f32 to vector<8x64xf32>
    %257 = arith.mulf %256, %255 : vector<8x64xf32>
    %258 = arith.mulf %245, %257 : vector<8x64xf32>
    %259 = arith.truncf %258 : vector<8x64xf32> to vector<8x64xbf16>
    %c1_133 = arith.constant 1 : index
    %c0_134 = arith.constant 0 : index
    %c0_135 = arith.constant 0 : index
    %260 = vector.load %arg10[%c1_133, %c0_134, %c0_135] : memref<2x64x32xbf16, #tpu.memory_space<vmem>>, vector<1x64x32xbf16>
    %261 = vector.shape_cast %260 : vector<1x64x32xbf16> to vector<64x32xbf16>
    %cst_136 = arith.constant dense<0.000000e+00> : vector<8x32xf32>
    %262 = tpu.matmul %259, %261, %cst_136 {dimension_numbers = #tpu.dot_dimension_numbers<[1], [0], [0], [1], [0, 0, 1, 1], [], []>} : vector<8x64xbf16>, vector<64x32xbf16>, vector<8x32xf32> -> vector<8x32xf32>
    %c1_137 = arith.constant 1 : index
    %c3_138 = arith.constant 3 : index
    %c0_139 = arith.constant 0 : index
    %c0_140 = arith.constant 0 : index
    %263 = vector.load %arg7[%c1_137, %c3_138, %c0_139, %c0_140] : memref<2x6x1x32xf32, #tpu.memory_space<vmem>>, vector<1x1x1x32xf32>
    %264 = vector.shape_cast %263 : vector<1x1x1x32xf32> to vector<1x32xf32>
    %265 = vector.broadcast %264 : vector<1x32xf32> to vector<8x32xf32>
    %266 = arith.addf %262, %265 : vector<8x32xf32>
    %267 = arith.addf %266, %237 : vector<8x32xf32>
    %c1_141 = arith.constant 1 : index
    %c4_142 = arith.constant 4 : index
    %c0_143 = arith.constant 0 : index
    %c0_144 = arith.constant 0 : index
    %268 = vector.load %arg7[%c1_141, %c4_142, %c0_143, %c0_144] : memref<2x6x1x32xf32, #tpu.memory_space<vmem>>, vector<1x1x1x32xf32>
    %269 = vector.shape_cast %268 : vector<1x1x1x32xf32> to vector<1x32xf32>
    %c1_145 = arith.constant 1 : index
    %c5_146 = arith.constant 5 : index
    %c0_147 = arith.constant 0 : index
    %c0_148 = arith.constant 0 : index
    %270 = vector.load %arg7[%c1_145, %c5_146, %c0_147, %c0_148] : memref<2x6x1x32xf32, #tpu.memory_space<vmem>>, vector<1x1x1x32xf32>
    %271 = vector.shape_cast %270 : vector<1x1x1x32xf32> to vector<1x32xf32>
    %cst_149 = arith.constant dense<0.000000e+00> : vector<8xf32>
    %272 = vector.multi_reduction <add>, %267, %cst_149 [1] : vector<8x32xf32> to vector<8xf32>
    %273 = vector.shape_cast %272 : vector<8xf32> to vector<8x1xf32>
    %cst_150 = arith.constant 3.200000e+01 : f32
    %274 = vector.broadcast %cst_150 : f32 to vector<8x1xf32>
    %275 = arith.divf %273, %274 : vector<8x1xf32>
    %276 = vector.broadcast %275 : vector<8x1xf32> to vector<8x32xf32>
    %277 = arith.subf %267, %276 : vector<8x32xf32>
    %278 = arith.mulf %277, %277 : vector<8x32xf32>
    %cst_151 = arith.constant dense<0.000000e+00> : vector<8xf32>
    %279 = vector.multi_reduction <add>, %278, %cst_151 [1] : vector<8x32xf32> to vector<8xf32>
    %280 = vector.shape_cast %279 : vector<8xf32> to vector<8x1xf32>
    %cst_152 = arith.constant 3.200000e+01 : f32
    %281 = vector.broadcast %cst_152 : f32 to vector<8x1xf32>
    %282 = arith.divf %280, %281 : vector<8x1xf32>
    %283 = vector.broadcast %275 : vector<8x1xf32> to vector<8x32xf32>
    %284 = arith.subf %267, %283 : vector<8x32xf32>
    %cst_153 = arith.constant 9.99999996E-13 : f32
    %285 = vector.broadcast %cst_153 : f32 to vector<8x1xf32>
    %286 = arith.addf %282, %285 : vector<8x1xf32>
    %287 = math.rsqrt %286 : vector<8x1xf32>
    %288 = vector.broadcast %287 : vector<8x1xf32> to vector<8x32xf32>
    %289 = arith.mulf %284, %288 : vector<8x32xf32>
    %290 = vector.broadcast %269 : vector<1x32xf32> to vector<8x32xf32>
    %291 = arith.mulf %289, %290 : vector<8x32xf32>
    %292 = vector.broadcast %271 : vector<1x32xf32> to vector<8x32xf32>
    %293 = arith.addf %291, %292 : vector<8x32xf32>
    %cst_154 = arith.constant dense<0xFF800000> : vector<32xf32>
    %294 = vector.multi_reduction <maximumf>, %293, %cst_154 [0] : vector<8x32xf32> to vector<32xf32>
    %295 = vector.shape_cast %294 : vector<32xf32> to vector<1x32xf32>
    %296 = vector.extract_strided_slice %293 {offsets = [0, 0], sizes = [1, 32], strides = [1, 1]} : vector<8x32xf32> to vector<1x32xf32>
    %297 = arith.truncf %296 : vector<1x32xf32> to vector<1x32xbf16>
    %c0_155 = arith.constant 0 : index
    %c0_156 = arith.constant 0 : index
    %298 = vector.load %arg11[%c0_155, %c0_156] : memref<32x32xbf16, #tpu.memory_space<vmem>>, vector<32x32xbf16>
    %cst_157 = arith.constant dense<0.000000e+00> : vector<1x32xf32>
    %299 = tpu.matmul %297, %298, %cst_157 {dimension_numbers = #tpu.dot_dimension_numbers<[1], [0], [0], [1], [0, 0, 1, 1], [], []>} : vector<1x32xbf16>, vector<32x32xbf16>, vector<1x32xf32> -> vector<1x32xf32>
    %c2_158 = arith.constant 2 : index
    %c0_159 = arith.constant 0 : index
    %c0_160 = arith.constant 0 : index
    %300 = vector.load %arg3[%c2_158, %c0_159, %c0_160] : memref<3x1x32xf32, #tpu.memory_space<vmem>>, vector<1x1x32xf32>
    %301 = vector.shape_cast %300 : vector<1x1x32xf32> to vector<1x32xf32>
    %302 = arith.addf %299, %301 : vector<1x32xf32>
    %303 = math.tanh %302 : vector<1x32xf32>
    %c0_161 = arith.constant 0 : index
    %c0_162 = arith.constant 0 : index
    %c0_163 = arith.constant 0 : index
    %304 = vector.load %arg12[%c0_161, %c0_162, %c0_163] : memref<2x1x32xf32, #tpu.memory_space<vmem>>, vector<1x1x32xf32>
    %305 = vector.shape_cast %304 : vector<1x1x32xf32> to vector<1x32xf32>
    %306 = arith.mulf %295, %305 : vector<1x32xf32>
    %cst_164 = arith.constant dense<0.000000e+00> : vector<1xf32>
    %307 = vector.multi_reduction <add>, %306, %cst_164 [1] : vector<1x32xf32> to vector<1xf32>
    %308 = vector.shape_cast %307 : vector<1xf32> to vector<1x1xf32>
    %c1_165 = arith.constant 1 : index
    %c0_166 = arith.constant 0 : index
    %c0_167 = arith.constant 0 : index
    %309 = vector.load %arg12[%c1_165, %c0_166, %c0_167] : memref<2x1x32xf32, #tpu.memory_space<vmem>>, vector<1x1x32xf32>
    %310 = vector.shape_cast %309 : vector<1x1x32xf32> to vector<1x32xf32>
    %311 = arith.mulf %303, %310 : vector<1x32xf32>
    %cst_168 = arith.constant dense<0.000000e+00> : vector<1xf32>
    %312 = vector.multi_reduction <add>, %311, %cst_168 [1] : vector<1x32xf32> to vector<1xf32>
    %313 = vector.shape_cast %312 : vector<1xf32> to vector<1x1xf32>
    %314 = arith.addf %308, %313 : vector<1x1xf32>
    %c0_169 = arith.constant 0 : index
    %c0_170 = arith.constant 0 : index
    %315 = vector.load %arg13[%c0_169, %c0_170] : memref<1x1xf32, #tpu.memory_space<vmem>>, vector<1x1xf32>
    %316 = arith.addf %314, %315 : vector<1x1xf32>
    %c0_171 = arith.constant 0 : index
    %c0_172 = arith.constant 0 : index
    %c0_173 = arith.constant 0 : index
    %317 = vector.load %arg14[%c0_171, %c0_172, %c0_173] : memref<1x1x1xf32, #tpu.memory_space<vmem>>, vector<1x1x1xf32>
    %318 = vector.shape_cast %317 : vector<1x1x1xf32> to vector<1x1xf32>
    %319 = vector.shape_cast %316 : vector<1x1xf32> to vector<1x1x1xf32>
    tpu.vector_store %arg14[%c0_171, %c0_172, %c0_173], %319 {strides = array<i32>} : memref<1x1x1xf32, #tpu.memory_space<vmem>>, vector<1x1x1xf32>,
    return
  }
  func.func @transform_0(%arg0: i32) -> (i32, i32, i32) {
    %c0_i32 = arith.constant 0 : i32
    %c0_i32_0 = arith.constant 0 : i32
    %c0_i32_1 = arith.constant 0 : i32
    return %arg0, %c0_i32, %c0_i32_0 : i32, i32, i32
  }
  func.func @transform_1(%arg0: i32) -> (i32, i32, i32) {
    %c0_i32 = arith.constant 0 : i32
    %c0_i32_0 = arith.constant 0 : i32
    %c0_i32_1 = arith.constant 0 : i32
    return %arg0, %c0_i32, %c0_i32_0 : i32, i32, i32
  }
  func.func @transform_2(%arg0: i32) -> (i32, i32, i32) {
    %c0_i32 = arith.constant 0 : i32
    %c0_i32_0 = arith.constant 0 : i32
    %c0_i32_1 = arith.constant 0 : i32
    %c0_i32_2 = arith.constant 0 : i32
    return %c0_i32, %c0_i32_0, %c0_i32_1 : i32, i32, i32
  }
  func.func @transform_3(%arg0: i32) -> (i32, i32, i32, i32) {
    %c0_i32 = arith.constant 0 : i32
    %c0_i32_0 = arith.constant 0 : i32
    %c0_i32_1 = arith.constant 0 : i32
    %c0_i32_2 = arith.constant 0 : i32
    %c0_i32_3 = arith.constant 0 : i32
    return %c0_i32, %c0_i32_0, %c0_i32_1, %c0_i32_2 : i32, i32, i32, i32
  }
  func.func @transform_4(%arg0: i32) -> (i32, i32, i32, i32) {
    %c0_i32 = arith.constant 0 : i32
    %c0_i32_0 = arith.constant 0 : i32
    %c0_i32_1 = arith.constant 0 : i32
    %c0_i32_2 = arith.constant 0 : i32
    %c0_i32_3 = arith.constant 0 : i32
    return %c0_i32, %c0_i32_0, %c0_i32_1, %c0_i32_2 : i32, i32, i32, i32
  }
  func.func @transform_5(%arg0: i32) -> (i32, i32, i32, i32) {
    %c0_i32 = arith.constant 0 : i32
    %c0_i32_0 = arith.constant 0 : i32
    %c0_i32_1 = arith.constant 0 : i32
    %c0_i32_2 = arith.constant 0 : i32
    %c0_i32_3 = arith.constant 0 : i32
    return %c0_i32, %c0_i32_0, %c0_i32_1, %c0_i32_2 : i32, i32, i32, i32
  }
  func.func @transform_6(%arg0: i32) -> (i32, i32, i32, i32) {
    %c0_i32 = arith.constant 0 : i32
    %c0_i32_0 = arith.constant 0 : i32
    %c0_i32_1 = arith.constant 0 : i32
    %c0_i32_2 = arith.constant 0 : i32
    %c0_i32_3 = arith.constant 0 : i32
    return %c0_i32, %c0_i32_0, %c0_i32_1, %c0_i32_2 : i32, i32, i32, i32
  }
  func.func @transform_7(%arg0: i32) -> (i32, i32, i32) {
    %c0_i32 = arith.constant 0 : i32
    %c0_i32_0 = arith.constant 0 : i32
    %c0_i32_1 = arith.constant 0 : i32
    %c0_i32_2 = arith.constant 0 : i32
    return %c0_i32, %c0_i32_0, %c0_i32_1 : i32, i32, i32
  }
  func.func @transform_8(%arg0: i32) -> (i32, i32, i32) {
    %c0_i32 = arith.constant 0 : i32
    %c0_i32_0 = arith.constant 0 : i32
    %c0_i32_1 = arith.constant 0 : i32
    %c0_i32_2 = arith.constant 0 : i32
    return %c0_i32, %c0_i32_0, %c0_i32_1 : i32, i32, i32
  }
  func.func @transform_9(%arg0: i32) -> (i32, i32, i32) {
    %c0_i32 = arith.constant 0 : i32
    %c0_i32_0 = arith.constant 0 : i32
    %c0_i32_1 = arith.constant 0 : i32
    %c0_i32_2 = arith.constant 0 : i32
    return %c0_i32, %c0_i32_0, %c0_i32_1 : i32, i32, i32
  }
  func.func @transform_10(%arg0: i32) -> (i32, i32) {
    %c0_i32 = arith.constant 0 : i32
    %c0_i32_0 = arith.constant 0 : i32
    %c0_i32_1 = arith.constant 0 : i32
    return %c0_i32, %c0_i32_0 : i32, i32
  }
  func.func @transform_11(%arg0: i32) -> (i32, i32, i32) {
    %c0_i32 = arith.constant 0 : i32
    %c0_i32_0 = arith.constant 0 : i32
    %c0_i32_1 = arith.constant 0 : i32
    %c0_i32_2 = arith.constant 0 : i32
    return %c0_i32, %c0_i32_0, %c0_i32_1 : i32, i32, i32
  }
  func.func @transform_12(%arg0: i32) -> (i32, i32) {
    %c0_i32 = arith.constant 0 : i32
    %c0_i32_0 = arith.constant 0 : i32
    %c0_i32_1 = arith.constant 0 : i32
    return %c0_i32, %c0_i32_0 : i32, i32
  }
  func.func @transform_13(%arg0: i32) -> (i32, i32, i32) {
    %c0_i32 = arith.constant 0 : i32
    %c0_i32_0 = arith.constant 0 : i32
    %c0_i32_1 = arith.constant 0 : i32
    return %arg0, %c0_i32, %c0_i32_0 : i32, i32, i32
  }
}

</mosaic_0001>

<llo_original>
// kernel: tpu_custom_call.1
$region0: #{tpu_custom_call.1}
  #allocation0 [shape = 'u32[]', space=smem, size = 0x4, offset = 0x4, fixed_abs, tag = 'smem constant byte address 0x4 - core index']
  #allocation1 [shape = 'u32[144,128]{1,0:T(1,128)}', space=vmem, size = 0x12000, scoped, tag = 'internal scratch']
  #allocation2 [shape = 'f32[1,1]{1,0:T(1,128)S(1)}', space=vmem, size = 0x200, scoped, tag = 'scoped memory for tpu_custom_call.1']
  %s0 = inlined_call_operand.vmem [shape: f32[2,8,32], index: 0, kind: input, shape index: {}]
  %s1 = inlined_call_operand.vmem [shape: f32[2,1,8], index: 1, kind: input, shape index: {}]
  %s2 = inlined_call_operand.vmem [shape: f32[3,1,32], index: 2, kind: input, shape index: {}]
  %s3 = inlined_call_operand.vmem [shape: bf16[2,6,32,16], index: 3, kind: input, shape index: {}]
  %s4 = inlined_call_operand.vmem [shape: f32[2,6,1,16], index: 4, kind: input, shape index: {}]
  %s5 = inlined_call_operand.vmem [shape: bf16[2,2,16,32], index: 5, kind: input, shape index: {}]
  %s6 = inlined_call_operand.vmem [shape: f32[2,6,1,32], index: 6, kind: input, shape index: {}]
  %s7 = inlined_call_operand.vmem [shape: bf16[2,32,64], index: 7, kind: input, shape index: {}]
  %s8 = inlined_call_operand.vmem [shape: f32[2,1,64], index: 8, kind: input, shape index: {}]
  %s9 = inlined_call_operand.vmem [shape: bf16[2,64,32], index: 9, kind: input, shape index: {}]
  %s10 = inlined_call_operand.vmem [shape: bf16[32,32], index: 10, kind: input, shape index: {}]
  %s11 = inlined_call_operand.vmem [shape: f32[2,1,32], index: 11, kind: input, shape index: {}]
  %s12 = inlined_call_operand.<no memory space> [shape: f32[1,1], index: 12, kind: input, shape index: {}]
  %s13 = inlined_call_operand.vmem [shape: f32[2,1,1], index: 13, kind: output, shape index: {}]
  %s14 = sld [smem:[#allocation0]]
  $region85: #{tpu_custom_call.1} parent=0
    _
  %s16 = ssub.s32 1, %s14
  %s17 = scalar_select 0, %s16, %s14
  %v18 = vstv %s12
  %19 = vst [vmem:[#allocation2] sm:$0x1] %v18
  loop: start=0, step=1, limit=4
  $region2: #{tpu_custom_call.1} parent=0 // loop_pre_header
    _
  $region3: #{tpu_custom_call.1} parent=0 // loop_header
    %s21 = sphi 0, %s25
    %p22 = scmp.ge.s32.totalorder %s21, 4
    %s31 = sphi 0, %s33
    %s34 = sphi 0, %s31
    %s35 = sphi 0, %s34
    %s51 = sphi 0, %s35
    %s57 = sphi 0, %s59
    %s60 = sphi 0, %s57
    %s61 = sphi 0, %s60
    %s77 = sphi 0, %s61
    %s81 = sphi 0, %s81
    %s83 = sphi 0, %s81
    %s84 = sphi 0, %s83
    %s98 = sphi 0, %s84
    %s102 = sphi 0, %s102
    %s104 = sphi 0, %s102
    %s105 = sphi 0, %s104
    %s119 = sphi 0, %s105
    %s123 = sphi 0, %s123
    %s125 = sphi 0, %s123
    %s126 = sphi 0, %s125
    %s140 = sphi 0, %s126
    %s144 = sphi 0, %s144
    %s146 = sphi 0, %s144
    %s147 = sphi 0, %s146
    %s161 = sphi 0, %s147
    %s165 = sphi 0, %s165
    %s167 = sphi 0, %s165
    %s168 = sphi 0, %s167
    %s182 = sphi 0, %s168
    %s186 = sphi 0, %s186
    %s188 = sphi 0, %s186
    %s189 = sphi 0, %s188
    %s203 = sphi 0, %s189
    %s207 = sphi 0, %s207
    %s209 = sphi 0, %s207
    %s210 = sphi 0, %s209
    %s224 = sphi 0, %s210
    %s228 = sphi 0, %s228
    %s230 = sphi 0, %s228
    %s231 = sphi 0, %s230
    %s245 = sphi 0, %s231
    %s249 = sphi 0, %s249
    %s251 = sphi 0, %s249
    %s252 = sphi 0, %s251
    %s266 = sphi 0, %s252
    %s270 = sphi 0, %s270
    %s272 = sphi 0, %s270
    %s273 = sphi 0, %s272
    %s287 = sphi 0, %s273
    %s291 = sphi 0, %s291
    %s293 = sphi 0, %s291
    %s294 = sphi 0, %s293
    %s308 = sphi 0, %s294
    %s314 = sphi 0, %s316
    %s317 = sphi 0, %s314
    %s318 = sphi 0, %s317
    %s334 = sphi 0, %s318
  $region4: #{tpu_custom_call.1} parent=0 // loop_header_branch
    %24 = sbr.rel (%p22) target = $region8
  $region5: #{tpu_custom_call.1} parent=0 // loop_body
    %s26 = ssub.s32 %s21, 1
    %s27 = ssub.s32 %s21, 2
    %s28 = sadd.s32 %s21, 1
    %s29 = ssub.s32 %s21, %s28
    %p30 = scmp.eq.s32.totalorder %s29, 0
    %s32 = sadd.s32 %s31, 1
    %s33 = scalar_select %p30, %s31, %s32
    %p36 = pneg %p30
    %p37 = scmp.eq.s32.totalorder %s21, 1
    %p38 = por %p36, %p37
    %p39 = scmp.ne.s32.totalorder %s31, %s34
    %p40 = scmp.eq.s32.totalorder %s21, 0
    %p41 = por %p39, %p40
    %p42 = scmp.ne.s32.totalorder %s31, %s34
    %p43 = scmp.eq.s32.totalorder %s26, 1
    %p44 = por %p42, %p43
    %p45 = scmp.ne.s32.totalorder %s34, %s35
    %p46 = scmp.eq.s32.totalorder %s26, 0
    %p47 = por %p45, %p46
    %p48 = scmp.ne.s32.totalorder %s34, %s35
    %p49 = scmp.eq.s32.totalorder %s27, 1
    %p50 = por %p48, %p49
    %p52 = scmp.ne.s32.totalorder %s35, %s51
    %p53 = scmp.eq.s32.totalorder %s27, 0
    %p54 = por %p52, %p53
    %s55 = ssub.s32 %s21, %s28
    %p56 = scmp.eq.s32.totalorder %s55, 0
    %s58 = sadd.s32 %s57, 1
    %s59 = scalar_select %p56, %s57, %s58
    %p62 = pneg %p56
    %p63 = scmp.eq.s32.totalorder %s21, 1
    %p64 = por %p62, %p63
    %p65 = scmp.ne.s32.totalorder %s57, %s60
    %p66 = scmp.eq.s32.totalorder %s21, 0
    %p67 = por %p65, %p66
    %p68 = scmp.ne.s32.totalorder %s57, %s60
    %p69 = scmp.eq.s32.totalorder %s26, 1
    %p70 = por %p68, %p69
    %p71 = scmp.ne.s32.totalorder %s60, %s61
    %p72 = scmp.eq.s32.totalorder %s26, 0
    %p73 = por %p71, %p72
    %p74 = scmp.ne.s32.totalorder %s60, %s61
    %p75 = scmp.eq.s32.totalorder %s27, 1
    %p76 = por %p74, %p75
    %p78 = scmp.ne.s32.totalorder %s61, %s77
    %p79 = scmp.eq.s32.totalorder %s27, 0
    %p80 = por %p78, %p79
    %s82 = sadd.s32 %s81, 1
    %p85 = scmp.eq.s32.totalorder %s21, 1
    %p86 = scmp.ne.s32.totalorder %s81, %s83
    %p87 = scmp.eq.s32.totalorder %s21, 0
    %p88 = por %p86, %p87
    %p89 = scmp.ne.s32.totalorder %s81, %s83
    %p90 = scmp.eq.s32.totalorder %s26, 1
    %p91 = por %p89, %p90
    %p92 = scmp.ne.s32.totalorder %s83, %s84
    %p93 = scmp.eq.s32.totalorder %s26, 0
    %p94 = por %p92, %p93
    %p95 = scmp.ne.s32.totalorder %s83, %s84
    %p96 = scmp.eq.s32.totalorder %s27, 1
    %p97 = por %p95, %p96
    %p99 = scmp.ne.s32.totalorder %s84, %s98
    %p100 = scmp.eq.s32.totalorder %s27, 0
    %p101 = por %p99, %p100
    %s103 = sadd.s32 %s102, 1
    %p106 = scmp.eq.s32.totalorder %s21, 1
    %p107 = scmp.ne.s32.totalorder %s102, %s104
    %p108 = scmp.eq.s32.totalorder %s21, 0
    %p109 = por %p107, %p108
    %p110 = scmp.ne.s32.totalorder %s102, %s104
    %p111 = scmp.eq.s32.totalorder %s26, 1
    %p112 = por %p110, %p111
    %p113 = scmp.ne.s32.totalorder %s104, %s105
    %p114 = scmp.eq.s32.totalorder %s26, 0
    %p115 = por %p113, %p114
    %p116 = scmp.ne.s32.totalorder %s104, %s105
    %p117 = scmp.eq.s32.totalorder %s27, 1
    %p118 = por %p116, %p117
    %p120 = scmp.ne.s32.totalorder %s105, %s119
    %p121 = scmp.eq.s32.totalorder %s27, 0
    %p122 = por %p120, %p121
    %s124 = sadd.s32 %s123, 1
    %p127 = scmp.eq.s32.totalorder %s21, 1
    %p128 = scmp.ne.s32.totalorder %s123, %s125
    %p129 = scmp.eq.s32.totalorder %s21, 0
    %p130 = por %p128, %p129
    %p131 = scmp.ne.s32.totalorder %s123, %s125
    %p132 = scmp.eq.s32.totalorder %s26, 1
    %p133 = por %p131, %p132
    %p134 = scmp.ne.s32.totalorder %s125, %s126
    %p135 = scmp.eq.s32.totalorder %s26, 0
    %p136 = por %p134, %p135
    %p137 = scmp.ne.s32.totalorder %s125, %s126
    %p138 = scmp.eq.s32.totalorder %s27, 1
    %p139 = por %p137, %p138
    %p141 = scmp.ne.s32.totalorder %s126, %s140
    %p142 = scmp.eq.s32.totalorder %s27, 0
    %p143 = por %p141, %p142
    %s145 = sadd.s32 %s144, 1
    %p148 = scmp.eq.s32.totalorder %s21, 1
    %p149 = scmp.ne.s32.totalorder %s144, %s146
    %p150 = scmp.eq.s32.totalorder %s21, 0
    %p151 = por %p149, %p150
    %p152 = scmp.ne.s32.totalorder %s144, %s146
    %p153 = scmp.eq.s32.totalorder %s26, 1
    %p154 = por %p152, %p153
    %p155 = scmp.ne.s32.totalorder %s146, %s147
    %p156 = scmp.eq.s32.totalorder %s26, 0
    %p157 = por %p155, %p156
    %p158 = scmp.ne.s32.totalorder %s146, %s147
    %p159 = scmp.eq.s32.totalorder %s27, 1
    %p160 = por %p158, %p159
    %p162 = scmp.ne.s32.totalorder %s147, %s161
    %p163 = scmp.eq.s32.totalorder %s27, 0
    %p164 = por %p162, %p163
    %s166 = sadd.s32 %s165, 1
    %p169 = scmp.eq.s32.totalorder %s21, 1
    %p170 = scmp.ne.s32.totalorder %s165, %s167
    %p171 = scmp.eq.s32.totalorder %s21, 0
    %p172 = por %p170, %p171
    %p173 = scmp.ne.s32.totalorder %s165, %s167
    %p174 = scmp.eq.s32.totalorder %s26, 1
    %p175 = por %p173, %p174
    %p176 = scmp.ne.s32.totalorder %s167, %s168
    %p177 = scmp.eq.s32.totalorder %s26, 0
    %p178 = por %p176, %p177
    %p179 = scmp.ne.s32.totalorder %s167, %s168
    %p180 = scmp.eq.s32.totalorder %s27, 1
    %p181 = por %p179, %p180
    %p183 = scmp.ne.s32.totalorder %s168, %s182
    %p184 = scmp.eq.s32.totalorder %s27, 0
    %p185 = por %p183, %p184
    %s187 = sadd.s32 %s186, 1
    %p190 = scmp.eq.s32.totalorder %s21, 1
    %p191 = scmp.ne.s32.totalorder %s186, %s188
    %p192 = scmp.eq.s32.totalorder %s21, 0
    %p193 = por %p191, %p192
    %p194 = scmp.ne.s32.totalorder %s186, %s188
    %p195 = scmp.eq.s32.totalorder %s26, 1
    %p196 = por %p194, %p195
    %p197 = scmp.ne.s32.totalorder %s188, %s189
    %p198 = scmp.eq.s32.totalorder %s26, 0
    %p199 = por %p197, %p198
    %p200 = scmp.ne.s32.totalorder %s188, %s189
    %p201 = scmp.eq.s32.totalorder %s27, 1
    %p202 = por %p200, %p201
    %p204 = scmp.ne.s32.totalorder %s189, %s203
    %p205 = scmp.eq.s32.totalorder %s27, 0
    %p206 = por %p204, %p205
    %s208 = sadd.s32 %s207, 1
    %p211 = scmp.eq.s32.totalorder %s21, 1
    %p212 = scmp.ne.s32.totalorder %s207, %s209
    %p213 = scmp.eq.s32.totalorder %s21, 0
    %p214 = por %p212, %p213
    %p215 = scmp.ne.s32.totalorder %s207, %s209
    %p216 = scmp.eq.s32.totalorder %s26, 1
    %p217 = por %p215, %p216
    %p218 = scmp.ne.s32.totalorder %s209, %s210
    %p219 = scmp.eq.s32.totalorder %s26, 0
    %p220 = por %p218, %p219
    %p221 = scmp.ne.s32.totalorder %s209, %s210
    %p222 = scmp.eq.s32.totalorder %s27, 1
    %p223 = por %p221, %p222
    %p225 = scmp.ne.s32.totalorder %s210, %s224
    %p226 = scmp.eq.s32.totalorder %s27, 0
    %p227 = por %p225, %p226
    %s229 = sadd.s32 %s228, 1
    %p232 = scmp.eq.s32.totalorder %s21, 1
    %p233 = scmp.ne.s32.totalorder %s228, %s230
    %p234 = scmp.eq.s32.totalorder %s21, 0
    %p235 = por %p233, %p234
    %p236 = scmp.ne.s32.totalorder %s228, %s230
    %p237 = scmp.eq.s32.totalorder %s26, 1
    %p238 = por %p236, %p237
    %p239 = scmp.ne.s32.totalorder %s230, %s231
    %p240 = scmp.eq.s32.totalorder %s26, 0
    %p241 = por %p239, %p240
    %p242 = scmp.ne.s32.totalorder %s230, %s231
    %p243 = scmp.eq.s32.totalorder %s27, 1
    %p244 = por %p242, %p243
    %p246 = scmp.ne.s32.totalorder %s231, %s245
    %p247 = scmp.eq.s32.totalorder %s27, 0
    %p248 = por %p246, %p247
    %s250 = sadd.s32 %s249, 1
    %p253 = scmp.eq.s32.totalorder %s21, 1
    %p254 = scmp.ne.s32.totalorder %s249, %s251
    %p255 = scmp.eq.s32.totalorder %s21, 0
    %p256 = por %p254, %p255
    %p257 = scmp.ne.s32.totalorder %s249, %s251
    %p258 = scmp.eq.s32.totalorder %s26, 1
    %p259 = por %p257, %p258
    %p260 = scmp.ne.s32.totalorder %s251, %s252
    %p261 = scmp.eq.s32.totalorder %s26, 0
    %p262 = por %p260, %p261
    %p263 = scmp.ne.s32.totalorder %s251, %s252
    %p264 = scmp.eq.s32.totalorder %s27, 1
    %p265 = por %p263, %p264
    %p267 = scmp.ne.s32.totalorder %s252, %s266
    %p268 = scmp.eq.s32.totalorder %s27, 0
    %p269 = por %p267, %p268
    %s271 = sadd.s32 %s270, 1
    %p274 = scmp.eq.s32.totalorder %s21, 1
    %p275 = scmp.ne.s32.totalorder %s270, %s272
    %p276 = scmp.eq.s32.totalorder %s21, 0
    %p277 = por %p275, %p276
    %p278 = scmp.ne.s32.totalorder %s270, %s272
    %p279 = scmp.eq.s32.totalorder %s26, 1
    %p280 = por %p278, %p279
    %p281 = scmp.ne.s32.totalorder %s272, %s273
    %p282 = scmp.eq.s32.totalorder %s26, 0
    %p283 = por %p281, %p282
    %p284 = scmp.ne.s32.totalorder %s272, %s273
    %p285 = scmp.eq.s32.totalorder %s27, 1
    %p286 = por %p284, %p285
    %p288 = scmp.ne.s32.totalorder %s273, %s287
    %p289 = scmp.eq.s32.totalorder %s27, 0
    %p290 = por %p288, %p289
    %s292 = sadd.s32 %s291, 1
    %p295 = scmp.eq.s32.totalorder %s21, 1
    %p296 = scmp.ne.s32.totalorder %s291, %s293
    %p297 = scmp.eq.s32.totalorder %s21, 0
    %p298 = por %p296, %p297
    %p299 = scmp.ne.s32.totalorder %s291, %s293
    %p300 = scmp.eq.s32.totalorder %s26, 1
    %p301 = por %p299, %p300
    %p302 = scmp.ne.s32.totalorder %s293, %s294
    %p303 = scmp.eq.s32.totalorder %s26, 0
    %p304 = por %p302, %p303
    %p305 = scmp.ne.s32.totalorder %s293, %s294
    %p306 = scmp.eq.s32.totalorder %s27, 1
    %p307 = por %p305, %p306
    %p309 = scmp.ne.s32.totalorder %s294, %s308
    %p310 = scmp.eq.s32.totalorder %s27, 0
    %p311 = por %p309, %p310
    %s312 = ssub.s32 %s21, %s28
    %p313 = scmp.eq.s32.totalorder %s312, 0
    %s315 = sadd.s32 %s314, 1
    %s316 = scalar_select %p313, %s314, %s315
    %p319 = pneg %p313
    %p320 = scmp.eq.s32.totalorder %s21, 1
    %p321 = por %p319, %p320
    %p322 = scmp.ne.s32.totalorder %s314, %s317
    %p323 = scmp.eq.s32.totalorder %s21, 0
    %p324 = por %p322, %p323
    %p325 = scmp.ne.s32.totalorder %s314, %s317
    %p326 = scmp.eq.s32.totalorder %s26, 1
    %p327 = por %p325, %p326
    %p328 = scmp.ne.s32.totalorder %s317, %s318
    %p329 = scmp.eq.s32.totalorder %s26, 0
    %p330 = por %p328, %p329
    %p331 = scmp.ne.s32.totalorder %s317, %s318
    %p332 = scmp.eq.s32.totalorder %s27, 1
    %p333 = por %p331, %p332
    %p335 = scmp.ne.s32.totalorder %s318, %s334
    %p336 = scmp.eq.s32.totalorder %s27, 0
    %p337 = por %p335, %p336
    %p338 = scmp.le.s32.totalorder 1, %s21
    %p339 = scmp.lt.s32.totalorder %s21, 3
    %p340 = pnand %p338, %p339
    %p341 = pneg %p340
    // Predicated region
    $region9: #{tpu_custom_call.1} parent=5 // pred_check
      _
    $region10: #{tpu_custom_call.1} parent=5 // pred_check_branch
      %343 = sbr.rel (%p340) target = $region12
    $region11: #{tpu_custom_call.1} parent=5 // pred_region
      %s344 = ssub.s32 %s21, 1
      // Predicated region
      $region13: #{tpu_custom_call.1} parent=11 // pred_check
        %p345 = pneg %p94
      $region14: #{tpu_custom_call.1} parent=11 // pred_check_branch
        %347 = sbr.rel (%p345) target = $region16
      $region15: #{tpu_custom_call.1} parent=11 // pred_region
        _
      $region16: #{tpu_custom_call.1} parent=11 // pred_fallthru
        _
      // Predicated region
      $region17: #{tpu_custom_call.1} parent=11 // pred_check
        %p348 = pneg %p115
      $region18: #{tpu_custom_call.1} parent=11 // pred_check_branch
        %350 = sbr.rel (%p348) target = $region20
      $region19: #{tpu_custom_call.1} parent=11 // pred_region
        _
      $region20: #{tpu_custom_call.1} parent=11 // pred_fallthru
        _
      // Predicated region
      $region21: #{tpu_custom_call.1} parent=11 // pred_check
        %p351 = pneg %p136
      $region22: #{tpu_custom_call.1} parent=11 // pred_check_branch
        %353 = sbr.rel (%p351) target = $region24
      $region23: #{tpu_custom_call.1} parent=11 // pred_region
        _
      $region24: #{tpu_custom_call.1} parent=11 // pred_fallthru
        _
      // Predicated region
      $region25: #{tpu_custom_call.1} parent=11 // pred_check
        %p354 = pneg %p157
      $region26: #{tpu_custom_call.1} parent=11 // pred_check_branch
        %356 = sbr.rel (%p354) target = $region28
      $region27: #{tpu_custom_call.1} parent=11 // pred_region
        _
      $region28: #{tpu_custom_call.1} parent=11 // pred_fallthru
        _
      // Predicated region
      $region29: #{tpu_custom_call.1} parent=11 // pred_check
        %p357 = pneg %p178
      $region30: #{tpu_custom_call.1} parent=11 // pred_check_branch
        %359 = sbr.rel (%p357) target = $region32
      $region31: #{tpu_custom_call.1} parent=11 // pred_region
        _
      $region32: #{tpu_custom_call.1} parent=11 // pred_fallthru
        _
      // Predicated region
      $region33: #{tpu_custom_call.1} parent=11 // pred_check
        %p360 = pneg %p199
      $region34: #{tpu_custom_call.1} parent=11 // pred_check_branch
        %362 = sbr.rel (%p360) target = $region36
      $region35: #{tpu_custom_call.1} parent=11 // pred_region
        _
      $region36: #{tpu_custom_call.1} parent=11 // pred_fallthru
        _
      // Predicated region
      $region37: #{tpu_custom_call.1} parent=11 // pred_check
        %p363 = pneg %p220
      $region38: #{tpu_custom_call.1} parent=11 // pred_check_branch
        %365 = sbr.rel (%p363) target = $region40
      $region39: #{tpu_custom_call.1} parent=11 // pred_region
        _
      $region40: #{tpu_custom_call.1} parent=11 // pred_fallthru
        _
      // Predicated region
      $region41: #{tpu_custom_call.1} parent=11 // pred_check
        %p366 = pneg %p241
      $region42: #{tpu_custom_call.1} parent=11 // pred_check_branch
        %368 = sbr.rel (%p366) target = $region44
      $region43: #{tpu_custom_call.1} parent=11 // pred_region
        _
      $region44: #{tpu_custom_call.1} parent=11 // pred_fallthru
        _
      // Predicated region
      $region45: #{tpu_custom_call.1} parent=11 // pred_check
        %p369 = pneg %p262
      $region46: #{tpu_custom_call.1} parent=11 // pred_check_branch
        %371 = sbr.rel (%p369) target = $region48
      $region47: #{tpu_custom_call.1} parent=11 // pred_region
        _
      $region48: #{tpu_custom_call.1} parent=11 // pred_fallthru
        _
      // Predicated region
      $region49: #{tpu_custom_call.1} parent=11 // pred_check
        %p372 = pneg %p283
      $region50: #{tpu_custom_call.1} parent=11 // pred_check_branch
        %374 = sbr.rel (%p372) target = $region52
      $region51: #{tpu_custom_call.1} parent=11 // pred_region
        _
      $region52: #{tpu_custom_call.1} parent=11 // pred_fallthru
        _
      // Predicated region
      $region53: #{tpu_custom_call.1} parent=11 // pred_check
        %p375 = pneg %p304
      $region54: #{tpu_custom_call.1} parent=11 // pred_check_branch
        %377 = sbr.rel (%p375) target = $region56
      $region55: #{tpu_custom_call.1} parent=11 // pred_region
        _
      $region56: #{tpu_custom_call.1} parent=11 // pred_fallthru
        _
    $region12: #{tpu_custom_call.1} parent=5 // pred_fallthru
      _
    %p378 = scmp.lt.s32.totalorder %s21, 2
    // Predicated region
    $region57: #{tpu_custom_call.1} parent=5 // pred_check
      %p379 = pneg %p378
    $region58: #{tpu_custom_call.1} parent=5 // pred_check_branch
      %381 = sbr.rel (%p379) target = $region60
    $region59: #{tpu_custom_call.1} parent=5 // pred_region
      // Predicated region
      $region61: #{tpu_custom_call.1} parent=59 // pred_check
        %p382 = pneg %p41
      $region62: #{tpu_custom_call.1} parent=59 // pred_check_branch
        %384 = sbr.rel (%p382) target = $region64
      $region63: #{tpu_custom_call.1} parent=59 // pred_region
        %p385 = scmp.lt.s32.totalorder %s21, 1
        %s386 = scalar_select %p385, %s21, 1
        %s387 = smul.addr %s386, 8
        %s388 = scalar_lea.vmem %s0, %s387
      $region64: #{tpu_custom_call.1} parent=59 // pred_fallthru
        _
      // Predicated region
      $region65: #{tpu_custom_call.1} parent=59 // pred_check
        %p389 = pneg %p67
      $region66: #{tpu_custom_call.1} parent=59 // pred_check_branch
        %391 = sbr.rel (%p389) target = $region68
      $region67: #{tpu_custom_call.1} parent=59 // pred_region
        %p392 = scmp.lt.s32.totalorder %s21, 1
        %s393 = scalar_select %p392, %s21, 1
        %s394 = scalar_lea.vmem %s1, %s393
      $region68: #{tpu_custom_call.1} parent=59 // pred_fallthru
        _
    $region60: #{tpu_custom_call.1} parent=5 // pred_fallthru
      _
    %p395 = scmp.le.s32.totalorder 1, %s21
    %p396 = scmp.lt.s32.totalorder %s21, 3
    %p397 = pnand %p395, %p396
    %p398 = pneg %p397
    // Predicated region
    $region69: #{tpu_custom_call.1} parent=5 // pred_check
      _
    $region70: #{tpu_custom_call.1} parent=5 // pred_check_branch
      %400 = sbr.rel (%p397) target = $region72
    $region71: #{tpu_custom_call.1} parent=5 // pred_region
      %s401 = ssub.s32 %s21, 1
      %p402 = scmp.lt.s32.totalorder %s26, 1
      %s403 = scalar_select %p402, %s26, 1
      %s404 = smul.addr %s403, 8
      %s405 = scalar_lea.vmem %s0, %s404
      %p406 = pneg %p47
      %p407 = pneg %p44
      %p408 = scmp.lt.s32.totalorder %s26, 1
      %s409 = scalar_select %p408, %s26, 1
      %s410 = scalar_lea.vmem %s1, %s409
      %p411 = pneg %p73
      %p412 = pneg %p70
      %p413 = pneg %p94
      %p414 = pneg %p91
      %p415 = pneg %p115
      %p416 = pneg %p112
      %p417 = pneg %p136
      %p418 = pneg %p133
      %p419 = pneg %p157
      %p420 = pneg %p154
      %p421 = pneg %p178
      %p422 = pneg %p175
      %p423 = pneg %p199
      %p424 = pneg %p196
      %p425 = pneg %p220
      %p426 = pneg %p217
      %p427 = pneg %p241
      %p428 = pneg %p238
      %p429 = pneg %p262
      %p430 = pneg %p259
      %p431 = pneg %p283
      %p432 = pneg %p280
      %p433 = pneg %p304
      %p434 = pneg %p301
      %p435 = pneg %p330
      %p436 = pneg %p327
      %p437 = scmp.lt.s32.totalorder %s26, 1
      %s438 = scalar_select %p437, %s26, 1
      %s439 = scalar_lea.vmem %s13, %s438
      %p440 = scmp.lt.s32.totalorder %s26, 1
      %s441 = scalar_select %p440, %s26, 1
      %s442 = smul.addr %s441, 8
      %s443 = scalar_lea.vmem %s0, %s442
      %p444 = scmp.lt.s32.totalorder %s26, 1
      %s445 = scalar_select %p444, %s26, 1
      %s446 = scalar_lea.vmem %s1, %s445
      %p447 = scmp.lt.s32.totalorder %s26, 1
      %s448 = scalar_select %p447, %s26, 1
      %s449 = scalar_lea.vmem %s13, %s448
      %v451 = vld [vmem:[%s443] sm:$0xff]
      %v452 = vld [vmem:[%s2] sm:$0x1]
      %s453 = scalar_lea.vmem %s2, 1
      %v454 = vld [vmem:[%s453] sm:$0x1]
      %vm455 = vcmask 261120
      %v456 = vsel %vm455, %v451, 0.0
      %457 = vadd.xlane.f32.xlu0 %v456
      %v458 = vpop.xlane.xlu0 %457
      %v459 = vrcp.pop 32.0
      %v460 = vmul.f32 %v458, %v459
      %v461 = vsub.f32 %v451, %v460
      %v462 = vmul.f32 %v461, %v461
      %v463 = vsel %vm455, %v462, 0.0
      %464 = vadd.xlane.f32.xlu0 %v463
      %v465 = vpop.xlane.xlu0 %464
      %v466 = vmul.f32 %v465, %v459
      %v467 = vadd.f32 %v466, 1e-12
      %v468 = vrsqrt.pop %v467
      %v469 = vmul.f32 %v461, %v468
      %v471 = vlaneseq
      %v472 = vshrl.u32 %v471, 7
      %v473 = vsub.s32 0, %v472
      %v474 = vrot.slane %v452, %v473
      %v476 = vmul.f32 %v469, %v474
      %v478 = vlaneseq
      %v479 = vshrl.u32 %v478, 7
      %v480 = vsub.s32 0, %v479
      %v481 = vrot.slane %v454, %v480
      %v483 = vadd.f32 %v476, %v481
      %v484 = vld [vmem:[%s446] sm:$0x1]
      %v485 = vpack.c.bf16 %v483, %v483
      %v486 = vld [vmem:[%s3] sm:$0xf]
      %v487 = vld [vmem:[%s3 + $0x4] sm:$0xf]
      %v488 = vld [vmem:[%s3 + $0x8] sm:$0xf]
      %v489 = vld [vmem:[%s3 + $0xc] sm:$0xf]
      %v490 = vld [vmem:[%s3 + $0x10] sm:$0xf]
      %v491 = vld [vmem:[%s3 + $0x14] sm:$0xf]
      %v492 = vld [vmem:[%s3 + $0x18] sm:$0xf]
      %v493 = vld [vmem:[%s3 + $0x1c] sm:$0xf]
      %v494 = vld [vmem:[%s3 + $0x20] sm:$0xf]
      %v495 = vld [vmem:[%s3 + $0x24] sm:$0xf]
      %v496 = vld [vmem:[%s3 + $0x28] sm:$0xf]
      %v497 = vld [vmem:[%s3 + $0x2c] sm:$0xf]
      %v498 = vld [vmem:[%s3 + $0x30] sm:$0xf]
      %v499 = vld [vmem:[%s3 + $0x34] sm:$0xf]
      %v500 = vld [vmem:[%s3 + $0x38] sm:$0xf]
      %v501 = vld [vmem:[%s3 + $0x3c] sm:$0xf]
      %v502 = vld [vmem:[%s3 + $0x40] sm:$0xf]
      %v503 = vld [vmem:[%s3 + $0x44] sm:$0xf]
      %v504 = vld [vmem:[%s3 + $0x48] sm:$0xf]
      %v505 = vld [vmem:[%s3 + $0x4c] sm:$0xf]
      %v506 = vld [vmem:[%s3 + $0x50] sm:$0xf]
      %v507 = vld [vmem:[%s3 + $0x54] sm:$0xf]
      %v508 = vld [vmem:[%s3 + $0x58] sm:$0xf]
      %v509 = vld [vmem:[%s3 + $0x5c] sm:$0xf]
      %v510 = vld [vmem:[%s4] sm:$0x1]
      %v511 = vld [vmem:[%s4 + $0x1] sm:$0x1]
      %v512 = vld [vmem:[%s4 + $0x2] sm:$0x1]
      %v513 = vld [vmem:[%s4 + $0x3] sm:$0x1]
      %v514 = vld [vmem:[%s4 + $0x4] sm:$0x1]
      %v515 = vld [vmem:[%s4 + $0x5] sm:$0x1]
      %v522 = vlaneseq
      %v523 = vshrl.u32 %v522, 7
      %v524 = vsub.s32 0, %v523
      %v525 = vrot.slane %v510, %v524
      %v526 = vlaneseq
      %v527 = vshrl.u32 %v526, 7
      %v528 = vsub.s32 0, %v527
      %v529 = vrot.slane %v511, %v528
      %v530 = vlaneseq
      %v531 = vshrl.u32 %v530, 7
      %v532 = vsub.s32 0, %v531
      %v533 = vrot.slane %v512, %v532
      %v534 = vlaneseq
      %v535 = vshrl.u32 %v534, 7
      %v536 = vsub.s32 0, %v535
      %v537 = vrot.slane %v513, %v536
      %v538 = vlaneseq
      %v539 = vshrl.u32 %v538, 7
      %v540 = vsub.s32 0, %v539
      %v541 = vrot.slane %v514, %v540
      %v542 = vlaneseq
      %v543 = vshrl.u32 %v542, 7
      %v544 = vsub.s32 0, %v543
      %v545 = vrot.slane %v515, %v544
      %v556 = vunpack.c.l.b16 %v486
      %v557 = vunpack.c.l.b16 %v487
      %v558 = vunpack.c.l.b16 %v488
      %v559 = vunpack.c.l.b16 %v489
      %v560 = vpack.c.b16 %v557, %v556
      %v561 = vpack.c.b16 %v559, %v558
      %v565 = vsel %vm455, %v485, 0
      %567 = vmatprep.subr.bf16.mxu0 0
      %568 = vmatpush1.bf16.msra.mxu0 0
      %569 = vmatprep.subr.bf16.mxu0 0
      %570 = vmatpush1.bf16.msra.mxu0 0
      %571 = vmatprep.subr.bf16.mxu0 0
      %572 = vmatpush1.bf16.msra.mxu0 0
      %573 = vmatprep.subr.bf16.mxu0 0
      %574 = vmatpush1.bf16.msra.mxu0 0
      %575 = vmatprep.subr.bf16.mxu0 0
      %576 = vmatpush1.bf16.msra.mxu0 0
      %577 = vmatprep.subr.bf16.mxu0 0
      %578 = vmatpush1.bf16.msra.mxu0 0
      %579 = vmatprep.subr.bf16.mxu0 0
      %580 = vmatpush1.bf16.msra.mxu0 %v561
      %581 = vmatprep.subr.bf16.mxu0 0
      %582 = vmatpush1.bf16.msra.mxu0 %v560
      %583 = vmatprep.subr.bf16.mxu0 0
      %584 = vmatpush2.bf16.msra.mxu0 0
      %585 = vmatprep.subr.bf16.mxu0 0
      %586 = vmatpush2.bf16.msra.mxu0 0
      %587 = vmatprep.subr.bf16.mxu0 0
      %588 = vmatpush2.bf16.msra.mxu0 0
      %589 = vmatprep.subr.bf16.mxu0 0
      %590 = vmatpush2.bf16.msra.mxu0 0
      %591 = vmatprep.subr.bf16.mxu0 0
      %592 = vmatpush2.bf16.msra.mxu0 0
      %593 = vmatprep.subr.bf16.mxu0 0
      %594 = vmatpush2.bf16.msra.mxu0 0
      %595 = vmatprep.subr.bf16.mxu0 0
      %596 = vmatpush2.bf16.msra.mxu0 0
      %597 = vmatprep.subr.bf16.mxu0 0
      %598 = vmatpush2.bf16.msra.mxu0 0
      %599 = vmatprep.mubr.bf16.mxu0 0
      %600 = vmatmul.mubr.bf16.gmra.mxu0 %v565
      %v601 = vpop.f32.mrf.mxu0
      %v602 = vadd.f32 %v525, %v601
      %v603 = vpop.f32.mrf.mxu0
      %v604 = vpop.f32.mrf.mxu0
      %v605 = vpop.f32.mrf.mxu0
      %606 = vdwg.mxu0
      %v611 = vunpack.c.l.b16 %v490
      %v612 = vunpack.c.l.b16 %v491
      %v613 = vunpack.c.l.b16 %v492
      %v614 = vunpack.c.l.b16 %v493
      %v615 = vpack.c.b16 %v612, %v611
      %v616 = vpack.c.b16 %v614, %v613
      %619 = vmatprep.subr.bf16.mxu0 0
      %620 = vmatpush1.bf16.msra.mxu0 0
      %621 = vmatprep.subr.bf16.mxu0 0
      %622 = vmatpush1.bf16.msra.mxu0 0
      %623 = vmatprep.subr.bf16.mxu0 0
      %624 = vmatpush1.bf16.msra.mxu0 0
      %625 = vmatprep.subr.bf16.mxu0 0
      %626 = vmatpush1.bf16.msra.mxu0 0
      %627 = vmatprep.subr.bf16.mxu0 0
      %628 = vmatpush1.bf16.msra.mxu0 0
      %629 = vmatprep.subr.bf16.mxu0 0
      %630 = vmatpush1.bf16.msra.mxu0 0
      %631 = vmatprep.subr.bf16.mxu0 0
      %632 = vmatpush1.bf16.msra.mxu0 %v616
      %633 = vmatprep.subr.bf16.mxu0 0
      %634 = vmatpush1.bf16.msra.mxu0 %v615
      %635 = vmatprep.subr.bf16.mxu0 0
      %636 = vmatpush2.bf16.msra.mxu0 0
      %637 = vmatprep.subr.bf16.mxu0 0
      %638 = vmatpush2.bf16.msra.mxu0 0
      %639 = vmatprep.subr.bf16.mxu0 0
      %640 = vmatpush2.bf16.msra.mxu0 0
      %641 = vmatprep.subr.bf16.mxu0 0
      %642 = vmatpush2.bf16.msra.mxu0 0
      %643 = vmatprep.subr.bf16.mxu0 0
      %644 = vmatpush2.bf16.msra.mxu0 0
      %645 = vmatprep.subr.bf16.mxu0 0
      %646 = vmatpush2.bf16.msra.mxu0 0
      %647 = vmatprep.subr.bf16.mxu0 0
      %648 = vmatpush2.bf16.msra.mxu0 0
      %649 = vmatprep.subr.bf16.mxu0 0
      %650 = vmatpush2.bf16.msra.mxu0 0
      %651 = vmatprep.mubr.bf16.mxu0 0
      %652 = vmatmul.mubr.bf16.gmra.mxu0 %v565
      %v653 = vpop.f32.mrf.mxu0
      %v654 = vadd.f32 %v529, %v653
      %v655 = vpop.f32.mrf.mxu0
      %v656 = vpop.f32.mrf.mxu0
      %v657 = vpop.f32.mrf.mxu0
      %658 = vdwg.mxu0
      %v663 = vunpack.c.l.b16 %v494
      %v664 = vunpack.c.l.b16 %v495
      %v665 = vunpack.c.l.b16 %v496
      %v666 = vunpack.c.l.b16 %v497
      %v667 = vpack.c.b16 %v664, %v663
      %v668 = vpack.c.b16 %v666, %v665
      %671 = vmatprep.subr.bf16.mxu0 0
      %672 = vmatpush1.bf16.msra.mxu0 0
      %673 = vmatprep.subr.bf16.mxu0 0
      %674 = vmatpush1.bf16.msra.mxu0 0
      %675 = vmatprep.subr.bf16.mxu0 0
      %676 = vmatpush1.bf16.msra.mxu0 0
      %677 = vmatprep.subr.bf16.mxu0 0
      %678 = vmatpush1.bf16.msra.mxu0 0
      %679 = vmatprep.subr.bf16.mxu0 0
      %680 = vmatpush1.bf16.msra.mxu0 0
      %681 = vmatprep.subr.bf16.mxu0 0
      %682 = vmatpush1.bf16.msra.mxu0 0
      %683 = vmatprep.subr.bf16.mxu0 0
      %684 = vmatpush1.bf16.msra.mxu0 %v668
      %685 = vmatprep.subr.bf16.mxu0 0
      %686 = vmatpush1.bf16.msra.mxu0 %v667
      %687 = vmatprep.subr.bf16.mxu0 0
      %688 = vmatpush2.bf16.msra.mxu0 0
      %689 = vmatprep.subr.bf16.mxu0 0
      %690 = vmatpush2.bf16.msra.mxu0 0
      %691 = vmatprep.subr.bf16.mxu0 0
      %692 = vmatpush2.bf16.msra.mxu0 0
      %693 = vmatprep.subr.bf16.mxu0 0
      %694 = vmatpush2.bf16.msra.mxu0 0
      %695 = vmatprep.subr.bf16.mxu0 0
      %696 = vmatpush2.bf16.msra.mxu0 0
      %697 = vmatprep.subr.bf16.mxu0 0
      %698 = vmatpush2.bf16.msra.mxu0 0
      %699 = vmatprep.subr.bf16.mxu0 0
      %700 = vmatpush2.bf16.msra.mxu0 0
      %701 = vmatprep.subr.bf16.mxu0 0
      %702 = vmatpush2.bf16.msra.mxu0 0
      %703 = vmatprep.mubr.bf16.mxu0 0
      %704 = vmatmul.mubr.bf16.gmra.mxu0 %v565
      %v705 = vpop.f32.mrf.mxu0
      %v706 = vadd.f32 %v533, %v705
      %v707 = vpop.f32.mrf.mxu0
      %v708 = vpop.f32.mrf.mxu0
      %v709 = vpop.f32.mrf.mxu0
      %710 = vdwg.mxu0
      %v715 = vunpack.c.l.b16 %v498
      %v716 = vunpack.c.l.b16 %v499
      %v717 = vunpack.c.l.b16 %v500
      %v718 = vunpack.c.l.b16 %v501
      %v719 = vpack.c.b16 %v716, %v715
      %v720 = vpack.c.b16 %v718, %v717
      %723 = vmatprep.subr.bf16.mxu0 0
      %724 = vmatpush1.bf16.msra.mxu0 0
      %725 = vmatprep.subr.bf16.mxu0 0
      %726 = vmatpush1.bf16.msra.mxu0 0
      %727 = vmatprep.subr.bf16.mxu0 0
      %728 = vmatpush1.bf16.msra.mxu0 0
      %729 = vmatprep.subr.bf16.mxu0 0
      %730 = vmatpush1.bf16.msra.mxu0 0
      %731 = vmatprep.subr.bf16.mxu0 0
      %732 = vmatpush1.bf16.msra.mxu0 0
      %733 = vmatprep.subr.bf16.mxu0 0
      %734 = vmatpush1.bf16.msra.mxu0 0
      %735 = vmatprep.subr.bf16.mxu0 0
      %736 = vmatpush1.bf16.msra.mxu0 %v720
      %737 = vmatprep.subr.bf16.mxu0 0
      %738 = vmatpush1.bf16.msra.mxu0 %v719
      %739 = vmatprep.subr.bf16.mxu0 0
      %740 = vmatpush2.bf16.msra.mxu0 0
      %741 = vmatprep.subr.bf16.mxu0 0
      %742 = vmatpush2.bf16.msra.mxu0 0
      %743 = vmatprep.subr.bf16.mxu0 0
      %744 = vmatpush2.bf16.msra.mxu0 0
      %745 = vmatprep.subr.bf16.mxu0 0
      %746 = vmatpush2.bf16.msra.mxu0 0
      %747 = vmatprep.subr.bf16.mxu0 0
      %748 = vmatpush2.bf16.msra.mxu0 0
      %749 = vmatprep.subr.bf16.mxu0 0
      %750 = vmatpush2.bf16.msra.mxu0 0
      %751 = vmatprep.subr.bf16.mxu0 0
      %752 = vmatpush2.bf16.msra.mxu0 0
      %753 = vmatprep.subr.bf16.mxu0 0
      %754 = vmatpush2.bf16.msra.mxu0 0
      %755 = vmatprep.mubr.bf16.mxu0 0
      %756 = vmatmul.mubr.bf16.gmra.mxu0 %v565
      %v757 = vpop.f32.mrf.mxu0
      %v758 = vadd.f32 %v537, %v757
      %v759 = vpop.f32.mrf.mxu0
      %v760 = vpop.f32.mrf.mxu0
      %v761 = vpop.f32.mrf.mxu0
      %762 = vdwg.mxu0
      %v767 = vunpack.c.l.b16 %v502
      %v768 = vunpack.c.l.b16 %v503
      %v769 = vunpack.c.l.b16 %v504
      %v770 = vunpack.c.l.b16 %v505
      %v771 = vpack.c.b16 %v768, %v767
      %v772 = vpack.c.b16 %v770, %v769
      %775 = vmatprep.subr.bf16.mxu0 0
      %776 = vmatpush1.bf16.msra.mxu0 0
      %777 = vmatprep.subr.bf16.mxu0 0
      %778 = vmatpush1.bf16.msra.mxu0 0
      %779 = vmatprep.subr.bf16.mxu0 0
      %780 = vmatpush1.bf16.msra.mxu0 0
      %781 = vmatprep.subr.bf16.mxu0 0
      %782 = vmatpush1.bf16.msra.mxu0 0
      %783 = vmatprep.subr.bf16.mxu0 0
      %784 = vmatpush1.bf16.msra.mxu0 0
      %785 = vmatprep.subr.bf16.mxu0 0
      %786 = vmatpush1.bf16.msra.mxu0 0
      %787 = vmatprep.subr.bf16.mxu0 0
      %788 = vmatpush1.bf16.msra.mxu0 %v772
      %789 = vmatprep.subr.bf16.mxu0 0
      %790 = vmatpush1.bf16.msra.mxu0 %v771
      %791 = vmatprep.subr.bf16.mxu0 0
      %792 = vmatpush2.bf16.msra.mxu0 0
      %793 = vmatprep.subr.bf16.mxu0 0
      %794 = vmatpush2.bf16.msra.mxu0 0
      %795 = vmatprep.subr.bf16.mxu0 0
      %796 = vmatpush2.bf16.msra.mxu0 0
      %797 = vmatprep.subr.bf16.mxu0 0
      %798 = vmatpush2.bf16.msra.mxu0 0
      %799 = vmatprep.subr.bf16.mxu0 0
      %800 = vmatpush2.bf16.msra.mxu0 0
      %801 = vmatprep.subr.bf16.mxu0 0
      %802 = vmatpush2.bf16.msra.mxu0 0
      %803 = vmatprep.subr.bf16.mxu0 0
      %804 = vmatpush2.bf16.msra.mxu0 0
      %805 = vmatprep.subr.bf16.mxu0 0
      %806 = vmatpush2.bf16.msra.mxu0 0
      %807 = vmatprep.mubr.bf16.mxu0 0
      %808 = vmatmul.mubr.bf16.gmra.mxu0 %v565
      %v809 = vpop.f32.mrf.mxu0
      %v810 = vadd.f32 %v541, %v809
      %v811 = vpop.f32.mrf.mxu0
      %v812 = vpop.f32.mrf.mxu0
      %v813 = vpop.f32.mrf.mxu0
      %814 = vdwg.mxu0
      %v819 = vunpack.c.l.b16 %v506
      %v820 = vunpack.c.l.b16 %v507
      %v821 = vunpack.c.l.b16 %v508
      %v822 = vunpack.c.l.b16 %v509
      %v823 = vpack.c.b16 %v820, %v819
      %v824 = vpack.c.b16 %v822, %v821
      %827 = vmatprep.subr.bf16.mxu0 0
      %828 = vmatpush1.bf16.msra.mxu0 0
      %829 = vmatprep.subr.bf16.mxu0 0
      %830 = vmatpush1.bf16.msra.mxu0 0
      %831 = vmatprep.subr.bf16.mxu0 0
      %832 = vmatpush1.bf16.msra.mxu0 0
      %833 = vmatprep.subr.bf16.mxu0 0
      %834 = vmatpush1.bf16.msra.mxu0 0
      %835 = vmatprep.subr.bf16.mxu0 0
      %836 = vmatpush1.bf16.msra.mxu0 0
      %837 = vmatprep.subr.bf16.mxu0 0
      %838 = vmatpush1.bf16.msra.mxu0 0
      %839 = vmatprep.subr.bf16.mxu0 0
      %840 = vmatpush1.bf16.msra.mxu0 %v824
      %841 = vmatprep.subr.bf16.mxu0 0
      %842 = vmatpush1.bf16.msra.mxu0 %v823
      %843 = vmatprep.subr.bf16.mxu0 0
      %844 = vmatpush2.bf16.msra.mxu0 0
      %845 = vmatprep.subr.bf16.mxu0 0
      %846 = vmatpush2.bf16.msra.mxu0 0
      %847 = vmatprep.subr.bf16.mxu0 0
      %848 = vmatpush2.bf16.msra.mxu0 0
      %849 = vmatprep.subr.bf16.mxu0 0
      %850 = vmatpush2.bf16.msra.mxu0 0
      %851 = vmatprep.subr.bf16.mxu0 0
      %852 = vmatpush2.bf16.msra.mxu0 0
      %853 = vmatprep.subr.bf16.mxu0 0
      %854 = vmatpush2.bf16.msra.mxu0 0
      %855 = vmatprep.subr.bf16.mxu0 0
      %856 = vmatpush2.bf16.msra.mxu0 0
      %857 = vmatprep.subr.bf16.mxu0 0
      %858 = vmatpush2.bf16.msra.mxu0 0
      %859 = vmatprep.mubr.bf16.mxu0 0
      %860 = vmatmul.mubr.bf16.gmra.mxu0 %v565
      %v861 = vpop.f32.mrf.mxu0
      %v862 = vadd.f32 %v545, %v861
      %v863 = vpop.f32.mrf.mxu0
      %v864 = vpop.f32.mrf.mxu0
      %v865 = vpop.f32.mrf.mxu0
      %866 = vdwg.mxu0
      %v867 = vpack.c.bf16 %v602, %v602
      %v868 = vpack.c.bf16 %v654, %v654
      %v869 = vpack.c.bf16 %v706, %v706
      %v870 = vpack.c.bf16 %v758, %v758
      %v871 = vpack.c.bf16 %v810, %v810
      %v872 = vpack.c.bf16 %v862, %v862
      %v874 = vlaneseq
      %v875 = vshrl.u32 %v874, 7
      %v876 = vsub.s32 0, %v875
      %v877 = vrot.slane %v484, %v876
      %vm879 = vcmask 130048
      %v881 = vsel %vm879, %v867, 0
      %v884 = vsel %vm879, %v869, 0
      %886 = vmatprep.subr.bf16.mxu0 0
      %887 = vmatpush1.bf16.xpose.msra.mxu0 0
      %888 = vmatprep.subr.bf16.mxu0 0
      %889 = vmatpush1.bf16.xpose.msra.mxu0 0
      %890 = vmatprep.subr.bf16.mxu0 0
      %891 = vmatpush1.bf16.xpose.msra.mxu0 0
      %892 = vmatprep.subr.bf16.mxu0 0
      %893 = vmatpush1.bf16.xpose.msra.mxu0 0
      %894 = vmatprep.subr.bf16.mxu0 0
      %895 = vmatpush1.bf16.xpose.msra.mxu0 0
      %896 = vmatprep.subr.bf16.mxu0 0
      %897 = vmatpush1.bf16.xpose.msra.mxu0 0
      %898 = vmatprep.subr.bf16.mxu0 0
      %899 = vmatpush1.bf16.xpose.msra.mxu0 0
      %900 = vmatprep.subr.bf16.mxu0 0
      %901 = vmatpush1.bf16.xpose.msra.mxu0 %v884
      %902 = vmatprep.subr.bf16.mxu0 0
      %903 = vmatpush2.bf16.xpose.msra.mxu0 0
      %904 = vmatprep.subr.bf16.mxu0 0
      %905 = vmatpush2.bf16.xpose.msra.mxu0 0
      %906 = vmatprep.subr.bf16.mxu0 0
      %907 = vmatpush2.bf16.xpose.msra.mxu0 0
      %908 = vmatprep.subr.bf16.mxu0 0
      %909 = vmatpush2.bf16.xpose.msra.mxu0 0
      %910 = vmatprep.subr.bf16.mxu0 0
      %911 = vmatpush2.bf16.xpose.msra.mxu0 0
      %912 = vmatprep.subr.bf16.mxu0 0
      %913 = vmatpush2.bf16.xpose.msra.mxu0 0
      %914 = vmatprep.subr.bf16.mxu0 0
      %915 = vmatpush2.bf16.xpose.msra.mxu0 0
      %916 = vmatprep.subr.bf16.mxu0 0
      %917 = vmatpush2.bf16.xpose.msra.mxu0 0
      %918 = vmatprep.mubr.bf16.mxu0 0
      %919 = vmatmul.mubr.bf16.gmra.mxu0 %v881
      %v920 = vpop.f32.mrf.mxu0
      %v921 = vadd.f32 %v877, %v920
      %v922 = vpop.f32.mrf.mxu0
      %v923 = vpop.f32.mrf.mxu0
      %v924 = vpop.f32.mrf.mxu0
      %925 = vdwg.mxu0
      %v927 = vsel %vm879, %v868, 0
      %v930 = vsel %vm879, %v870, 0
      %932 = vmatprep.subr.bf16.mxu0 0
      %933 = vmatpush1.bf16.xpose.msra.mxu0 0
      %934 = vmatprep.subr.bf16.mxu0 0
      %935 = vmatpush1.bf16.xpose.msra.mxu0 0
      %936 = vmatprep.subr.bf16.mxu0 0
      %937 = vmatpush1.bf16.xpose.msra.mxu0 0
      %938 = vmatprep.subr.bf16.mxu0 0
      %939 = vmatpush1.bf16.xpose.msra.mxu0 0
      %940 = vmatprep.subr.bf16.mxu0 0
      %941 = vmatpush1.bf16.xpose.msra.mxu0 0
      %942 = vmatprep.subr.bf16.mxu0 0
      %943 = vmatpush1.bf16.xpose.msra.mxu0 0
      %944 = vmatprep.subr.bf16.mxu0 0
      %945 = vmatpush1.bf16.xpose.msra.mxu0 0
      %946 = vmatprep.subr.bf16.mxu0 0
      %947 = vmatpush1.bf16.xpose.msra.mxu0 %v930
      %948 = vmatprep.subr.bf16.mxu0 0
      %949 = vmatpush2.bf16.xpose.msra.mxu0 0
      %950 = vmatprep.subr.bf16.mxu0 0
      %951 = vmatpush2.bf16.xpose.msra.mxu0 0
      %952 = vmatprep.subr.bf16.mxu0 0
      %953 = vmatpush2.bf16.xpose.msra.mxu0 0
      %954 = vmatprep.subr.bf16.mxu0 0
      %955 = vmatpush2.bf16.xpose.msra.mxu0 0
      %956 = vmatprep.subr.bf16.mxu0 0
      %957 = vmatpush2.bf16.xpose.msra.mxu0 0
      %958 = vmatprep.subr.bf16.mxu0 0
      %959 = vmatpush2.bf16.xpose.msra.mxu0 0
      %960 = vmatprep.subr.bf16.mxu0 0
      %961 = vmatpush2.bf16.xpose.msra.mxu0 0
      %962 = vmatprep.subr.bf16.mxu0 0
      %963 = vmatpush2.bf16.xpose.msra.mxu0 0
      %964 = vmatprep.mubr.bf16.mxu0 0
      %965 = vmatmul.mubr.bf16.gmra.mxu0 %v927
      %v966 = vpop.f32.mrf.mxu0
      %v967 = vadd.f32 %v877, %v966
      %v968 = vpop.f32.mrf.mxu0
      %v969 = vpop.f32.mrf.mxu0
      %v970 = vpop.f32.mrf.mxu0
      %971 = vdwg.mxu0
      %vm972 = vcmask 64512
      %v973 = vsel %vm972, %v921, -inf
      %974 = vmax.xlane.f32.xlu0 %v973
      %v975 = vpop.xlane.xlu0 %974
      %v976 = vsel %vm972, %v967, -inf
      %977 = vmax.xlane.f32.xlu0 %v976
      %v978 = vpop.xlane.xlu0 %977
      %v979 = vsub.f32 %v921, %v975
      %v980 = vsub.f32 %v967, %v978
      %v981 = vmul.f32 %v979, 1.442695
      %v982 = vpow.pop %v981
      %v983 = vmul.f32 %v980, 1.442695
      %v984 = vpow.pop %v983
      %v985 = vsel %vm972, %v982, 0.0
      %986 = vadd.xlane.f32.xlu0 %v985
      %v987 = vpop.xlane.xlu0 %986
      %v988 = vsel %vm972, %v984, 0.0
      %989 = vadd.xlane.f32.xlu0 %v988
      %v990 = vpop.xlane.xlu0 %989
      %v991 = vrcp.pop %v987
      %v992 = vrcp.pop %v990
      %v993 = vmul.f32 %v982, %v991
      %v994 = vmul.f32 %v984, %v992
      %v995 = vpack.c.bf16 %v993, %v993
      %v996 = vpack.c.bf16 %v994, %v994
      %v998 = vsel %vm972, %v995, 0
      %vm1000 = vcmask 1043456
      %v1002 = vsel %vm1000, %v871, 0
      %1004 = vmatprep.subr.bf16.mxu0 0
      %1005 = vmatpush1.bf16.msra.mxu0 0
      %1006 = vmatprep.subr.bf16.mxu0 0
      %1007 = vmatpush1.bf16.msra.mxu0 0
      %1008 = vmatprep.subr.bf16.mxu0 0
      %1009 = vmatpush1.bf16.msra.mxu0 0
      %1010 = vmatprep.subr.bf16.mxu0 0
      %1011 = vmatpush1.bf16.msra.mxu0 0
      %1012 = vmatprep.subr.bf16.mxu0 0
      %1013 = vmatpush1.bf16.msra.mxu0 0
      %1014 = vmatprep.subr.bf16.mxu0 0
      %1015 = vmatpush1.bf16.msra.mxu0 0
      %1016 = vmatprep.subr.bf16.mxu0 0
      %1017 = vmatpush1.bf16.msra.mxu0 0
      %1018 = vmatprep.subr.bf16.mxu0 0
      %1019 = vmatpush1.bf16.msra.mxu0 %v1002
      %1020 = vmatprep.subr.bf16.mxu0 0
      %1021 = vmatpush2.bf16.msra.mxu0 0
      %1022 = vmatprep.subr.bf16.mxu0 0
      %1023 = vmatpush2.bf16.msra.mxu0 0
      %1024 = vmatprep.subr.bf16.mxu0 0
      %1025 = vmatpush2.bf16.msra.mxu0 0
      %1026 = vmatprep.subr.bf16.mxu0 0
      %1027 = vmatpush2.bf16.msra.mxu0 0
      %1028 = vmatprep.subr.bf16.mxu0 0
      %1029 = vmatpush2.bf16.msra.mxu0 0
      %1030 = vmatprep.subr.bf16.mxu0 0
      %1031 = vmatpush2.bf16.msra.mxu0 0
      %1032 = vmatprep.subr.bf16.mxu0 0
      %1033 = vmatpush2.bf16.msra.mxu0 0
      %1034 = vmatprep.subr.bf16.mxu0 0
      %1035 = vmatpush2.bf16.msra.mxu0 0
      %1036 = vmatprep.mubr.bf16.mxu0 0
      %1037 = vmatmul.mubr.bf16.gmra.mxu0 %v998
      %v1038 = vpop.f32.mrf.mxu0
      %v1039 = vadd.f32 0.0, %v1038
      %v1040 = vpop.f32.mrf.mxu0
      %v1041 = vpop.f32.mrf.mxu0
      %v1042 = vpop.f32.mrf.mxu0
      %1043 = vdwg.mxu0
      %v1045 = vsel %vm972, %v996, 0
      %v1048 = vsel %vm1000, %v872, 0
      %1050 = vmatprep.subr.bf16.mxu0 0
      %1051 = vmatpush1.bf16.msra.mxu0 0
      %1052 = vmatprep.subr.bf16.mxu0 0
      %1053 = vmatpush1.bf16.msra.mxu0 0
      %1054 = vmatprep.subr.bf16.mxu0 0
      %1055 = vmatpush1.bf16.msra.mxu0 0
      %1056 = vmatprep.subr.bf16.mxu0 0
      %1057 = vmatpush1.bf16.msra.mxu0 0
      %1058 = vmatprep.subr.bf16.mxu0 0
      %1059 = vmatpush1.bf16.msra.mxu0 0
      %1060 = vmatprep.subr.bf16.mxu0 0
      %1061 = vmatpush1.bf16.msra.mxu0 0
      %1062 = vmatprep.subr.bf16.mxu0 0
      %1063 = vmatpush1.bf16.msra.mxu0 0
      %1064 = vmatprep.subr.bf16.mxu0 0
      %1065 = vmatpush1.bf16.msra.mxu0 %v1048
      %1066 = vmatprep.subr.bf16.mxu0 0
      %1067 = vmatpush2.bf16.msra.mxu0 0
      %1068 = vmatprep.subr.bf16.mxu0 0
      %1069 = vmatpush2.bf16.msra.mxu0 0
      %1070 = vmatprep.subr.bf16.mxu0 0
      %1071 = vmatpush2.bf16.msra.mxu0 0
      %1072 = vmatprep.subr.bf16.mxu0 0
      %1073 = vmatpush2.bf16.msra.mxu0 0
      %1074 = vmatprep.subr.bf16.mxu0 0
      %1075 = vmatpush2.bf16.msra.mxu0 0
      %1076 = vmatprep.subr.bf16.mxu0 0
      %1077 = vmatpush2.bf16.msra.mxu0 0
      %1078 = vmatprep.subr.bf16.mxu0 0
      %1079 = vmatpush2.bf16.msra.mxu0 0
      %1080 = vmatprep.subr.bf16.mxu0 0
      %1081 = vmatpush2.bf16.msra.mxu0 0
      %1082 = vmatprep.mubr.bf16.mxu0 0
      %1083 = vmatmul.mubr.bf16.gmra.mxu0 %v1045
      %v1084 = vpop.f32.mrf.mxu0
      %v1085 = vadd.f32 0.0, %v1084
      %v1086 = vpop.f32.mrf.mxu0
      %v1087 = vpop.f32.mrf.mxu0
      %v1088 = vpop.f32.mrf.mxu0
      %1089 = vdwg.mxu0
      %v1090 = vld [vmem:[%s6] sm:$0x1]
      %v1091 = vpack.c.bf16 %v1039, %v1039
      %v1092 = vld [vmem:[%s5] sm:$0xf]
      %v1093 = vld [vmem:[%s5 + $0x4] sm:$0xf]
      %v1096 = vunpack.c.l.b16 %v1092
      %v1097 = vunpack.c.l.b16 %v1093
      %v1098 = vpack.c.b16 %v1097, %v1096
      %v1101 = vsel %vm879, %v1091, 0
      %1103 = vmatprep.subr.bf16.mxu0 0
      %1104 = vmatpush1.bf16.msra.mxu0 0
      %1105 = vmatprep.subr.bf16.mxu0 0
      %1106 = vmatpush1.bf16.msra.mxu0 0
      %1107 = vmatprep.subr.bf16.mxu0 0
      %1108 = vmatpush1.bf16.msra.mxu0 0
      %1109 = vmatprep.subr.bf16.mxu0 0
      %1110 = vmatpush1.bf16.msra.mxu0 0
      %1111 = vmatprep.subr.bf16.mxu0 0
      %1112 = vmatpush1.bf16.msra.mxu0 0
      %1113 = vmatprep.subr.bf16.mxu0 0
      %1114 = vmatpush1.bf16.msra.mxu0 0
      %1115 = vmatprep.subr.bf16.mxu0 0
      %1116 = vmatpush1.bf16.msra.mxu0 0
      %1117 = vmatprep.subr.bf16.mxu0 0
      %1118 = vmatpush1.bf16.msra.mxu0 %v1098
      %1119 = vmatprep.subr.bf16.mxu0 0
      %1120 = vmatpush2.bf16.msra.mxu0 0
      %1121 = vmatprep.subr.bf16.mxu0 0
      %1122 = vmatpush2.bf16.msra.mxu0 0
      %1123 = vmatprep.subr.bf16.mxu0 0
      %1124 = vmatpush2.bf16.msra.mxu0 0
      %1125 = vmatprep.subr.bf16.mxu0 0
      %1126 = vmatpush2.bf16.msra.mxu0 0
      %1127 = vmatprep.subr.bf16.mxu0 0
      %1128 = vmatpush2.bf16.msra.mxu0 0
      %1129 = vmatprep.subr.bf16.mxu0 0
      %1130 = vmatpush2.bf16.msra.mxu0 0
      %1131 = vmatprep.subr.bf16.mxu0 0
      %1132 = vmatpush2.bf16.msra.mxu0 0
      %1133 = vmatprep.subr.bf16.mxu0 0
      %1134 = vmatpush2.bf16.msra.mxu0 0
      %1135 = vmatprep.mubr.bf16.mxu0 0
      %1136 = vmatmul.mubr.bf16.gmra.mxu0 %v1101
      %v1137 = vpop.f32.mrf.mxu0
      %v1138 = vadd.f32 0.0, %v1137
      %v1139 = vpop.f32.mrf.mxu0
      %v1140 = vpop.f32.mrf.mxu0
      %v1141 = vpop.f32.mrf.mxu0
      %1142 = vdwg.mxu0
      %v1144 = vlaneseq
      %v1145 = vshrl.u32 %v1144, 7
      %v1146 = vsub.s32 0, %v1145
      %v1147 = vrot.slane %v1090, %v1146
      %v1149 = vadd.f32 %v1147, %v1138
      %v1150 = vpack.c.bf16 %v1085, %v1085
      %s1151 = scalar_lea.vmem %s5, 8
      %v1152 = vld [vmem:[%s1151] sm:$0xf]
      %v1153 = vld [vmem:[%s1151 + $0x4] sm:$0xf]
      %v1156 = vunpack.c.l.b16 %v1152
      %v1157 = vunpack.c.l.b16 %v1153
      %v1158 = vpack.c.b16 %v1157, %v1156
      %v1161 = vsel %vm879, %v1150, 0
      %1163 = vmatprep.subr.bf16.mxu0 0
      %1164 = vmatpush1.bf16.msra.mxu0 0
      %1165 = vmatprep.subr.bf16.mxu0 0
      %1166 = vmatpush1.bf16.msra.mxu0 0
      %1167 = vmatprep.subr.bf16.mxu0 0
      %1168 = vmatpush1.bf16.msra.mxu0 0
      %1169 = vmatprep.subr.bf16.mxu0 0
      %1170 = vmatpush1.bf16.msra.mxu0 0
      %1171 = vmatprep.subr.bf16.mxu0 0
      %1172 = vmatpush1.bf16.msra.mxu0 0
      %1173 = vmatprep.subr.bf16.mxu0 0
      %1174 = vmatpush1.bf16.msra.mxu0 0
      %1175 = vmatprep.subr.bf16.mxu0 0
      %1176 = vmatpush1.bf16.msra.mxu0 0
      %1177 = vmatprep.subr.bf16.mxu0 0
      %1178 = vmatpush1.bf16.msra.mxu0 %v1158
      %1179 = vmatprep.subr.bf16.mxu0 0
      %1180 = vmatpush2.bf16.msra.mxu0 0
      %1181 = vmatprep.subr.bf16.mxu0 0
      %1182 = vmatpush2.bf16.msra.mxu0 0
      %1183 = vmatprep.subr.bf16.mxu0 0
      %1184 = vmatpush2.bf16.msra.mxu0 0
      %1185 = vmatprep.subr.bf16.mxu0 0
      %1186 = vmatpush2.bf16.msra.mxu0 0
      %1187 = vmatprep.subr.bf16.mxu0 0
      %1188 = vmatpush2.bf16.msra.mxu0 0
      %1189 = vmatprep.subr.bf16.mxu0 0
      %1190 = vmatpush2.bf16.msra.mxu0 0
      %1191 = vmatprep.subr.bf16.mxu0 0
      %1192 = vmatpush2.bf16.msra.mxu0 0
      %1193 = vmatprep.subr.bf16.mxu0 0
      %1194 = vmatpush2.bf16.msra.mxu0 0
      %1195 = vmatprep.mubr.bf16.mxu0 0
      %1196 = vmatmul.mubr.bf16.gmra.mxu0 %v1161
      %v1197 = vpop.f32.mrf.mxu0
      %v1198 = vadd.f32 0.0, %v1197
      %v1199 = vpop.f32.mrf.mxu0
      %v1200 = vpop.f32.mrf.mxu0
      %v1201 = vpop.f32.mrf.mxu0
      %1202 = vdwg.mxu0
      %v1203 = vadd.f32 %v1149, %v1198
      %v1204 = vadd.f32 %v1203, %v483
      %s1205 = scalar_lea.vmem %s6, 1
      %v1206 = vld [vmem:[%s1205] sm:$0x1]
      %s1207 = scalar_lea.vmem %s6, 2
      %v1208 = vld [vmem:[%s1207] sm:$0x1]
      %v1209 = vsel %vm455, %v1204, 0.0
      %1210 = vadd.xlane.f32.xlu0 %v1209
      %v1211 = vpop.xlane.xlu0 %1210
      %v1212 = vmul.f32 %v1211, %v459
      %v1213 = vsub.f32 %v1204, %v1212
      %v1214 = vmul.f32 %v1213, %v1213
      %v1215 = vsel %vm455, %v1214, 0.0
      %1216 = vadd.xlane.f32.xlu0 %v1215
      %v1217 = vpop.xlane.xlu0 %1216
      %v1218 = vmul.f32 %v1217, %v459
      %v1219 = vadd.f32 %v1218, 1e-12
      %v1220 = vrsqrt.pop %v1219
      %v1221 = vmul.f32 %v1213, %v1220
      %v1223 = vlaneseq
      %v1224 = vshrl.u32 %v1223, 7
      %v1225 = vsub.s32 0, %v1224
      %v1226 = vrot.slane %v1206, %v1225
      %v1228 = vmul.f32 %v1221, %v1226
      %v1230 = vlaneseq
      %v1231 = vshrl.u32 %v1230, 7
      %v1232 = vsub.s32 0, %v1231
      %v1233 = vrot.slane %v1208, %v1232
      %v1235 = vadd.f32 %v1228, %v1233
      %v1236 = vpack.c.bf16 %v1235, %v1235
      %v1237 = vld [vmem:[%s7] sm:$0xf]
      %v1238 = vld [vmem:[%s7 + $0x4] sm:$0xf]
      %v1239 = vld [vmem:[%s7 + $0x8] sm:$0xf]
      %v1240 = vld [vmem:[%s7 + $0xc] sm:$0xf]
      %v1241 = vld [vmem:[%s8] sm:$0x1]
      %v1243 = vlaneseq
      %v1244 = vshrl.u32 %v1243, 7
      %v1245 = vsub.s32 0, %v1244
      %v1246 = vrot.slane %v1241, %v1245
      %v1252 = vunpack.c.l.b16 %v1237
      %v1253 = vunpack.c.l.b16 %v1238
      %v1254 = vunpack.c.l.b16 %v1239
      %v1255 = vunpack.c.l.b16 %v1240
      %v1256 = vpack.c.b16 %v1253, %v1252
      %v1257 = vpack.c.b16 %v1255, %v1254
      %v1261 = vsel %vm455, %v1236, 0
      %1263 = vmatprep.subr.bf16.mxu0 0
      %1264 = vmatpush1.bf16.msra.mxu0 0
      %1265 = vmatprep.subr.bf16.mxu0 0
      %1266 = vmatpush1.bf16.msra.mxu0 0
      %1267 = vmatprep.subr.bf16.mxu0 0
      %1268 = vmatpush1.bf16.msra.mxu0 0
      %1269 = vmatprep.subr.bf16.mxu0 0
      %1270 = vmatpush1.bf16.msra.mxu0 0
      %1271 = vmatprep.subr.bf16.mxu0 0
      %1272 = vmatpush1.bf16.msra.mxu0 0
      %1273 = vmatprep.subr.bf16.mxu0 0
      %1274 = vmatpush1.bf16.msra.mxu0 0
      %1275 = vmatprep.subr.bf16.mxu0 0
      %1276 = vmatpush1.bf16.msra.mxu0 %v1257
      %1277 = vmatprep.subr.bf16.mxu0 0
      %1278 = vmatpush1.bf16.msra.mxu0 %v1256
      %1279 = vmatprep.subr.bf16.mxu0 0
      %1280 = vmatpush2.bf16.msra.mxu0 0
      %1281 = vmatprep.subr.bf16.mxu0 0
      %1282 = vmatpush2.bf16.msra.mxu0 0
      %1283 = vmatprep.subr.bf16.mxu0 0
      %1284 = vmatpush2.bf16.msra.mxu0 0
      %1285 = vmatprep.subr.bf16.mxu0 0
      %1286 = vmatpush2.bf16.msra.mxu0 0
      %1287 = vmatprep.subr.bf16.mxu0 0
      %1288 = vmatpush2.bf16.msra.mxu0 0
      %1289 = vmatprep.subr.bf16.mxu0 0
      %1290 = vmatpush2.bf16.msra.mxu0 0
      %1291 = vmatprep.subr.bf16.mxu0 0
      %1292 = vmatpush2.bf16.msra.mxu0 0
      %1293 = vmatprep.subr.bf16.mxu0 0
      %1294 = vmatpush2.bf16.msra.mxu0 0
      %1295 = vmatprep.mubr.bf16.mxu0 0
      %1296 = vmatmul.mubr.bf16.gmra.mxu0 %v1261
      %v1297 = vpop.f32.mrf.mxu0
      %v1298 = vadd.f32 %v1246, %v1297
      %v1299 = vpop.f32.mrf.mxu0
      %v1300 = vpop.f32.mrf.mxu0
      %v1301 = vpop.f32.mrf.mxu0
      %1302 = vdwg.mxu0
      %v1303 = vmul.f32 %v1298, %v1298
      %v1304 = vmul.f32 %v1298, %v1303
      %v1305 = vmul.f32 %v1304, 0.044715
      %v1306 = vadd.f32 %v1298, %v1305
      %v1307 = vmul.f32 %v1306, 0.7978846
      %v1308 = vtanh.pop %v1307
      %v1309 = vadd.f32 %v1308, 1.0
      %v1310 = vmul.f32 %v1309, 0.5
      %v1311 = vmul.f32 %v1298, %v1310
      %v1312 = vpack.c.bf16 %v1311, %v1311
      %v1313 = vld [vmem:[%s9] sm:$0xf]
      %v1314 = vld [vmem:[%s9 + $0x4] sm:$0xf]
      %v1315 = vld [vmem:[%s9 + $0x8] sm:$0xf]
      %v1316 = vld [vmem:[%s9 + $0xc] sm:$0xf]
      %v1317 = vld [vmem:[%s9 + $0x10] sm:$0xf]
      %v1318 = vld [vmem:[%s9 + $0x14] sm:$0xf]
      %v1319 = vld [vmem:[%s9 + $0x18] sm:$0xf]
      %v1320 = vld [vmem:[%s9 + $0x1c] sm:$0xf]
      %s1321 = scalar_lea.vmem %s6, 3
      %v1322 = vld [vmem:[%s1321] sm:$0x1]
      %v1324 = vlaneseq
      %v1325 = vshrl.u32 %v1324, 7
      %v1326 = vsub.s32 0, %v1325
      %v1327 = vrot.slane %v1322, %v1326
      %v1337 = vunpack.c.l.b16 %v1313
      %v1338 = vunpack.c.l.b16 %v1314
      %v1339 = vunpack.c.l.b16 %v1315
      %v1340 = vunpack.c.l.b16 %v1316
      %v1341 = vunpack.c.l.b16 %v1317
      %v1342 = vunpack.c.l.b16 %v1318
      %v1343 = vunpack.c.l.b16 %v1319
      %v1344 = vunpack.c.l.b16 %v1320
      %v1345 = vpack.c.b16 %v1338, %v1337
      %v1346 = vpack.c.b16 %v1340, %v1339
      %v1347 = vpack.c.b16 %v1342, %v1341
      %v1348 = vpack.c.b16 %v1344, %v1343
      %vm1353 = vcmask 523264
      %v1355 = vsel %vm1353, %v1312, 0
      %1357 = vmatprep.subr.bf16.mxu0 0
      %1358 = vmatpush1.bf16.msra.mxu0 0
      %1359 = vmatprep.subr.bf16.mxu0 0
      %1360 = vmatpush1.bf16.msra.mxu0 0
      %1361 = vmatprep.subr.bf16.mxu0 0
      %1362 = vmatpush1.bf16.msra.mxu0 0
      %1363 = vmatprep.subr.bf16.mxu0 0
      %1364 = vmatpush1.bf16.msra.mxu0 0
      %1365 = vmatprep.subr.bf16.mxu0 0
      %1366 = vmatpush1.bf16.msra.mxu0 %v1348
      %1367 = vmatprep.subr.bf16.mxu0 0
      %1368 = vmatpush1.bf16.msra.mxu0 %v1347
      %1369 = vmatprep.subr.bf16.mxu0 0
      %1370 = vmatpush1.bf16.msra.mxu0 %v1346
      %1371 = vmatprep.subr.bf16.mxu0 0
      %1372 = vmatpush1.bf16.msra.mxu0 %v1345
      %1373 = vmatprep.subr.bf16.mxu0 0
      %1374 = vmatpush2.bf16.msra.mxu0 0
      %1375 = vmatprep.subr.bf16.mxu0 0
      %1376 = vmatpush2.bf16.msra.mxu0 0
      %1377 = vmatprep.subr.bf16.mxu0 0
      %1378 = vmatpush2.bf16.msra.mxu0 0
      %1379 = vmatprep.subr.bf16.mxu0 0
      %1380 = vmatpush2.bf16.msra.mxu0 0
      %1381 = vmatprep.subr.bf16.mxu0 0
      %1382 = vmatpush2.bf16.msra.mxu0 0
      %1383 = vmatprep.subr.bf16.mxu0 0
      %1384 = vmatpush2.bf16.msra.mxu0 0
      %1385 = vmatprep.subr.bf16.mxu0 0
      %1386 = vmatpush2.bf16.msra.mxu0 0
      %1387 = vmatprep.subr.bf16.mxu0 0
      %1388 = vmatpush2.bf16.msra.mxu0 0
      %1389 = vmatprep.mubr.bf16.mxu0 0
      %1390 = vmatmul.mubr.bf16.gmra.mxu0 %v1355
      %v1391 = vpop.f32.mrf.mxu0
      %v1392 = vadd.f32 %v1327, %v1391
      %v1393 = vpop.f32.mrf.mxu0
      %v1394 = vpop.f32.mrf.mxu0
      %v1395 = vpop.f32.mrf.mxu0
      %1396 = vdwg.mxu0
      %v1397 = vadd.f32 %v1392, %v1235
      %s1398 = scalar_lea.vmem %s6, 4
      %v1399 = vld [vmem:[%s1398] sm:$0x1]
      %s1400 = scalar_lea.vmem %s6, 5
      %v1401 = vld [vmem:[%s1400] sm:$0x1]
      %v1402 = vsel %vm455, %v1397, 0.0
      %1403 = vadd.xlane.f32.xlu0 %v1402
      %v1404 = vpop.xlane.xlu0 %1403
      %v1405 = vmul.f32 %v1404, %v459
      %v1406 = vsub.f32 %v1397, %v1405
      %v1407 = vmul.f32 %v1406, %v1406
      %v1408 = vsel %vm455, %v1407, 0.0
      %1409 = vadd.xlane.f32.xlu0 %v1408
      %v1410 = vpop.xlane.xlu0 %1409
      %v1411 = vmul.f32 %v1410, %v459
      %v1412 = vadd.f32 %v1411, 1e-12
      %v1413 = vrsqrt.pop %v1412
      %v1414 = vmul.f32 %v1406, %v1413
      %v1416 = vlaneseq
      %v1417 = vshrl.u32 %v1416, 7
      %v1418 = vsub.s32 0, %v1417
      %v1419 = vrot.slane %v1399, %v1418
      %v1421 = vmul.f32 %v1414, %v1419
      %v1423 = vlaneseq
      %v1424 = vshrl.u32 %v1423, 7
      %v1425 = vsub.s32 0, %v1424
      %v1426 = vrot.slane %v1401, %v1425
      %v1428 = vadd.f32 %v1421, %v1426
      %v1429 = vpack.c.bf16 %v1428, %v1428
      %s1430 = scalar_lea.vmem %s3, 96
      %v1431 = vld [vmem:[%s1430] sm:$0xf]
      %v1432 = vld [vmem:[%s1430 + $0x4] sm:$0xf]
      %v1433 = vld [vmem:[%s1430 + $0x8] sm:$0xf]
      %v1434 = vld [vmem:[%s1430 + $0xc] sm:$0xf]
      %v1435 = vld [vmem:[%s1430 + $0x10] sm:$0xf]
      %v1436 = vld [vmem:[%s1430 + $0x14] sm:$0xf]
      %v1437 = vld [vmem:[%s1430 + $0x18] sm:$0xf]
      %v1438 = vld [vmem:[%s1430 + $0x1c] sm:$0xf]
      %v1439 = vld [vmem:[%s1430 + $0x20] sm:$0xf]
      %v1440 = vld [vmem:[%s1430 + $0x24] sm:$0xf]
      %v1441 = vld [vmem:[%s1430 + $0x28] sm:$0xf]
      %v1442 = vld [vmem:[%s1430 + $0x2c] sm:$0xf]
      %v1443 = vld [vmem:[%s1430 + $0x30] sm:$0xf]
      %v1444 = vld [vmem:[%s1430 + $0x34] sm:$0xf]
      %v1445 = vld [vmem:[%s1430 + $0x38] sm:$0xf]
      %v1446 = vld [vmem:[%s1430 + $0x3c] sm:$0xf]
      %v1447 = vld [vmem:[%s1430 + $0x40] sm:$0xf]
      %v1448 = vld [vmem:[%s1430 + $0x44] sm:$0xf]
      %v1449 = vld [vmem:[%s1430 + $0x48] sm:$0xf]
      %v1450 = vld [vmem:[%s1430 + $0x4c] sm:$0xf]
      %v1451 = vld [vmem:[%s1430 + $0x50] sm:$0xf]
      %v1452 = vld [vmem:[%s1430 + $0x54] sm:$0xf]
      %v1453 = vld [vmem:[%s1430 + $0x58] sm:$0xf]
      %v1454 = vld [vmem:[%s1430 + $0x5c] sm:$0xf]
      %s1455 = scalar_lea.vmem %s4, 6
      %v1456 = vld [vmem:[%s1455] sm:$0x1]
      %v1457 = vld [vmem:[%s1455 + $0x1] sm:$0x1]
      %v1458 = vld [vmem:[%s1455 + $0x2] sm:$0x1]
      %v1459 = vld [vmem:[%s1455 + $0x3] sm:$0x1]
      %v1460 = vld [vmem:[%s1455 + $0x4] sm:$0x1]
      %v1461 = vld [vmem:[%s1455 + $0x5] sm:$0x1]
      %v1468 = vlaneseq
      %v1469 = vshrl.u32 %v1468, 7
      %v1470 = vsub.s32 0, %v1469
      %v1471 = vrot.slane %v1456, %v1470
      %v1472 = vlaneseq
      %v1473 = vshrl.u32 %v1472, 7
      %v1474 = vsub.s32 0, %v1473
      %v1475 = vrot.slane %v1457, %v1474
      %v1476 = vlaneseq
      %v1477 = vshrl.u32 %v1476, 7
      %v1478 = vsub.s32 0, %v1477
      %v1479 = vrot.slane %v1458, %v1478
      %v1480 = vlaneseq
      %v1481 = vshrl.u32 %v1480, 7
      %v1482 = vsub.s32 0, %v1481
      %v1483 = vrot.slane %v1459, %v1482
      %v1484 = vlaneseq
      %v1485 = vshrl.u32 %v1484, 7
      %v1486 = vsub.s32 0, %v1485
      %v1487 = vrot.slane %v1460, %v1486
      %v1488 = vlaneseq
      %v1489 = vshrl.u32 %v1488, 7
      %v1490 = vsub.s32 0, %v1489
      %v1491 = vrot.slane %v1461, %v1490
      %v1502 = vunpack.c.l.b16 %v1431
      %v1503 = vunpack.c.l.b16 %v1432
      %v1504 = vunpack.c.l.b16 %v1433
      %v1505 = vunpack.c.l.b16 %v1434
      %v1506 = vpack.c.b16 %v1503, %v1502
      %v1507 = vpack.c.b16 %v1505, %v1504
      %v1511 = vsel %vm455, %v1429, 0
      %1513 = vmatprep.subr.bf16.mxu0 0
      %1514 = vmatpush1.bf16.msra.mxu0 0
      %1515 = vmatprep.subr.bf16.mxu0 0
      %1516 = vmatpush1.bf16.msra.mxu0 0
      %1517 = vmatprep.subr.bf16.mxu0 0
      %1518 = vmatpush1.bf16.msra.mxu0 0
      %1519 = vmatprep.subr.bf16.mxu0 0
      %1520 = vmatpush1.bf16.msra.mxu0 0
      %1521 = vmatprep.subr.bf16.mxu0 0
      %1522 = vmatpush1.bf16.msra.mxu0 0
      %1523 = vmatprep.subr.bf16.mxu0 0
      %1524 = vmatpush1.bf16.msra.mxu0 0
      %1525 = vmatprep.subr.bf16.mxu0 0
      %1526 = vmatpush1.bf16.msra.mxu0 %v1507
      %1527 = vmatprep.subr.bf16.mxu0 0
      %1528 = vmatpush1.bf16.msra.mxu0 %v1506
      %1529 = vmatprep.subr.bf16.mxu0 0
      %1530 = vmatpush2.bf16.msra.mxu0 0
      %1531 = vmatprep.subr.bf16.mxu0 0
      %1532 = vmatpush2.bf16.msra.mxu0 0
      %1533 = vmatprep.subr.bf16.mxu0 0
      %1534 = vmatpush2.bf16.msra.mxu0 0
      %1535 = vmatprep.subr.bf16.mxu0 0
      %1536 = vmatpush2.bf16.msra.mxu0 0
      %1537 = vmatprep.subr.bf16.mxu0 0
      %1538 = vmatpush2.bf16.msra.mxu0 0
      %1539 = vmatprep.subr.bf16.mxu0 0
      %1540 = vmatpush2.bf16.msra.mxu0 0
      %1541 = vmatprep.subr.bf16.mxu0 0
      %1542 = vmatpush2.bf16.msra.mxu0 0
      %1543 = vmatprep.subr.bf16.mxu0 0
      %1544 = vmatpush2.bf16.msra.mxu0 0
      %1545 = vmatprep.mubr.bf16.mxu0 0
      %1546 = vmatmul.mubr.bf16.gmra.mxu0 %v1511
      %v1547 = vpop.f32.mrf.mxu0
      %v1548 = vadd.f32 %v1471, %v1547
      %v1549 = vpop.f32.mrf.mxu0
      %v1550 = vpop.f32.mrf.mxu0
      %v1551 = vpop.f32.mrf.mxu0
      %1552 = vdwg.mxu0
      %v1557 = vunpack.c.l.b16 %v1435
      %v1558 = vunpack.c.l.b16 %v1436
      %v1559 = vunpack.c.l.b16 %v1437
      %v1560 = vunpack.c.l.b16 %v1438
      %v1561 = vpack.c.b16 %v1558, %v1557
      %v1562 = vpack.c.b16 %v1560, %v1559
      %1565 = vmatprep.subr.bf16.mxu0 0
      %1566 = vmatpush1.bf16.msra.mxu0 0
      %1567 = vmatprep.subr.bf16.mxu0 0
      %1568 = vmatpush1.bf16.msra.mxu0 0
      %1569 = vmatprep.subr.bf16.mxu0 0
      %1570 = vmatpush1.bf16.msra.mxu0 0
      %1571 = vmatprep.subr.bf16.mxu0 0
      %1572 = vmatpush1.bf16.msra.mxu0 0
      %1573 = vmatprep.subr.bf16.mxu0 0
      %1574 = vmatpush1.bf16.msra.mxu0 0
      %1575 = vmatprep.subr.bf16.mxu0 0
      %1576 = vmatpush1.bf16.msra.mxu0 0
      %1577 = vmatprep.subr.bf16.mxu0 0
      %1578 = vmatpush1.bf16.msra.mxu0 %v1562
      %1579 = vmatprep.subr.bf16.mxu0 0
      %1580 = vmatpush1.bf16.msra.mxu0 %v1561
      %1581 = vmatprep.subr.bf16.mxu0 0
      %1582 = vmatpush2.bf16.msra.mxu0 0
      %1583 = vmatprep.subr.bf16.mxu0 0
      %1584 = vmatpush2.bf16.msra.mxu0 0
      %1585 = vmatprep.subr.bf16.mxu0 0
      %1586 = vmatpush2.bf16.msra.mxu0 0
      %1587 = vmatprep.subr.bf16.mxu0 0
      %1588 = vmatpush2.bf16.msra.mxu0 0
      %1589 = vmatprep.subr.bf16.mxu0 0
      %1590 = vmatpush2.bf16.msra.mxu0 0
      %1591 = vmatprep.subr.bf16.mxu0 0
      %1592 = vmatpush2.bf16.msra.mxu0 0
      %1593 = vmatprep.subr.bf16.mxu0 0
      %1594 = vmatpush2.bf16.msra.mxu0 0
      %1595 = vmatprep.subr.bf16.mxu0 0
      %1596 = vmatpush2.bf16.msra.mxu0 0
      %1597 = vmatprep.mubr.bf16.mxu0 0
      %1598 = vmatmul.mubr.bf16.gmra.mxu0 %v1511
      %v1599 = vpop.f32.mrf.mxu0
      %v1600 = vadd.f32 %v1475, %v1599
      %v1601 = vpop.f32.mrf.mxu0
      %v1602 = vpop.f32.mrf.mxu0
      %v1603 = vpop.f32.mrf.mxu0
      %1604 = vdwg.mxu0
      %v1609 = vunpack.c.l.b16 %v1439
      %v1610 = vunpack.c.l.b16 %v1440
      %v1611 = vunpack.c.l.b16 %v1441
      %v1612 = vunpack.c.l.b16 %v1442
      %v1613 = vpack.c.b16 %v1610, %v1609
      %v1614 = vpack.c.b16 %v1612, %v1611
      %1617 = vmatprep.subr.bf16.mxu0 0
      %1618 = vmatpush1.bf16.msra.mxu0 0
      %1619 = vmatprep.subr.bf16.mxu0 0
      %1620 = vmatpush1.bf16.msra.mxu0 0
      %1621 = vmatprep.subr.bf16.mxu0 0
      %1622 = vmatpush1.bf16.msra.mxu0 0
      %1623 = vmatprep.subr.bf16.mxu0 0
      %1624 = vmatpush1.bf16.msra.mxu0 0
      %1625 = vmatprep.subr.bf16.mxu0 0
      %1626 = vmatpush1.bf16.msra.mxu0 0
      %1627 = vmatprep.subr.bf16.mxu0 0
      %1628 = vmatpush1.bf16.msra.mxu0 0
      %1629 = vmatprep.subr.bf16.mxu0 0
      %1630 = vmatpush1.bf16.msra.mxu0 %v1614
      %1631 = vmatprep.subr.bf16.mxu0 0
      %1632 = vmatpush1.bf16.msra.mxu0 %v1613
      %1633 = vmatprep.subr.bf16.mxu0 0
      %1634 = vmatpush2.bf16.msra.mxu0 0
      %1635 = vmatprep.subr.bf16.mxu0 0
      %1636 = vmatpush2.bf16.msra.mxu0 0
      %1637 = vmatprep.subr.bf16.mxu0 0
      %1638 = vmatpush2.bf16.msra.mxu0 0
      %1639 = vmatprep.subr.bf16.mxu0 0
      %1640 = vmatpush2.bf16.msra.mxu0 0
      %1641 = vmatprep.subr.bf16.mxu0 0
      %1642 = vmatpush2.bf16.msra.mxu0 0
      %1643 = vmatprep.subr.bf16.mxu0 0
      %1644 = vmatpush2.bf16.msra.mxu0 0
      %1645 = vmatprep.subr.bf16.mxu0 0
      %1646 = vmatpush2.bf16.msra.mxu0 0
      %1647 = vmatprep.subr.bf16.mxu0 0
      %1648 = vmatpush2.bf16.msra.mxu0 0
      %1649 = vmatprep.mubr.bf16.mxu0 0
      %1650 = vmatmul.mubr.bf16.gmra.mxu0 %v1511
      %v1651 = vpop.f32.mrf.mxu0
      %v1652 = vadd.f32 %v1479, %v1651
      %v1653 = vpop.f32.mrf.mxu0
      %v1654 = vpop.f32.mrf.mxu0
      %v1655 = vpop.f32.mrf.mxu0
      %1656 = vdwg.mxu0
      %v1661 = vunpack.c.l.b16 %v1443
      %v1662 = vunpack.c.l.b16 %v1444
      %v1663 = vunpack.c.l.b16 %v1445
      %v1664 = vunpack.c.l.b16 %v1446
      %v1665 = vpack.c.b16 %v1662, %v1661
      %v1666 = vpack.c.b16 %v1664, %v1663
      %1669 = vmatprep.subr.bf16.mxu0 0
      %1670 = vmatpush1.bf16.msra.mxu0 0
      %1671 = vmatprep.subr.bf16.mxu0 0
      %1672 = vmatpush1.bf16.msra.mxu0 0
      %1673 = vmatprep.subr.bf16.mxu0 0
      %1674 = vmatpush1.bf16.msra.mxu0 0
      %1675 = vmatprep.subr.bf16.mxu0 0
      %1676 = vmatpush1.bf16.msra.mxu0 0
      %1677 = vmatprep.subr.bf16.mxu0 0
      %1678 = vmatpush1.bf16.msra.mxu0 0
      %1679 = vmatprep.subr.bf16.mxu0 0
      %1680 = vmatpush1.bf16.msra.mxu0 0
      %1681 = vmatprep.subr.bf16.mxu0 0
      %1682 = vmatpush1.bf16.msra.mxu0 %v1666
      %1683 = vmatprep.subr.bf16.mxu0 0
      %1684 = vmatpush1.bf16.msra.mxu0 %v1665
      %1685 = vmatprep.subr.bf16.mxu0 0
      %1686 = vmatpush2.bf16.msra.mxu0 0
      %1687 = vmatprep.subr.bf16.mxu0 0
      %1688 = vmatpush2.bf16.msra.mxu0 0
      %1689 = vmatprep.subr.bf16.mxu0 0
      %1690 = vmatpush2.bf16.msra.mxu0 0
      %1691 = vmatprep.subr.bf16.mxu0 0
      %1692 = vmatpush2.bf16.msra.mxu0 0
      %1693 = vmatprep.subr.bf16.mxu0 0
      %1694 = vmatpush2.bf16.msra.mxu0 0
      %1695 = vmatprep.subr.bf16.mxu0 0
      %1696 = vmatpush2.bf16.msra.mxu0 0
      %1697 = vmatprep.subr.bf16.mxu0 0
      %1698 = vmatpush2.bf16.msra.mxu0 0
      %1699 = vmatprep.subr.bf16.mxu0 0
      %1700 = vmatpush2.bf16.msra.mxu0 0
      %1701 = vmatprep.mubr.bf16.mxu0 0
      %1702 = vmatmul.mubr.bf16.gmra.mxu0 %v1511
      %v1703 = vpop.f32.mrf.mxu0
      %v1704 = vadd.f32 %v1483, %v1703
      %v1705 = vpop.f32.mrf.mxu0
      %v1706 = vpop.f32.mrf.mxu0
      %v1707 = vpop.f32.mrf.mxu0
      %1708 = vdwg.mxu0
      %v1713 = vunpack.c.l.b16 %v1447
      %v1714 = vunpack.c.l.b16 %v1448
      %v1715 = vunpack.c.l.b16 %v1449
      %v1716 = vunpack.c.l.b16 %v1450
      %v1717 = vpack.c.b16 %v1714, %v1713
      %v1718 = vpack.c.b16 %v1716, %v1715
      %1721 = vmatprep.subr.bf16.mxu0 0
      %1722 = vmatpush1.bf16.msra.mxu0 0
      %1723 = vmatprep.subr.bf16.mxu0 0
      %1724 = vmatpush1.bf16.msra.mxu0 0
      %1725 = vmatprep.subr.bf16.mxu0 0
      %1726 = vmatpush1.bf16.msra.mxu0 0
      %1727 = vmatprep.subr.bf16.mxu0 0
      %1728 = vmatpush1.bf16.msra.mxu0 0
      %1729 = vmatprep.subr.bf16.mxu0 0
      %1730 = vmatpush1.bf16.msra.mxu0 0
      %1731 = vmatprep.subr.bf16.mxu0 0
      %1732 = vmatpush1.bf16.msra.mxu0 0
      %1733 = vmatprep.subr.bf16.mxu0 0
      %1734 = vmatpush1.bf16.msra.mxu0 %v1718
      %1735 = vmatprep.subr.bf16.mxu0 0
      %1736 = vmatpush1.bf16.msra.mxu0 %v1717
      %1737 = vmatprep.subr.bf16.mxu0 0
      %1738 = vmatpush2.bf16.msra.mxu0 0
      %1739 = vmatprep.subr.bf16.mxu0 0
      %1740 = vmatpush2.bf16.msra.mxu0 0
      %1741 = vmatprep.subr.bf16.mxu0 0
      %1742 = vmatpush2.bf16.msra.mxu0 0
      %1743 = vmatprep.subr.bf16.mxu0 0
      %1744 = vmatpush2.bf16.msra.mxu0 0
      %1745 = vmatprep.subr.bf16.mxu0 0
      %1746 = vmatpush2.bf16.msra.mxu0 0
      %1747 = vmatprep.subr.bf16.mxu0 0
      %1748 = vmatpush2.bf16.msra.mxu0 0
      %1749 = vmatprep.subr.bf16.mxu0 0
      %1750 = vmatpush2.bf16.msra.mxu0 0
      %1751 = vmatprep.subr.bf16.mxu0 0
      %1752 = vmatpush2.bf16.msra.mxu0 0
      %1753 = vmatprep.mubr.bf16.mxu0 0
      %1754 = vmatmul.mubr.bf16.gmra.mxu0 %v1511
      %v1755 = vpop.f32.mrf.mxu0
      %v1756 = vadd.f32 %v1487, %v1755
      %v1757 = vpop.f32.mrf.mxu0
      %v1758 = vpop.f32.mrf.mxu0
      %v1759 = vpop.f32.mrf.mxu0
      %1760 = vdwg.mxu0
      %v1765 = vunpack.c.l.b16 %v1451
      %v1766 = vunpack.c.l.b16 %v1452
      %v1767 = vunpack.c.l.b16 %v1453
      %v1768 = vunpack.c.l.b16 %v1454
      %v1769 = vpack.c.b16 %v1766, %v1765
      %v1770 = vpack.c.b16 %v1768, %v1767
      %1773 = vmatprep.subr.bf16.mxu0 0
      %1774 = vmatpush1.bf16.msra.mxu0 0
      %1775 = vmatprep.subr.bf16.mxu0 0
      %1776 = vmatpush1.bf16.msra.mxu0 0
      %1777 = vmatprep.subr.bf16.mxu0 0
      %1778 = vmatpush1.bf16.msra.mxu0 0
      %1779 = vmatprep.subr.bf16.mxu0 0
      %1780 = vmatpush1.bf16.msra.mxu0 0
      %1781 = vmatprep.subr.bf16.mxu0 0
      %1782 = vmatpush1.bf16.msra.mxu0 0
      %1783 = vmatprep.subr.bf16.mxu0 0
      %1784 = vmatpush1.bf16.msra.mxu0 0
      %1785 = vmatprep.subr.bf16.mxu0 0
      %1786 = vmatpush1.bf16.msra.mxu0 %v1770
      %1787 = vmatprep.subr.bf16.mxu0 0
      %1788 = vmatpush1.bf16.msra.mxu0 %v1769
      %1789 = vmatprep.subr.bf16.mxu0 0
      %1790 = vmatpush2.bf16.msra.mxu0 0
      %1791 = vmatprep.subr.bf16.mxu0 0
      %1792 = vmatpush2.bf16.msra.mxu0 0
      %1793 = vmatprep.subr.bf16.mxu0 0
      %1794 = vmatpush2.bf16.msra.mxu0 0
      %1795 = vmatprep.subr.bf16.mxu0 0
      %1796 = vmatpush2.bf16.msra.mxu0 0
      %1797 = vmatprep.subr.bf16.mxu0 0
      %1798 = vmatpush2.bf16.msra.mxu0 0
      %1799 = vmatprep.subr.bf16.mxu0 0
      %1800 = vmatpush2.bf16.msra.mxu0 0
      %1801 = vmatprep.subr.bf16.mxu0 0
      %1802 = vmatpush2.bf16.msra.mxu0 0
      %1803 = vmatprep.subr.bf16.mxu0 0
      %1804 = vmatpush2.bf16.msra.mxu0 0
      %1805 = vmatprep.mubr.bf16.mxu0 0
      %1806 = vmatmul.mubr.bf16.gmra.mxu0 %v1511
      %v1807 = vpop.f32.mrf.mxu0
      %v1808 = vadd.f32 %v1491, %v1807
      %v1809 = vpop.f32.mrf.mxu0
      %v1810 = vpop.f32.mrf.mxu0
      %v1811 = vpop.f32.mrf.mxu0
      %1812 = vdwg.mxu0
      %v1813 = vpack.c.bf16 %v1548, %v1548
      %v1814 = vpack.c.bf16 %v1600, %v1600
      %v1815 = vpack.c.bf16 %v1652, %v1652
      %v1816 = vpack.c.bf16 %v1704, %v1704
      %v1817 = vpack.c.bf16 %v1756, %v1756
      %v1818 = vpack.c.bf16 %v1808, %v1808
      %v1820 = vsel %vm879, %v1813, 0
      %v1823 = vsel %vm879, %v1815, 0
      %1825 = vmatprep.subr.bf16.mxu0 0
      %1826 = vmatpush1.bf16.xpose.msra.mxu0 0
      %1827 = vmatprep.subr.bf16.mxu0 0
      %1828 = vmatpush1.bf16.xpose.msra.mxu0 0
      %1829 = vmatprep.subr.bf16.mxu0 0
      %1830 = vmatpush1.bf16.xpose.msra.mxu0 0
      %1831 = vmatprep.subr.bf16.mxu0 0
      %1832 = vmatpush1.bf16.xpose.msra.mxu0 0
      %1833 = vmatprep.subr.bf16.mxu0 0
      %1834 = vmatpush1.bf16.xpose.msra.mxu0 0
      %1835 = vmatprep.subr.bf16.mxu0 0
      %1836 = vmatpush1.bf16.xpose.msra.mxu0 0
      %1837 = vmatprep.subr.bf16.mxu0 0
      %1838 = vmatpush1.bf16.xpose.msra.mxu0 0
      %1839 = vmatprep.subr.bf16.mxu0 0
      %1840 = vmatpush1.bf16.xpose.msra.mxu0 %v1823
      %1841 = vmatprep.subr.bf16.mxu0 0
      %1842 = vmatpush2.bf16.xpose.msra.mxu0 0
      %1843 = vmatprep.subr.bf16.mxu0 0
      %1844 = vmatpush2.bf16.xpose.msra.mxu0 0
      %1845 = vmatprep.subr.bf16.mxu0 0
      %1846 = vmatpush2.bf16.xpose.msra.mxu0 0
      %1847 = vmatprep.subr.bf16.mxu0 0
      %1848 = vmatpush2.bf16.xpose.msra.mxu0 0
      %1849 = vmatprep.subr.bf16.mxu0 0
      %1850 = vmatpush2.bf16.xpose.msra.mxu0 0
      %1851 = vmatprep.subr.bf16.mxu0 0
      %1852 = vmatpush2.bf16.xpose.msra.mxu0 0
      %1853 = vmatprep.subr.bf16.mxu0 0
      %1854 = vmatpush2.bf16.xpose.msra.mxu0 0
      %1855 = vmatprep.subr.bf16.mxu0 0
      %1856 = vmatpush2.bf16.xpose.msra.mxu0 0
      %1857 = vmatprep.mubr.bf16.mxu0 0
      %1858 = vmatmul.mubr.bf16.gmra.mxu0 %v1820
      %v1859 = vpop.f32.mrf.mxu0
      %v1860 = vadd.f32 %v877, %v1859
      %v1861 = vpop.f32.mrf.mxu0
      %v1862 = vpop.f32.mrf.mxu0
      %v1863 = vpop.f32.mrf.mxu0
      %1864 = vdwg.mxu0
      %v1866 = vsel %vm879, %v1814, 0
      %v1869 = vsel %vm879, %v1816, 0
      %1871 = vmatprep.subr.bf16.mxu0 0
      %1872 = vmatpush1.bf16.xpose.msra.mxu0 0
      %1873 = vmatprep.subr.bf16.mxu0 0
      %1874 = vmatpush1.bf16.xpose.msra.mxu0 0
      %1875 = vmatprep.subr.bf16.mxu0 0
      %1876 = vmatpush1.bf16.xpose.msra.mxu0 0
      %1877 = vmatprep.subr.bf16.mxu0 0
      %1878 = vmatpush1.bf16.xpose.msra.mxu0 0
      %1879 = vmatprep.subr.bf16.mxu0 0
      %1880 = vmatpush1.bf16.xpose.msra.mxu0 0
      %1881 = vmatprep.subr.bf16.mxu0 0
      %1882 = vmatpush1.bf16.xpose.msra.mxu0 0
      %1883 = vmatprep.subr.bf16.mxu0 0
      %1884 = vmatpush1.bf16.xpose.msra.mxu0 0
      %1885 = vmatprep.subr.bf16.mxu0 0
      %1886 = vmatpush1.bf16.xpose.msra.mxu0 %v1869
      %1887 = vmatprep.subr.bf16.mxu0 0
      %1888 = vmatpush2.bf16.xpose.msra.mxu0 0
      %1889 = vmatprep.subr.bf16.mxu0 0
      %1890 = vmatpush2.bf16.xpose.msra.mxu0 0
      %1891 = vmatprep.subr.bf16.mxu0 0
      %1892 = vmatpush2.bf16.xpose.msra.mxu0 0
      %1893 = vmatprep.subr.bf16.mxu0 0
      %1894 = vmatpush2.bf16.xpose.msra.mxu0 0
      %1895 = vmatprep.subr.bf16.mxu0 0
      %1896 = vmatpush2.bf16.xpose.msra.mxu0 0
      %1897 = vmatprep.subr.bf16.mxu0 0
      %1898 = vmatpush2.bf16.xpose.msra.mxu0 0
      %1899 = vmatprep.subr.bf16.mxu0 0
      %1900 = vmatpush2.bf16.xpose.msra.mxu0 0
      %1901 = vmatprep.subr.bf16.mxu0 0
      %1902 = vmatpush2.bf16.xpose.msra.mxu0 0
      %1903 = vmatprep.mubr.bf16.mxu0 0
      %1904 = vmatmul.mubr.bf16.gmra.mxu0 %v1866
      %v1905 = vpop.f32.mrf.mxu0
      %v1906 = vadd.f32 %v877, %v1905
      %v1907 = vpop.f32.mrf.mxu0
      %v1908 = vpop.f32.mrf.mxu0
      %v1909 = vpop.f32.mrf.mxu0
      %1910 = vdwg.mxu0
      %v1911 = vsel %vm972, %v1860, -inf
      %1912 = vmax.xlane.f32.xlu0 %v1911
      %v1913 = vpop.xlane.xlu0 %1912
      %v1914 = vsel %vm972, %v1906, -inf
      %1915 = vmax.xlane.f32.xlu0 %v1914
      %v1916 = vpop.xlane.xlu0 %1915
      %v1917 = vsub.f32 %v1860, %v1913
      %v1918 = vsub.f32 %v1906, %v1916
      %v1919 = vmul.f32 %v1917, 1.442695
      %v1920 = vpow.pop %v1919
      %v1921 = vmul.f32 %v1918, 1.442695
      %v1922 = vpow.pop %v1921
      %v1923 = vsel %vm972, %v1920, 0.0
      %1924 = vadd.xlane.f32.xlu0 %v1923
      %v1925 = vpop.xlane.xlu0 %1924
      %v1926 = vsel %vm972, %v1922, 0.0
      %1927 = vadd.xlane.f32.xlu0 %v1926
      %v1928 = vpop.xlane.xlu0 %1927
      %v1929 = vrcp.pop %v1925
      %v1930 = vrcp.pop %v1928
      %v1931 = vmul.f32 %v1920, %v1929
      %v1932 = vmul.f32 %v1922, %v1930
      %v1933 = vpack.c.bf16 %v1931, %v1931
      %v1934 = vpack.c.bf16 %v1932, %v1932
      %v1936 = vsel %vm972, %v1933, 0
      %v1939 = vsel %vm1000, %v1817, 0
      %1941 = vmatprep.subr.bf16.mxu0 0
      %1942 = vmatpush1.bf16.msra.mxu0 0
      %1943 = vmatprep.subr.bf16.mxu0 0
      %1944 = vmatpush1.bf16.msra.mxu0 0
      %1945 = vmatprep.subr.bf16.mxu0 0
      %1946 = vmatpush1.bf16.msra.mxu0 0
      %1947 = vmatprep.subr.bf16.mxu0 0
      %1948 = vmatpush1.bf16.msra.mxu0 0
      %1949 = vmatprep.subr.bf16.mxu0 0
      %1950 = vmatpush1.bf16.msra.mxu0 0
      %1951 = vmatprep.subr.bf16.mxu0 0
      %1952 = vmatpush1.bf16.msra.mxu0 0
      %1953 = vmatprep.subr.bf16.mxu0 0
      %1954 = vmatpush1.bf16.msra.mxu0 0
      %1955 = vmatprep.subr.bf16.mxu0 0
      %1956 = vmatpush1.bf16.msra.mxu0 %v1939
      %1957 = vmatprep.subr.bf16.mxu0 0
      %1958 = vmatpush2.bf16.msra.mxu0 0
      %1959 = vmatprep.subr.bf16.mxu0 0
      %1960 = vmatpush2.bf16.msra.mxu0 0
      %1961 = vmatprep.subr.bf16.mxu0 0
      %1962 = vmatpush2.bf16.msra.mxu0 0
      %1963 = vmatprep.subr.bf16.mxu0 0
      %1964 = vmatpush2.bf16.msra.mxu0 0
      %1965 = vmatprep.subr.bf16.mxu0 0
      %1966 = vmatpush2.bf16.msra.mxu0 0
      %1967 = vmatprep.subr.bf16.mxu0 0
      %1968 = vmatpush2.bf16.msra.mxu0 0
      %1969 = vmatprep.subr.bf16.mxu0 0
      %1970 = vmatpush2.bf16.msra.mxu0 0
      %1971 = vmatprep.subr.bf16.mxu0 0
      %1972 = vmatpush2.bf16.msra.mxu0 0
      %1973 = vmatprep.mubr.bf16.mxu0 0
      %1974 = vmatmul.mubr.bf16.gmra.mxu0 %v1936
      %v1975 = vpop.f32.mrf.mxu0
      %v1976 = vadd.f32 0.0, %v1975
      %v1977 = vpop.f32.mrf.mxu0
      %v1978 = vpop.f32.mrf.mxu0
      %v1979 = vpop.f32.mrf.mxu0
      %1980 = vdwg.mxu0
      %v1982 = vsel %vm972, %v1934, 0
      %v1985 = vsel %vm1000, %v1818, 0
      %1987 = vmatprep.subr.bf16.mxu0 0
      %1988 = vmatpush1.bf16.msra.mxu0 0
      %1989 = vmatprep.subr.bf16.mxu0 0
      %1990 = vmatpush1.bf16.msra.mxu0 0
      %1991 = vmatprep.subr.bf16.mxu0 0
      %1992 = vmatpush1.bf16.msra.mxu0 0
      %1993 = vmatprep.subr.bf16.mxu0 0
      %1994 = vmatpush1.bf16.msra.mxu0 0
      %1995 = vmatprep.subr.bf16.mxu0 0
      %1996 = vmatpush1.bf16.msra.mxu0 0
      %1997 = vmatprep.subr.bf16.mxu0 0
      %1998 = vmatpush1.bf16.msra.mxu0 0
      %1999 = vmatprep.subr.bf16.mxu0 0
      %2000 = vmatpush1.bf16.msra.mxu0 0
      %2001 = vmatprep.subr.bf16.mxu0 0
      %2002 = vmatpush1.bf16.msra.mxu0 %v1985
      %2003 = vmatprep.subr.bf16.mxu0 0
      %2004 = vmatpush2.bf16.msra.mxu0 0
      %2005 = vmatprep.subr.bf16.mxu0 0
      %2006 = vmatpush2.bf16.msra.mxu0 0
      %2007 = vmatprep.subr.bf16.mxu0 0
      %2008 = vmatpush2.bf16.msra.mxu0 0
      %2009 = vmatprep.subr.bf16.mxu0 0
      %2010 = vmatpush2.bf16.msra.mxu0 0
      %2011 = vmatprep.subr.bf16.mxu0 0
      %2012 = vmatpush2.bf16.msra.mxu0 0
      %2013 = vmatprep.subr.bf16.mxu0 0
      %2014 = vmatpush2.bf16.msra.mxu0 0
      %2015 = vmatprep.subr.bf16.mxu0 0
      %2016 = vmatpush2.bf16.msra.mxu0 0
      %2017 = vmatprep.subr.bf16.mxu0 0
      %2018 = vmatpush2.bf16.msra.mxu0 0
      %2019 = vmatprep.mubr.bf16.mxu0 0
      %2020 = vmatmul.mubr.bf16.gmra.mxu0 %v1982
      %v2021 = vpop.f32.mrf.mxu0
      %v2022 = vadd.f32 0.0, %v2021
      %v2023 = vpop.f32.mrf.mxu0
      %v2024 = vpop.f32.mrf.mxu0
      %v2025 = vpop.f32.mrf.mxu0
      %2026 = vdwg.mxu0
      %s2027 = scalar_lea.vmem %s6, 6
      %v2028 = vld [vmem:[%s2027] sm:$0x1]
      %v2029 = vpack.c.bf16 %v1976, %v1976
      %s2030 = scalar_lea.vmem %s5, 16
      %v2031 = vld [vmem:[%s2030] sm:$0xf]
      %v2032 = vld [vmem:[%s2030 + $0x4] sm:$0xf]
      %v2035 = vunpack.c.l.b16 %v2031
      %v2036 = vunpack.c.l.b16 %v2032
      %v2037 = vpack.c.b16 %v2036, %v2035
      %v2040 = vsel %vm879, %v2029, 0
      %2042 = vmatprep.subr.bf16.mxu0 0
      %2043 = vmatpush1.bf16.msra.mxu0 0
      %2044 = vmatprep.subr.bf16.mxu0 0
      %2045 = vmatpush1.bf16.msra.mxu0 0
      %2046 = vmatprep.subr.bf16.mxu0 0
      %2047 = vmatpush1.bf16.msra.mxu0 0
      %2048 = vmatprep.subr.bf16.mxu0 0
      %2049 = vmatpush1.bf16.msra.mxu0 0
      %2050 = vmatprep.subr.bf16.mxu0 0
      %2051 = vmatpush1.bf16.msra.mxu0 0
      %2052 = vmatprep.subr.bf16.mxu0 0
      %2053 = vmatpush1.bf16.msra.mxu0 0
      %2054 = vmatprep.subr.bf16.mxu0 0
      %2055 = vmatpush1.bf16.msra.mxu0 0
      %2056 = vmatprep.subr.bf16.mxu0 0
      %2057 = vmatpush1.bf16.msra.mxu0 %v2037
      %2058 = vmatprep.subr.bf16.mxu0 0
      %2059 = vmatpush2.bf16.msra.mxu0 0
      %2060 = vmatprep.subr.bf16.mxu0 0
      %2061 = vmatpush2.bf16.msra.mxu0 0
      %2062 = vmatprep.subr.bf16.mxu0 0
      %2063 = vmatpush2.bf16.msra.mxu0 0
      %2064 = vmatprep.subr.bf16.mxu0 0
      %2065 = vmatpush2.bf16.msra.mxu0 0
      %2066 = vmatprep.subr.bf16.mxu0 0
      %2067 = vmatpush2.bf16.msra.mxu0 0
      %2068 = vmatprep.subr.bf16.mxu0 0
      %2069 = vmatpush2.bf16.msra.mxu0 0
      %2070 = vmatprep.subr.bf16.mxu0 0
      %2071 = vmatpush2.bf16.msra.mxu0 0
      %2072 = vmatprep.subr.bf16.mxu0 0
      %2073 = vmatpush2.bf16.msra.mxu0 0
      %2074 = vmatprep.mubr.bf16.mxu0 0
      %2075 = vmatmul.mubr.bf16.gmra.mxu0 %v2040
      %v2076 = vpop.f32.mrf.mxu0
      %v2077 = vadd.f32 0.0, %v2076
      %v2078 = vpop.f32.mrf.mxu0
      %v2079 = vpop.f32.mrf.mxu0
      %v2080 = vpop.f32.mrf.mxu0
      %2081 = vdwg.mxu0
      %v2083 = vlaneseq
      %v2084 = vshrl.u32 %v2083, 7
      %v2085 = vsub.s32 0, %v2084
      %v2086 = vrot.slane %v2028, %v2085
      %v2088 = vadd.f32 %v2086, %v2077
      %v2089 = vpack.c.bf16 %v2022, %v2022
      %s2090 = scalar_lea.vmem %s5, 24
      %v2091 = vld [vmem:[%s2090] sm:$0xf]
      %v2092 = vld [vmem:[%s2090 + $0x4] sm:$0xf]
      %v2095 = vunpack.c.l.b16 %v2091
      %v2096 = vunpack.c.l.b16 %v2092
      %v2097 = vpack.c.b16 %v2096, %v2095
      %v2100 = vsel %vm879, %v2089, 0
      %2102 = vmatprep.subr.bf16.mxu0 0
      %2103 = vmatpush1.bf16.msra.mxu0 0
      %2104 = vmatprep.subr.bf16.mxu0 0
      %2105 = vmatpush1.bf16.msra.mxu0 0
      %2106 = vmatprep.subr.bf16.mxu0 0
      %2107 = vmatpush1.bf16.msra.mxu0 0
      %2108 = vmatprep.subr.bf16.mxu0 0
      %2109 = vmatpush1.bf16.msra.mxu0 0
      %2110 = vmatprep.subr.bf16.mxu0 0
      %2111 = vmatpush1.bf16.msra.mxu0 0
      %2112 = vmatprep.subr.bf16.mxu0 0
      %2113 = vmatpush1.bf16.msra.mxu0 0
      %2114 = vmatprep.subr.bf16.mxu0 0
      %2115 = vmatpush1.bf16.msra.mxu0 0
      %2116 = vmatprep.subr.bf16.mxu0 0
      %2117 = vmatpush1.bf16.msra.mxu0 %v2097
      %2118 = vmatprep.subr.bf16.mxu0 0
      %2119 = vmatpush2.bf16.msra.mxu0 0
      %2120 = vmatprep.subr.bf16.mxu0 0
      %2121 = vmatpush2.bf16.msra.mxu0 0
      %2122 = vmatprep.subr.bf16.mxu0 0
      %2123 = vmatpush2.bf16.msra.mxu0 0
      %2124 = vmatprep.subr.bf16.mxu0 0
      %2125 = vmatpush2.bf16.msra.mxu0 0
      %2126 = vmatprep.subr.bf16.mxu0 0
      %2127 = vmatpush2.bf16.msra.mxu0 0
      %2128 = vmatprep.subr.bf16.mxu0 0
      %2129 = vmatpush2.bf16.msra.mxu0 0
      %2130 = vmatprep.subr.bf16.mxu0 0
      %2131 = vmatpush2.bf16.msra.mxu0 0
      %2132 = vmatprep.subr.bf16.mxu0 0
      %2133 = vmatpush2.bf16.msra.mxu0 0
      %2134 = vmatprep.mubr.bf16.mxu0 0
      %2135 = vmatmul.mubr.bf16.gmra.mxu0 %v2100
      %v2136 = vpop.f32.mrf.mxu0
      %v2137 = vadd.f32 0.0, %v2136
      %v2138 = vpop.f32.mrf.mxu0
      %v2139 = vpop.f32.mrf.mxu0
      %v2140 = vpop.f32.mrf.mxu0
      %2141 = vdwg.mxu0
      %v2142 = vadd.f32 %v2088, %v2137
      %v2143 = vadd.f32 %v2142, %v1428
      %s2144 = scalar_lea.vmem %s6, 7
      %v2145 = vld [vmem:[%s2144] sm:$0x1]
      %s2146 = scalar_lea.vmem %s6, 8
      %v2147 = vld [vmem:[%s2146] sm:$0x1]
      %v2148 = vsel %vm455, %v2143, 0.0
      %2149 = vadd.xlane.f32.xlu0 %v2148
      %v2150 = vpop.xlane.xlu0 %2149
      %v2151 = vmul.f32 %v2150, %v459
      %v2152 = vsub.f32 %v2143, %v2151
      %v2153 = vmul.f32 %v2152, %v2152
      %v2154 = vsel %vm455, %v2153, 0.0
      %2155 = vadd.xlane.f32.xlu0 %v2154
      %v2156 = vpop.xlane.xlu0 %2155
      %v2157 = vmul.f32 %v2156, %v459
      %v2158 = vadd.f32 %v2157, 1e-12
      %v2159 = vrsqrt.pop %v2158
      %v2160 = vmul.f32 %v2152, %v2159
      %v2162 = vlaneseq
      %v2163 = vshrl.u32 %v2162, 7
      %v2164 = vsub.s32 0, %v2163
      %v2165 = vrot.slane %v2145, %v2164
      %v2167 = vmul.f32 %v2160, %v2165
      %v2169 = vlaneseq
      %v2170 = vshrl.u32 %v2169, 7
      %v2171 = vsub.s32 0, %v2170
      %v2172 = vrot.slane %v2147, %v2171
      %v2174 = vadd.f32 %v2167, %v2172
      %v2175 = vpack.c.bf16 %v2174, %v2174
      %s2176 = scalar_lea.vmem %s7, 16
      %v2177 = vld [vmem:[%s2176] sm:$0xf]
      %v2178 = vld [vmem:[%s2176 + $0x4] sm:$0xf]
      %v2179 = vld [vmem:[%s2176 + $0x8] sm:$0xf]
      %v2180 = vld [vmem:[%s2176 + $0xc] sm:$0xf]
      %s2181 = scalar_lea.vmem %s8, 1
      %v2182 = vld [vmem:[%s2181] sm:$0x1]
      %v2184 = vlaneseq
      %v2185 = vshrl.u32 %v2184, 7
      %v2186 = vsub.s32 0, %v2185
      %v2187 = vrot.slane %v2182, %v2186
      %v2193 = vunpack.c.l.b16 %v2177
      %v2194 = vunpack.c.l.b16 %v2178
      %v2195 = vunpack.c.l.b16 %v2179
      %v2196 = vunpack.c.l.b16 %v2180
      %v2197 = vpack.c.b16 %v2194, %v2193
      %v2198 = vpack.c.b16 %v2196, %v2195
      %v2202 = vsel %vm455, %v2175, 0
      %2204 = vmatprep.subr.bf16.mxu0 0
      %2205 = vmatpush1.bf16.msra.mxu0 0
      %2206 = vmatprep.subr.bf16.mxu0 0
      %2207 = vmatpush1.bf16.msra.mxu0 0
      %2208 = vmatprep.subr.bf16.mxu0 0
      %2209 = vmatpush1.bf16.msra.mxu0 0
      %2210 = vmatprep.subr.bf16.mxu0 0
      %2211 = vmatpush1.bf16.msra.mxu0 0
      %2212 = vmatprep.subr.bf16.mxu0 0
      %2213 = vmatpush1.bf16.msra.mxu0 0
      %2214 = vmatprep.subr.bf16.mxu0 0
      %2215 = vmatpush1.bf16.msra.mxu0 0
      %2216 = vmatprep.subr.bf16.mxu0 0
      %2217 = vmatpush1.bf16.msra.mxu0 %v2198
      %2218 = vmatprep.subr.bf16.mxu0 0
      %2219 = vmatpush1.bf16.msra.mxu0 %v2197
      %2220 = vmatprep.subr.bf16.mxu0 0
      %2221 = vmatpush2.bf16.msra.mxu0 0
      %2222 = vmatprep.subr.bf16.mxu0 0
      %2223 = vmatpush2.bf16.msra.mxu0 0
      %2224 = vmatprep.subr.bf16.mxu0 0
      %2225 = vmatpush2.bf16.msra.mxu0 0
      %2226 = vmatprep.subr.bf16.mxu0 0
      %2227 = vmatpush2.bf16.msra.mxu0 0
      %2228 = vmatprep.subr.bf16.mxu0 0
      %2229 = vmatpush2.bf16.msra.mxu0 0
      %2230 = vmatprep.subr.bf16.mxu0 0
      %2231 = vmatpush2.bf16.msra.mxu0 0
      %2232 = vmatprep.subr.bf16.mxu0 0
      %2233 = vmatpush2.bf16.msra.mxu0 0
      %2234 = vmatprep.subr.bf16.mxu0 0
      %2235 = vmatpush2.bf16.msra.mxu0 0
      %2236 = vmatprep.mubr.bf16.mxu0 0
      %2237 = vmatmul.mubr.bf16.gmra.mxu0 %v2202
      %v2238 = vpop.f32.mrf.mxu0
      %v2239 = vadd.f32 %v2187, %v2238
      %v2240 = vpop.f32.mrf.mxu0
      %v2241 = vpop.f32.mrf.mxu0
      %v2242 = vpop.f32.mrf.mxu0
      %2243 = vdwg.mxu0
      %v2244 = vmul.f32 %v2239, %v2239
      %v2245 = vmul.f32 %v2239, %v2244
      %v2246 = vmul.f32 %v2245, 0.044715
      %v2247 = vadd.f32 %v2239, %v2246
      %v2248 = vmul.f32 %v2247, 0.7978846
      %v2249 = vtanh.pop %v2248
      %v2250 = vadd.f32 %v2249, 1.0
      %v2251 = vmul.f32 %v2250, 0.5
      %v2252 = vmul.f32 %v2239, %v2251
      %v2253 = vpack.c.bf16 %v2252, %v2252
      %s2254 = scalar_lea.vmem %s9, 32
      %v2255 = vld [vmem:[%s2254] sm:$0xf]
      %v2256 = vld [vmem:[%s2254 + $0x4] sm:$0xf]
      %v2257 = vld [vmem:[%s2254 + $0x8] sm:$0xf]
      %v2258 = vld [vmem:[%s2254 + $0xc] sm:$0xf]
      %v2259 = vld [vmem:[%s2254 + $0x10] sm:$0xf]
      %v2260 = vld [vmem:[%s2254 + $0x14] sm:$0xf]
      %v2261 = vld [vmem:[%s2254 + $0x18] sm:$0xf]
      %v2262 = vld [vmem:[%s2254 + $0x1c] sm:$0xf]
      %s2263 = scalar_lea.vmem %s6, 9
      %v2264 = vld [vmem:[%s2263] sm:$0x1]
      %v2266 = vlaneseq
      %v2267 = vshrl.u32 %v2266, 7
      %v2268 = vsub.s32 0, %v2267
      %v2269 = vrot.slane %v2264, %v2268
      %v2279 = vunpack.c.l.b16 %v2255
      %v2280 = vunpack.c.l.b16 %v2256
      %v2281 = vunpack.c.l.b16 %v2257
      %v2282 = vunpack.c.l.b16 %v2258
      %v2283 = vunpack.c.l.b16 %v2259
      %v2284 = vunpack.c.l.b16 %v2260
      %v2285 = vunpack.c.l.b16 %v2261
      %v2286 = vunpack.c.l.b16 %v2262
      %v2287 = vpack.c.b16 %v2280, %v2279
      %v2288 = vpack.c.b16 %v2282, %v2281
      %v2289 = vpack.c.b16 %v2284, %v2283
      %v2290 = vpack.c.b16 %v2286, %v2285
      %v2296 = vsel %vm1353, %v2253, 0
      %2298 = vmatprep.subr.bf16.mxu0 0
      %2299 = vmatpush1.bf16.msra.mxu0 0
      %2300 = vmatprep.subr.bf16.mxu0 0
      %2301 = vmatpush1.bf16.msra.mxu0 0
      %2302 = vmatprep.subr.bf16.mxu0 0
      %2303 = vmatpush1.bf16.msra.mxu0 0
      %2304 = vmatprep.subr.bf16.mxu0 0
      %2305 = vmatpush1.bf16.msra.mxu0 0
      %2306 = vmatprep.subr.bf16.mxu0 0
      %2307 = vmatpush1.bf16.msra.mxu0 %v2290
      %2308 = vmatprep.subr.bf16.mxu0 0
      %2309 = vmatpush1.bf16.msra.mxu0 %v2289
      %2310 = vmatprep.subr.bf16.mxu0 0
      %2311 = vmatpush1.bf16.msra.mxu0 %v2288
      %2312 = vmatprep.subr.bf16.mxu0 0
      %2313 = vmatpush1.bf16.msra.mxu0 %v2287
      %2314 = vmatprep.subr.bf16.mxu0 0
      %2315 = vmatpush2.bf16.msra.mxu0 0
      %2316 = vmatprep.subr.bf16.mxu0 0
      %2317 = vmatpush2.bf16.msra.mxu0 0
      %2318 = vmatprep.subr.bf16.mxu0 0
      %2319 = vmatpush2.bf16.msra.mxu0 0
      %2320 = vmatprep.subr.bf16.mxu0 0
      %2321 = vmatpush2.bf16.msra.mxu0 0
      %2322 = vmatprep.subr.bf16.mxu0 0
      %2323 = vmatpush2.bf16.msra.mxu0 0
      %2324 = vmatprep.subr.bf16.mxu0 0
      %2325 = vmatpush2.bf16.msra.mxu0 0
      %2326 = vmatprep.subr.bf16.mxu0 0
      %2327 = vmatpush2.bf16.msra.mxu0 0
      %2328 = vmatprep.subr.bf16.mxu0 0
      %2329 = vmatpush2.bf16.msra.mxu0 0
      %2330 = vmatprep.mubr.bf16.mxu0 0
      %2331 = vmatmul.mubr.bf16.gmra.mxu0 %v2296
      %v2332 = vpop.f32.mrf.mxu0
      %v2333 = vadd.f32 %v2269, %v2332
      %v2334 = vpop.f32.mrf.mxu0
      %v2335 = vpop.f32.mrf.mxu0
      %v2336 = vpop.f32.mrf.mxu0
      %2337 = vdwg.mxu0
      %v2338 = vadd.f32 %v2333, %v2174
      %s2339 = scalar_lea.vmem %s6, 10
      %v2340 = vld [vmem:[%s2339] sm:$0x1]
      %s2341 = scalar_lea.vmem %s6, 11
      %v2342 = vld [vmem:[%s2341] sm:$0x1]
      %v2343 = vsel %vm455, %v2338, 0.0
      %2344 = vadd.xlane.f32.xlu0 %v2343
      %v2345 = vpop.xlane.xlu0 %2344
      %v2346 = vmul.f32 %v2345, %v459
      %v2347 = vsub.f32 %v2338, %v2346
      %v2348 = vmul.f32 %v2347, %v2347
      %v2349 = vsel %vm455, %v2348, 0.0
      %2350 = vadd.xlane.f32.xlu0 %v2349
      %v2351 = vpop.xlane.xlu0 %2350
      %v2352 = vmul.f32 %v2351, %v459
      %v2353 = vadd.f32 %v2352, 1e-12
      %v2354 = vrsqrt.pop %v2353
      %v2355 = vmul.f32 %v2347, %v2354
      %v2357 = vlaneseq
      %v2358 = vshrl.u32 %v2357, 7
      %v2359 = vsub.s32 0, %v2358
      %v2360 = vrot.slane %v2340, %v2359
      %v2362 = vmul.f32 %v2355, %v2360
      %v2364 = vlaneseq
      %v2365 = vshrl.u32 %v2364, 7
      %v2366 = vsub.s32 0, %v2365
      %v2367 = vrot.slane %v2342, %v2366
      %v2369 = vadd.f32 %v2362, %v2367
      %v2370 = vsel %vm455, %v2369, -inf
      %v2371 = vrot.slane %v2370, 4
      %v2372 = vmax.f32 %v2370, %v2371
      %v2373 = vrot.slane %v2372, 2
      %v2374 = vmax.f32 %v2372, %v2373
      %v2375 = vrot.slane %v2374, 1
      %v2376 = vmax.f32 %v2374, %v2375
      %v2377 = vpack.c.bf16 %v2369, %v2369
      %v2378 = vld [vmem:[%s10] sm:$0xf]
      %v2379 = vld [vmem:[%s10 + $0x4] sm:$0xf]
      %v2380 = vld [vmem:[%s10 + $0x8] sm:$0xf]
      %v2381 = vld [vmem:[%s10 + $0xc] sm:$0xf]
      %s2382 = scalar_lea.vmem %s2, 2
      %v2383 = vld [vmem:[%s2382] sm:$0x1]
      %v2388 = vunpack.c.l.b16 %v2378
      %v2389 = vunpack.c.l.b16 %v2379
      %v2390 = vunpack.c.l.b16 %v2380
      %v2391 = vunpack.c.l.b16 %v2381
      %v2392 = vpack.c.b16 %v2389, %v2388
      %v2393 = vpack.c.b16 %v2391, %v2390
      %v2397 = vsel %vm455, %v2377, 0
      %2399 = vmatprep.subr.bf16.mxu0 0
      %2400 = vmatpush1.bf16.msra.mxu0 0
      %2401 = vmatprep.subr.bf16.mxu0 0
      %2402 = vmatpush1.bf16.msra.mxu0 0
      %2403 = vmatprep.subr.bf16.mxu0 0
      %2404 = vmatpush1.bf16.msra.mxu0 0
      %2405 = vmatprep.subr.bf16.mxu0 0
      %2406 = vmatpush1.bf16.msra.mxu0 0
      %2407 = vmatprep.subr.bf16.mxu0 0
      %2408 = vmatpush1.bf16.msra.mxu0 0
      %2409 = vmatprep.subr.bf16.mxu0 0
      %2410 = vmatpush1.bf16.msra.mxu0 0
      %2411 = vmatprep.subr.bf16.mxu0 0
      %2412 = vmatpush1.bf16.msra.mxu0 %v2393
      %2413 = vmatprep.subr.bf16.mxu0 0
      %2414 = vmatpush1.bf16.msra.mxu0 %v2392
      %2415 = vmatprep.subr.bf16.mxu0 0
      %2416 = vmatpush2.bf16.msra.mxu0 0
      %2417 = vmatprep.subr.bf16.mxu0 0
      %2418 = vmatpush2.bf16.msra.mxu0 0
      %2419 = vmatprep.subr.bf16.mxu0 0
      %2420 = vmatpush2.bf16.msra.mxu0 0
      %2421 = vmatprep.subr.bf16.mxu0 0
      %2422 = vmatpush2.bf16.msra.mxu0 0
      %2423 = vmatprep.subr.bf16.mxu0 0
      %2424 = vmatpush2.bf16.msra.mxu0 0
      %2425 = vmatprep.subr.bf16.mxu0 0
      %2426 = vmatpush2.bf16.msra.mxu0 0
      %2427 = vmatprep.subr.bf16.mxu0 0
      %2428 = vmatpush2.bf16.msra.mxu0 0
      %2429 = vmatprep.subr.bf16.mxu0 0
      %2430 = vmatpush2.bf16.msra.mxu0 0
      %2431 = vmatprep.mubr.bf16.mxu0 0
      %2432 = vmatmul.mubr.bf16.gmra.mxu0 %v2397
      %v2433 = vpop.f32.mrf.mxu0
      %v2434 = vadd.f32 %v2383, %v2433
      %v2435 = vpop.f32.mrf.mxu0
      %v2436 = vpop.f32.mrf.mxu0
      %v2437 = vpop.f32.mrf.mxu0
      %2438 = vdwg.mxu0
      %v2439 = vtanh.pop %v2434
      %v2440 = vld [vmem:[%s11] sm:$0x1]
      %v2441 = vmul.f32 %v2376, %v2440
      %vm2442 = vcmask 253952
      %v2443 = vsel %vm2442, %v2441, 0.0
      %2444 = vadd.xlane.f32.xlu0 %v2443
      %v2445 = vpop.xlane.xlu0 %2444
      %s2446 = scalar_lea.vmem %s11, 1
      %v2447 = vld [vmem:[%s2446] sm:$0x1]
      %v2448 = vmul.f32 %v2439, %v2447
      %v2449 = vsel %vm2442, %v2448, 0.0
      %2450 = vadd.xlane.f32.xlu0 %v2449
      %v2451 = vpop.xlane.xlu0 %2450
      %v2452 = vadd.f32 %v2445, %v2451
      %v2453 = vld [vmem:[#allocation2] sm:$0x1]
      %v2454 = vadd.f32 %v2452, %v2453
      %vm2455 = vcmask 0
      %2456 = vst.msk [vmem:[%s449] sm:$0x1] %vm2455, %v2454
      %p2457 = scmp.lt.s32.totalorder %s26, 1
      %s2458 = scalar_select %p2457, %s26, 1
      %s2459 = scalar_lea.vmem %s13, %s2458
      // Predicated region
      $region73: #{tpu_custom_call.1} parent=71 // pred_check
        %p2460 = pneg %p327
      $region74: #{tpu_custom_call.1} parent=71 // pred_check_branch
        %2462 = sbr.rel (%p2460) target = $region76
      $region75: #{tpu_custom_call.1} parent=71 // pred_region
        _
      $region76: #{tpu_custom_call.1} parent=71 // pred_fallthru
        _
    $region72: #{tpu_custom_call.1} parent=5 // pred_fallthru
      _
    %p2463 = scmp.le.s32.totalorder 2, %s21
    // Predicated region
    $region77: #{tpu_custom_call.1} parent=5 // pred_check
      %p2464 = pneg %p2463
    $region78: #{tpu_custom_call.1} parent=5 // pred_check_branch
      %2466 = sbr.rel (%p2464) target = $region80
    $region79: #{tpu_custom_call.1} parent=5 // pred_region
      %s2467 = ssub.s32 %s21, 2
      // Predicated region
      $region81: #{tpu_custom_call.1} parent=79 // pred_check
        %p2468 = pneg %p333
      $region82: #{tpu_custom_call.1} parent=79 // pred_check_branch
        %2470 = sbr.rel (%p2468) target = $region84
      $region83: #{tpu_custom_call.1} parent=79 // pred_region
        %p2471 = scmp.lt.s32.totalorder %s27, 1
        %s2472 = scalar_select %p2471, %s27, 1
        %s2473 = scalar_lea.vmem %s13, %s2472
      $region84: #{tpu_custom_call.1} parent=79 // pred_fallthru
        _
    $region80: #{tpu_custom_call.1} parent=5 // pred_fallthru
      _
  $region6: #{tpu_custom_call.1} parent=0 // loop_footer
    %s25 = sadd.s32 1, %s21
  $region7: #{tpu_custom_call.1} parent=0 // loop_footer_branch
    %20 = sbr.rel target = $region3
  $region8: #{tpu_custom_call.1} parent=0 // loop_exit
    _

</llo_original>
